<compile_context>
chip_gen: v7x
topology: tpu7x:2x2x1
jax: 0.10.0
libtpu: 0.0.40
codegen_flags: <defaults>
</compile_context>

<pallas_src>
import numpy as np
import jax
import jax.numpy as jnp
from jax.experimental import pallas as pl
from jax.experimental.pallas import tpu as pltpu

# ----- hyperparameters (small, consistent with StreamingECG's constructor) -----
IN_CHANNEL = 4
WINDOW = 16                      # self.win
SEQ_LEN = 4                      # GRU time steps -> input length = SEQ_LEN * WINDOW
BATCH = 2
HIDDEN = 64
NUM_LAYERS = 2
GROUPS = 8
SEG_NUMBER = 4
CLS_NUMBER = 4
ATTN_GROUP = 4                   # SortAttn default group
INPUT_SIZE = IN_CHANNEL * WINDOW                 # 64 == HIDDEN (all GRU layers same width)
GROUP_HIDDEN = HIDDEN * 2 // ATTN_GROUP          # 32


# ============================ Pallas kernel ============================

def _sigmoid(x):
    # exp on the EUP, reciprocal on the EUP approx path (otherwise-free slot).
    return pl.reciprocal(1.0 + jnp.exp(-x), approx=True)


def streaming_ecg_kernel(x_ref, h0_ref, wih_ref, bih_ref, whh_ref, bhh_ref,
                         attn_a_ref, attn_b_ref, mseg_ref, mcls1_ref, mcls2_ref,
                         ys_seg_ref, h_ref, cls_ref):
    TB = x_ref.shape[0]
    L, B, H = h0_ref.shape
    T = TB // B
    H3 = 3 * H

    # iotas for the exact rank-select sort (built once, reused every step)
    row_i = jax.lax.broadcasted_iota(jnp.int32, (H, H), 0)
    col_i = jax.lax.broadcasted_iota(jnp.int32, (H, H), 1)
    col_f = col_i.astype(jnp.float32)

    def sort_rows(x):
        # Ascending, value-exact sort of each row of (B, H): stable rank via broadcast
        # compares (VPU) + lane reduce (XLU), then a one-hot select + sublane reduce.
        a = x[:, None, :]                       # a[b,i,k]  = x[b,k]
        bm = x[:, :, None]                      # bm[b,i,k] = x[b,i]
        lt = a < bm
        eq_lo = jnp.logical_and(a == bm, col_i < row_i)
        cnt = jnp.logical_or(lt, eq_lo).astype(jnp.float32)
        rank = jnp.sum(cnt, axis=-1)            # (B, H) stable rank (exact small ints)
        onehot = (rank[:, :, None] == col_f).astype(jnp.float32)   # (B, H, H)
        return jnp.sum(onehot * x[:, :, None], axis=1)             # (B, H)

    x_bf = x_ref[...].astype(jnp.bfloat16)      # (T*B, IN), cast once

    inp_all_bf = x_bf                           # input sequence for the current layer
    ys_all = None
    h_finals = []
    for l in range(L):
        # ---- hoisted input-side GRU matmul: all T steps in one dot (off the critical path)
        gi_all = jnp.dot(inp_all_bf, wih_ref[l],
                         preferred_element_type=jnp.float32) + bih_ref[l]   # (T*B, 3H)

        # per-layer weights / biases hoisted out of the unrolled time loop
        whh_l = whh_ref[l]                                   # (H, 3H) bf16
        bhh_l = jnp.broadcast_to(bhh_ref[l], (B, H3))        # (B, 3H) f32, hoisted broadcast
        attn_a_l = attn_a_ref[l]                             # (2H, 2H) bf16
        attn_b_l = attn_b_ref[l]                             # (2H, H)  bf16

        h = h0_ref[l]                                        # (B, H) f32, carried in values
        outs = []
        for t in range(T):
            gi = gi_all[t * B:(t + 1) * B, :]                # (B, 3H)
            gh = jnp.dot(h.astype(jnp.bfloat16), whh_l,
                         preferred_element_type=jnp.float32) + bhh_l
            # --- nn.GRUCell gates (r, z fused into one sigmoid over (B, 2H)) ---
            rz = _sigmoid(gi[:, :2 * H] + gh[:, :2 * H])
            r = rz[:, :H]
            z = rz[:, H:]
            n = jnp.tanh(gi[:, 2 * H:] + r * gh[:, 2 * H:])
            newh = n + z * (h - n)                           # == (1-z)*n + z*h
            # --- SortAttn: scores = sigmoid(relu([h, sort(h)] @ A_l) @ B_l) ---
            sorted_h = sort_rows(newh)
            se = jnp.concatenate([newh, sorted_h], axis=-1).astype(jnp.bfloat16)
            pre = jnp.maximum(
                jnp.dot(se, attn_a_l, preferred_element_type=jnp.float32), 0.0)
            scores = _sigmoid(
                jnp.dot(pre.astype(jnp.bfloat16), attn_b_l,
                        preferred_element_type=jnp.float32))
            h = newh * scores
            outs.append(h)

        h_ref[l] = h                                         # single store per layer
        h_finals.append(h)
        ys_all = jnp.concatenate(outs, axis=0)               # (T*B, H), rows = t*B + b
        inp_all_bf = ys_all.astype(jnp.bfloat16)             # feeds the next layer

    # ---- heads (off the recurrent path) ----
    # seg head: one (T*B, H) @ (H, window*seg) matmul; write ys||seg as one lane-dense slab
    seg_all = jnp.dot(inp_all_bf, mseg_ref[...], preferred_element_type=jnp.float32)
    ys_seg_ref[...] = jnp.concatenate([ys_all, seg_all], axis=-1)    # (T*B, H + W*SEG)

    # cls head: relu((h transposed+flattened) @ M1) @ M2
    hflat = jnp.concatenate(h_finals, axis=-1)               # (B, L*H)
    pre_c = jnp.maximum(
        jnp.dot(hflat.astype(jnp.bfloat16), mcls1_ref[...],
                preferred_element_type=jnp.float32), 0.0)
    cls_ref[...] = jnp.dot(pre_c.astype(jnp.bfloat16), mcls2_ref[...],
                           preferred_element_type=jnp.float32)


@jax.jit
def run_kernel(x_flat, h_init, wihT, bih, whhT, bhh, attn_a, attn_b, m_seg, m_cls1, m_cls2):
    TB = x_flat.shape[0]
    L, B, H = h_init.shape
    return pl.pallas_call(
        streaming_ecg_kernel,
        out_shape=(
            jax.ShapeDtypeStruct((TB, H + WINDOW * SEG_NUMBER), jnp.float32),  # ys||seg slab
            jax.ShapeDtypeStruct((L, B, H), jnp.float32),                      # final hidden
            jax.ShapeDtypeStruct((B, CLS_NUMBER), jnp.float32),                # cls
        ),
        in_specs=[pl.BlockSpec(memory_space=pltpu.MemorySpace.VMEM)] * 11,
        out_specs=tuple(pl.BlockSpec(memory_space=pltpu.MemorySpace.VMEM) for _ in range(3)),
    )(x_flat, h_init, wihT, bih, whhT, bhh, attn_a, attn_b, m_seg, m_cls1, m_cls2)


# ============================ plain-JAX glue / reference ============================

def shuffle_jax(x):
    # PyTorch: x.transpose(-1,-2).contiguous().view(x.shape)
    shape = x.shape
    return jnp.swapaxes(x, -1, -2).reshape(shape)


def attn_linear_part(flat, w1, w2, w3):
    # flat: (N, 2H), row-major layout of (N, 2, H) — linear part of SortAttn (pre-ReLU)
    y = flat.reshape(-1, 2, HIDDEN) @ w1.T
    y = y.reshape(-1, ATTN_GROUP, GROUP_HIDDEN)
    y = shuffle_jax(y)
    y = y @ w2.T
    y = shuffle_jax(y)
    y = y @ w3.T
    return y.reshape(flat.shape[0], 2 * HIDDEN)


def seg_head_ref(ys, p):
    b, t = ys.shape[0], ys.shape[1]
    y = ys.reshape(b, t, GROUPS, HIDDEN // GROUPS)
    y = y @ p["wa"].T
    y = shuffle_jax(y)
    y = y @ p["wb"].T
    y = shuffle_jax(y)
    y = y @ p["wc"].T
    y = y.reshape(b, t, GROUPS * SEG_NUMBER)
    y = y.reshape(b, t, SEG_NUMBER, GROUPS)
    y = y @ p["wd"].T                                    # (b, t, seg, window)
    y = jnp.swapaxes(y, -1, -2)                          # (b, t, window, seg)
    return y.reshape(b, t * WINDOW, SEG_NUMBER)


def cls_pre_relu(flat, p):
    y = flat.reshape(-1, GROUPS, NUM_LAYERS * HIDDEN // GROUPS)
    y = y @ p["w1"].T
    y = shuffle_jax(y)
    y = y @ p["w2"].T
    y = shuffle_jax(y)
    y = y @ p["w3"].T
    return y.reshape(flat.shape[0], GROUPS * CLS_NUMBER)


def cls_head_ref(h, p):
    flat = jnp.swapaxes(h, 0, 1).reshape(h.shape[1], -1)
    return jax.nn.relu(cls_pre_relu(flat, p)) @ p["w4"].T


def gru_cell_ref(x, h, layer):
    gi = x @ layer["w_ih"].T + layer["b_ih"]
    gh = h @ layer["w_hh"].T + layer["b_hh"]
    H = HIDDEN
    r = jax.nn.sigmoid(gi[:, :H] + gh[:, :H])
    z = jax.nn.sigmoid(gi[:, H:2 * H] + gh[:, H:2 * H])
    n = jnp.tanh(gi[:, 2 * H:] + r * gh[:, 2 * H:])
    return (1.0 - z) * n + z * h


def sort_attn_ref(x, layer):
    sorted_x = jnp.sort(x, axis=1)
    se = jnp.stack([x, sorted_x], axis=1).reshape(x.shape[0], 2 * HIDDEN)
    y = attn_linear_part(se, layer["attn_w1"], layer["attn_w2"], layer["attn_w3"])
    y = jax.nn.relu(y) @ layer["attn_w4"].T
    return x * jax.nn.sigmoid(y)


def reference_forward(x, params, h0):
    b, l, c = x.shape
    T = l // WINDOW
    xr = x.reshape(b, T, WINDOW * c)
    h = (h0.reshape(1, 1, 1) * jnp.ones((1, b, 1), jnp.float32)
         * jnp.ones((NUM_LAYERS, 1, HIDDEN), jnp.float32))
    ys = []
    for t in range(T):
        inp = xr[:, t]
        hs = []
        for lidx in range(NUM_LAYERS):
            layer = params["gru"][lidx]
            hid = gru_cell_ref(inp, h[lidx], layer)
            hid = sort_attn_ref(hid, layer)
            hs.append(hid)
            inp = hid
        h = jnp.stack(hs, axis=0)
        ys.append(inp)
    ys = jnp.stack(ys, axis=1)
    return (seg_head_ref(ys, params["seg"]), cls_head_ref(h, params["cls"])), (ys, h)


# ============================ parameter setup ============================

def init_params(key):
    def uni(k, shape, fan_in):
        bound = 1.0 / np.sqrt(fan_in)
        return jax.random.uniform(k, shape, jnp.float32, -bound, bound)

    params = {"gru": []}
    for _ in range(NUM_LAYERS):
        key, *ks = jax.random.split(key, 9)
        params["gru"].append({
            "w_ih": uni(ks[0], (3 * HIDDEN, INPUT_SIZE), HIDDEN),
            "w_hh": uni(ks[1], (3 * HIDDEN, HIDDEN), HIDDEN),
            "b_ih": uni(ks[2], (3 * HIDDEN,), HIDDEN),
            "b_hh": uni(ks[3], (3 * HIDDEN,), HIDDEN),
            "attn_w1": uni(ks[4], (HIDDEN, HIDDEN), HIDDEN),
            "attn_w2": uni(ks[5], (GROUP_HIDDEN, GROUP_HIDDEN), GROUP_HIDDEN),
            "attn_w3": uni(ks[6], (GROUP_HIDDEN, GROUP_HIDDEN), GROUP_HIDDEN),
            "attn_w4": uni(ks[7], (HIDDEN, GROUP_HIDDEN * ATTN_GROUP), GROUP_HIDDEN * ATTN_GROUP),
        })
    key, *ks = jax.random.split(key, 5)
    params["seg"] = {
        "wa": uni(ks[0], (SEG_NUMBER, HIDDEN // GROUPS), HIDDEN // GROUPS),
        "wb": uni(ks[1], (SEG_NUMBER, SEG_NUMBER), SEG_NUMBER),
        "wc": uni(ks[2], (SEG_NUMBER, SEG_NUMBER), SEG_NUMBER),
        "wd": uni(ks[3], (WINDOW, GROUPS), GROUPS),
    }
    key, *ks = jax.random.split(key, 5)
    params["cls"] = {
        "w1": uni(ks[0], (CLS_NUMBER, HIDDEN * NUM_LAYERS // GROUPS), HIDDEN * NUM_LAYERS // GROUPS),
        "w2": uni(ks[1], (CLS_NUMBER, CLS_NUMBER), CLS_NUMBER),
        "w3": uni(ks[2], (CLS_NUMBER, CLS_NUMBER), CLS_NUMBER),
        "w4": uni(ks[3], (CLS_NUMBER, CLS_NUMBER * GROUPS), CLS_NUMBER * GROUPS),
    }
    return params


def build_kernel_params(params):
    # Pre-transpose GRU weights and pre-compose the purely-linear reshuffle chains
    # (Shuffle/Unflatten/Linear) into single matrices by pushing identities through the
    # reference layers (full f32 precision), then cast the matmul weights to bf16 once.
    # Biases stay f32.  Parameter setup only — all data-dependent compute is in-kernel.
    with jax.default_matmul_precision("highest"):
        wihT = jnp.stack([p["w_ih"].T for p in params["gru"]])          # (L, IN, 3H)
        whhT = jnp.stack([p["w_hh"].T for p in params["gru"]])          # (L, H, 3H)
        bih = jnp.stack([p["b_ih"][None, :] for p in params["gru"]])    # (L, 1, 3H)
        bhh = jnp.stack([p["b_hh"][None, :] for p in params["gru"]])
        eye2h = jnp.eye(2 * HIDDEN, dtype=jnp.float32)
        attn_a = jnp.stack([attn_linear_part(eye2h, p["attn_w1"], p["attn_w2"], p["attn_w3"])
                            for p in params["gru"]])                    # (L, 2H, 2H)
        attn_b = jnp.stack([p["attn_w4"].T for p in params["gru"]])     # (L, 2H, H)
        m_seg = seg_head_ref(jnp.eye(HIDDEN, dtype=jnp.float32).reshape(HIDDEN, 1, HIDDEN),
                             params["seg"]).reshape(HIDDEN, WINDOW * SEG_NUMBER)
        m_cls1 = cls_pre_relu(jnp.eye(NUM_LAYERS * HIDDEN, dtype=jnp.float32), params["cls"])
        m_cls2 = params["cls"]["w4"].T
    bf = jnp.bfloat16
    return (wihT.astype(bf), bih, whhT.astype(bf), bhh, attn_a.astype(bf),
            attn_b.astype(bf), m_seg.astype(bf), m_cls1.astype(bf), m_cls2.astype(bf))


def streaming_ecg_forward(x, params, h0):
    # layout: x is (B, L, C); reshaped to (B, T, window*C), made time-major and flattened
    # to (T*B, window*C) rows (row index = t*B + b) for the kernel.
    b, l, c = x.shape
    T = l // WINDOW
    x_flat = x.reshape(b, T, WINDOW * c).transpose(1, 0, 2).reshape(T * b, WINDOW * c)
    h_init = (h0.reshape(1, 1, 1) * jnp.ones((1, b, 1), jnp.float32)
              * jnp.ones((NUM_LAYERS, 1, HIDDEN), jnp.float32))         # init_hidden == ones
    kp = build_kernel_params(params)
    ys_seg, h_out, cls = run_kernel(x_flat, h_init, *kp)
    ys = ys_seg[:, :HIDDEN].reshape(T, b, HIDDEN).transpose(1, 0, 2)    # (B, T, H)
    seg = ys_seg[:, HIDDEN:].reshape(T, b, WINDOW, SEG_NUMBER)
    seg = seg.transpose(1, 0, 2, 3).reshape(b, T * WINDOW, SEG_NUMBER)
    return (seg, cls), (ys, h_out)


# ============================ main ============================

if __name__ == "__main__":
    key = jax.random.PRNGKey(0)
    pkey, xkey = jax.random.split(key)
    params = init_params(pkey)

    L_TOTAL = SEQ_LEN * WINDOW
    x = jax.random.normal(xkey, (BATCH, L_TOTAL, IN_CHANNEL), jnp.float32)
    h0 = jnp.zeros((1,), jnp.float32)

    (seg, cls), (ys, h) = streaming_ecg_forward(x, params, h0)
    jax.block_until_ready((seg, cls, ys, h))

    # shape checks matching the PyTorch module
    assert seg.shape == (BATCH, L_TOTAL, SEG_NUMBER)
    assert cls.shape == (BATCH, CLS_NUMBER)
    assert ys.shape == (BATCH, SEQ_LEN, HIDDEN)
    assert h.shape == (NUM_LAYERS, BATCH, HIDDEN)

    # numerical check against a full-f32 plain-JAX reference of the PyTorch forward
    with jax.default_matmul_precision("highest"):
        (seg_r, cls_r), (ys_r, h_r) = reference_forward(x, params, h0)
    for got, ref in ((seg, seg_r), (cls, cls_r), (ys, ys_r), (h, h_r)):
        np.testing.assert_allclose(np.asarray(got), np.asarray(ref), rtol=2e-2, atol=2e-2)

    print("KERNEL_OK")
</pallas_src>

<mosaic_0001>
module attributes {stable_mosaic.version = 11 : i64} {
  func.func @streaming_ecg_kernel(%arg0: memref<8x64xf32, #tpu.memory_space<vmem>>, %arg1: memref<2x2x64xf32, #tpu.memory_space<vmem>>, %arg2: memref<2x64x192xbf16, #tpu.memory_space<vmem>>, %arg3: memref<2x1x192xf32, #tpu.memory_space<vmem>>, %arg4: memref<2x64x192xbf16, #tpu.memory_space<vmem>>, %arg5: memref<2x1x192xf32, #tpu.memory_space<vmem>>, %arg6: memref<2x128x128xbf16, #tpu.memory_space<vmem>>, %arg7: memref<2x128x64xbf16, #tpu.memory_space<vmem>>, %arg8: memref<64x64xbf16, #tpu.memory_space<vmem>>, %arg9: memref<128x32xbf16, #tpu.memory_space<vmem>>, %arg10: memref<32x4xbf16, #tpu.memory_space<vmem>>, %arg11: memref<8x128xf32, #tpu.memory_space<vmem>>, %arg12: memref<2x2x64xf32, #tpu.memory_space<vmem>>, %arg13: memref<2x4xf32, #tpu.memory_space<vmem>>) attributes {dimension_semantics = [], scalar_prefetch = 0 : i64, scratch_operands = 0 : i64, tpu.core_type = #tpu.core_type<tc>} {
    %0 = tpu.iota {dimensions = array<i32: 0>} : vector<64x64xi32>
    %1 = tpu.iota {dimensions = array<i32: 1>} : vector<64x64xi32>
    %2 = arith.sitofp %1 : vector<64x64xi32> to vector<64x64xf32>
    %c0 = arith.constant 0 : index
    %c0_0 = arith.constant 0 : index
    %3 = vector.load %arg0[%c0, %c0_0] : memref<8x64xf32, #tpu.memory_space<vmem>>, vector<8x64xf32>
    %4 = arith.truncf %3 : vector<8x64xf32> to vector<8x64xbf16>
    %c0_1 = arith.constant 0 : index
    %c0_2 = arith.constant 0 : index
    %c0_3 = arith.constant 0 : index
    %5 = vector.load %arg2[%c0_1, %c0_2, %c0_3] : memref<2x64x192xbf16, #tpu.memory_space<vmem>>, vector<1x64x192xbf16>
    %6 = vector.shape_cast %5 : vector<1x64x192xbf16> to vector<64x192xbf16>
    %cst = arith.constant dense<0.000000e+00> : vector<8x192xf32>
    %7 = tpu.matmul %4, %6, %cst {dimension_numbers = #tpu.dot_dimension_numbers<[1], [0], [0], [1], [0, 0, 1, 1], [], []>} : vector<8x64xbf16>, vector<64x192xbf16>, vector<8x192xf32> -> vector<8x192xf32>
    %c0_4 = arith.constant 0 : index
    %c0_5 = arith.constant 0 : index
    %c0_6 = arith.constant 0 : index
    %8 = vector.load %arg3[%c0_4, %c0_5, %c0_6] : memref<2x1x192xf32, #tpu.memory_space<vmem>>, vector<1x1x192xf32>
    %9 = vector.shape_cast %8 : vector<1x1x192xf32> to vector<1x192xf32>
    %10 = vector.broadcast %9 : vector<1x192xf32> to vector<8x192xf32>
    %11 = arith.addf %7, %10 : vector<8x192xf32>
    %c0_7 = arith.constant 0 : index
    %c0_8 = arith.constant 0 : index
    %c0_9 = arith.constant 0 : index
    %12 = vector.load %arg4[%c0_7, %c0_8, %c0_9] : memref<2x64x192xbf16, #tpu.memory_space<vmem>>, vector<1x64x192xbf16>
    %13 = vector.shape_cast %12 : vector<1x64x192xbf16> to vector<64x192xbf16>
    %c0_10 = arith.constant 0 : index
    %c0_11 = arith.constant 0 : index
    %c0_12 = arith.constant 0 : index
    %14 = vector.load %arg5[%c0_10, %c0_11, %c0_12] : memref<2x1x192xf32, #tpu.memory_space<vmem>>, vector<1x1x192xf32>
    %15 = vector.shape_cast %14 : vector<1x1x192xf32> to vector<1x192xf32>
    %16 = vector.shape_cast %15 : vector<1x192xf32> to vector<1x192xf32>
    %17 = vector.broadcast %16 : vector<1x192xf32> to vector<2x192xf32>
    %c0_13 = arith.constant 0 : index
    %c0_14 = arith.constant 0 : index
    %c0_15 = arith.constant 0 : index
    %18 = vector.load %arg6[%c0_13, %c0_14, %c0_15] : memref<2x128x128xbf16, #tpu.memory_space<vmem>>, vector<1x128x128xbf16>
    %19 = vector.shape_cast %18 : vector<1x128x128xbf16> to vector<128x128xbf16>
    %c0_16 = arith.constant 0 : index
    %c0_17 = arith.constant 0 : index
    %c0_18 = arith.constant 0 : index
    %20 = vector.load %arg7[%c0_16, %c0_17, %c0_18] : memref<2x128x64xbf16, #tpu.memory_space<vmem>>, vector<1x128x64xbf16>
    %21 = vector.shape_cast %20 : vector<1x128x64xbf16> to vector<128x64xbf16>
    %c0_19 = arith.constant 0 : index
    %c0_20 = arith.constant 0 : index
    %c0_21 = arith.constant 0 : index
    %22 = vector.load %arg1[%c0_19, %c0_20, %c0_21] : memref<2x2x64xf32, #tpu.memory_space<vmem>>, vector<1x2x64xf32>
    %23 = vector.shape_cast %22 : vector<1x2x64xf32> to vector<2x64xf32>
    %24 = vector.extract_strided_slice %11 {offsets = [0, 0], sizes = [2, 192], strides = [1, 1]} : vector<8x192xf32> to vector<2x192xf32>
    %25 = arith.truncf %23 : vector<2x64xf32> to vector<2x64xbf16>
    %cst_22 = arith.constant dense<0.000000e+00> : vector<2x192xf32>
    %26 = tpu.matmul %25, %13, %cst_22 {dimension_numbers = #tpu.dot_dimension_numbers<[1], [0], [0], [1], [0, 0, 1, 1], [], []>} : vector<2x64xbf16>, vector<64x192xbf16>, vector<2x192xf32> -> vector<2x192xf32>
    %27 = arith.addf %26, %17 : vector<2x192xf32>
    %28 = vector.extract_strided_slice %24 {offsets = [0, 0], sizes = [2, 128], strides = [1, 1]} : vector<2x192xf32> to vector<2x128xf32>
    %29 = vector.extract_strided_slice %27 {offsets = [0, 0], sizes = [2, 128], strides = [1, 1]} : vector<2x192xf32> to vector<2x128xf32>
    %30 = arith.addf %28, %29 : vector<2x128xf32>
    %cst_23 = arith.constant 0.000000e+00 : f32
    %31 = vector.broadcast %cst_23 : f32 to vector<2x128xf32>
    %32 = arith.subf %31, %30 : vector<2x128xf32>
    %33 = math.exp %32 : vector<2x128xf32>
    %cst_24 = arith.constant 1.000000e+00 : f32
    %34 = vector.broadcast %cst_24 : f32 to vector<2x128xf32>
    %35 = arith.addf %34, %33 : vector<2x128xf32>
    %36 = tpu.reciprocal %35 {approx = true} : vector<2x128xf32> -> vector<2x128xf32>
    %37 = vector.extract_strided_slice %36 {offsets = [0, 0], sizes = [2, 64], strides = [1, 1]} : vector<2x128xf32> to vector<2x64xf32>
    %38 = vector.extract_strided_slice %36 {offsets = [0, 64], sizes = [2, 64], strides = [1, 1]} : vector<2x128xf32> to vector<2x64xf32>
    %39 = vector.extract_strided_slice %24 {offsets = [0, 128], sizes = [2, 64], strides = [1, 1]} : vector<2x192xf32> to vector<2x64xf32>
    %40 = vector.extract_strided_slice %27 {offsets = [0, 128], sizes = [2, 64], strides = [1, 1]} : vector<2x192xf32> to vector<2x64xf32>
    %41 = arith.mulf %37, %40 : vector<2x64xf32>
    %42 = arith.addf %39, %41 : vector<2x64xf32>
    %43 = math.tanh %42 : vector<2x64xf32>
    %44 = arith.subf %23, %43 : vector<2x64xf32>
    %45 = arith.mulf %38, %44 : vector<2x64xf32>
    %46 = arith.addf %43, %45 : vector<2x64xf32>
    %47 = vector.shape_cast %46 : vector<2x64xf32> to vector<2x1x64xf32>
    %48 = vector.shape_cast %46 : vector<2x64xf32> to vector<2x64x1xf32>
    %49 = vector.broadcast %47 : vector<2x1x64xf32> to vector<2x64x64xf32>
    %50 = vector.broadcast %48 : vector<2x64x1xf32> to vector<2x64x64xf32>
    %51 = arith.cmpf olt, %49, %50 : vector<2x64x64xf32>
    %52 = vector.broadcast %47 : vector<2x1x64xf32> to vector<2x64x64xf32>
    %53 = vector.broadcast %48 : vector<2x64x1xf32> to vector<2x64x64xf32>
    %54 = arith.cmpf oeq, %52, %53 : vector<2x64x64xf32>
    %55 = arith.cmpi slt, %1, %0 : vector<64x64xi32>
    %56 = vector.shape_cast %55 : vector<64x64xi1> to vector<1x64x64xi1>
    %57 = vector.broadcast %56 : vector<1x64x64xi1> to vector<2x64x64xi1>
    %58 = arith.andi %54, %57 : vector<2x64x64xi1>
    %59 = arith.ori %51, %58 : vector<2x64x64xi1>
    %60 = arith.extui %59 : vector<2x64x64xi1> to vector<2x64x64xi32>
    %61 = arith.sitofp %60 : vector<2x64x64xi32> to vector<2x64x64xf32>
    %cst_25 = arith.constant dense<0.000000e+00> : vector<2x64xf32>
    %62 = vector.multi_reduction <add>, %61, %cst_25 [2] : vector<2x64x64xf32> to vector<2x64xf32>
    %63 = vector.shape_cast %62 : vector<2x64xf32> to vector<2x64x1xf32>
    %64 = vector.shape_cast %2 : vector<64x64xf32> to vector<1x64x64xf32>
    %65 = vector.broadcast %63 : vector<2x64x1xf32> to vector<2x64x64xf32>
    %66 = vector.broadcast %64 : vector<1x64x64xf32> to vector<2x64x64xf32>
    %67 = arith.cmpf oeq, %65, %66 : vector<2x64x64xf32>
    %68 = arith.extui %67 : vector<2x64x64xi1> to vector<2x64x64xi32>
    %69 = arith.sitofp %68 : vector<2x64x64xi32> to vector<2x64x64xf32>
    %70 = vector.shape_cast %46 : vector<2x64xf32> to vector<2x64x1xf32>
    %71 = vector.broadcast %70 : vector<2x64x1xf32> to vector<2x64x64xf32>
    %72 = arith.mulf %69, %71 : vector<2x64x64xf32>
    %cst_26 = arith.constant dense<0.000000e+00> : vector<2x64xf32>
    %73 = vector.multi_reduction <add>, %72, %cst_26 [1] : vector<2x64x64xf32> to vector<2x64xf32>
    %74 = tpu.concatenate %46, %73 in 1 : vector<2x64xf32>, vector<2x64xf32> -> vector<2x128xf32>
    %75 = arith.truncf %74 : vector<2x128xf32> to vector<2x128xbf16>
    %cst_27 = arith.constant dense<0.000000e+00> : vector<2x128xf32>
    %76 = tpu.matmul %75, %19, %cst_27 {dimension_numbers = #tpu.dot_dimension_numbers<[1], [0], [0], [1], [0, 0, 1, 1], [], []>} : vector<2x128xbf16>, vector<128x128xbf16>, vector<2x128xf32> -> vector<2x128xf32>
    %cst_28 = arith.constant 0.000000e+00 : f32
    %77 = vector.broadcast %cst_28 : f32 to vector<2x128xf32>
    %78 = arith.maximumf %76, %77 : vector<2x128xf32>
    %79 = arith.truncf %78 : vector<2x128xf32> to vector<2x128xbf16>
    %cst_29 = arith.constant dense<0.000000e+00> : vector<2x64xf32>
    %80 = tpu.matmul %79, %21, %cst_29 {dimension_numbers = #tpu.dot_dimension_numbers<[1], [0], [0], [1], [0, 0, 1, 1], [], []>} : vector<2x128xbf16>, vector<128x64xbf16>, vector<2x64xf32> -> vector<2x64xf32>
    %cst_30 = arith.constant 0.000000e+00 : f32
    %81 = vector.broadcast %cst_30 : f32 to vector<2x64xf32>
    %82 = arith.subf %81, %80 : vector<2x64xf32>
    %83 = math.exp %82 : vector<2x64xf32>
    %cst_31 = arith.constant 1.000000e+00 : f32
    %84 = vector.broadcast %cst_31 : f32 to vector<2x64xf32>
    %85 = arith.addf %84, %83 : vector<2x64xf32>
    %86 = tpu.reciprocal %85 {approx = true} : vector<2x64xf32> -> vector<2x64xf32>
    %87 = arith.mulf %46, %86 : vector<2x64xf32>
    %88 = vector.extract_strided_slice %11 {offsets = [2, 0], sizes = [2, 192], strides = [1, 1]} : vector<8x192xf32> to vector<2x192xf32>
    %89 = arith.truncf %87 : vector<2x64xf32> to vector<2x64xbf16>
    %cst_32 = arith.constant dense<0.000000e+00> : vector<2x192xf32>
    %90 = tpu.matmul %89, %13, %cst_32 {dimension_numbers = #tpu.dot_dimension_numbers<[1], [0], [0], [1], [0, 0, 1, 1], [], []>} : vector<2x64xbf16>, vector<64x192xbf16>, vector<2x192xf32> -> vector<2x192xf32>
    %91 = arith.addf %90, %17 : vector<2x192xf32>
    %92 = vector.extract_strided_slice %88 {offsets = [0, 0], sizes = [2, 128], strides = [1, 1]} : vector<2x192xf32> to vector<2x128xf32>
    %93 = vector.extract_strided_slice %91 {offsets = [0, 0], sizes = [2, 128], strides = [1, 1]} : vector<2x192xf32> to vector<2x128xf32>
    %94 = arith.addf %92, %93 : vector<2x128xf32>
    %cst_33 = arith.constant 0.000000e+00 : f32
    %95 = vector.broadcast %cst_33 : f32 to vector<2x128xf32>
    %96 = arith.subf %95, %94 : vector<2x128xf32>
    %97 = math.exp %96 : vector<2x128xf32>
    %cst_34 = arith.constant 1.000000e+00 : f32
    %98 = vector.broadcast %cst_34 : f32 to vector<2x128xf32>
    %99 = arith.addf %98, %97 : vector<2x128xf32>
    %100 = tpu.reciprocal %99 {approx = true} : vector<2x128xf32> -> vector<2x128xf32>
    %101 = vector.extract_strided_slice %100 {offsets = [0, 0], sizes = [2, 64], strides = [1, 1]} : vector<2x128xf32> to vector<2x64xf32>
    %102 = vector.extract_strided_slice %100 {offsets = [0, 64], sizes = [2, 64], strides = [1, 1]} : vector<2x128xf32> to vector<2x64xf32>
    %103 = vector.extract_strided_slice %88 {offsets = [0, 128], sizes = [2, 64], strides = [1, 1]} : vector<2x192xf32> to vector<2x64xf32>
    %104 = vector.extract_strided_slice %91 {offsets = [0, 128], sizes = [2, 64], strides = [1, 1]} : vector<2x192xf32> to vector<2x64xf32>
    %105 = arith.mulf %101, %104 : vector<2x64xf32>
    %106 = arith.addf %103, %105 : vector<2x64xf32>
    %107 = math.tanh %106 : vector<2x64xf32>
    %108 = arith.subf %87, %107 : vector<2x64xf32>
    %109 = arith.mulf %102, %108 : vector<2x64xf32>
    %110 = arith.addf %107, %109 : vector<2x64xf32>
    %111 = vector.shape_cast %110 : vector<2x64xf32> to vector<2x1x64xf32>
    %112 = vector.shape_cast %110 : vector<2x64xf32> to vector<2x64x1xf32>
    %113 = vector.broadcast %111 : vector<2x1x64xf32> to vector<2x64x64xf32>
    %114 = vector.broadcast %112 : vector<2x64x1xf32> to vector<2x64x64xf32>
    %115 = arith.cmpf olt, %113, %114 : vector<2x64x64xf32>
    %116 = vector.broadcast %111 : vector<2x1x64xf32> to vector<2x64x64xf32>
    %117 = vector.broadcast %112 : vector<2x64x1xf32> to vector<2x64x64xf32>
    %118 = arith.cmpf oeq, %116, %117 : vector<2x64x64xf32>
    %119 = arith.cmpi slt, %1, %0 : vector<64x64xi32>
    %120 = vector.shape_cast %119 : vector<64x64xi1> to vector<1x64x64xi1>
    %121 = vector.broadcast %120 : vector<1x64x64xi1> to vector<2x64x64xi1>
    %122 = arith.andi %118, %121 : vector<2x64x64xi1>
    %123 = arith.ori %115, %122 : vector<2x64x64xi1>
    %124 = arith.extui %123 : vector<2x64x64xi1> to vector<2x64x64xi32>
    %125 = arith.sitofp %124 : vector<2x64x64xi32> to vector<2x64x64xf32>
    %cst_35 = arith.constant dense<0.000000e+00> : vector<2x64xf32>
    %126 = vector.multi_reduction <add>, %125, %cst_35 [2] : vector<2x64x64xf32> to vector<2x64xf32>
    %127 = vector.shape_cast %126 : vector<2x64xf32> to vector<2x64x1xf32>
    %128 = vector.shape_cast %2 : vector<64x64xf32> to vector<1x64x64xf32>
    %129 = vector.broadcast %127 : vector<2x64x1xf32> to vector<2x64x64xf32>
    %130 = vector.broadcast %128 : vector<1x64x64xf32> to vector<2x64x64xf32>
    %131 = arith.cmpf oeq, %129, %130 : vector<2x64x64xf32>
    %132 = arith.extui %131 : vector<2x64x64xi1> to vector<2x64x64xi32>
    %133 = arith.sitofp %132 : vector<2x64x64xi32> to vector<2x64x64xf32>
    %134 = vector.shape_cast %110 : vector<2x64xf32> to vector<2x64x1xf32>
    %135 = vector.broadcast %134 : vector<2x64x1xf32> to vector<2x64x64xf32>
    %136 = arith.mulf %133, %135 : vector<2x64x64xf32>
    %cst_36 = arith.constant dense<0.000000e+00> : vector<2x64xf32>
    %137 = vector.multi_reduction <add>, %136, %cst_36 [1] : vector<2x64x64xf32> to vector<2x64xf32>
    %138 = tpu.concatenate %110, %137 in 1 : vector<2x64xf32>, vector<2x64xf32> -> vector<2x128xf32>
    %139 = arith.truncf %138 : vector<2x128xf32> to vector<2x128xbf16>
    %cst_37 = arith.constant dense<0.000000e+00> : vector<2x128xf32>
    %140 = tpu.matmul %139, %19, %cst_37 {dimension_numbers = #tpu.dot_dimension_numbers<[1], [0], [0], [1], [0, 0, 1, 1], [], []>} : vector<2x128xbf16>, vector<128x128xbf16>, vector<2x128xf32> -> vector<2x128xf32>
    %cst_38 = arith.constant 0.000000e+00 : f32
    %141 = vector.broadcast %cst_38 : f32 to vector<2x128xf32>
    %142 = arith.maximumf %140, %141 : vector<2x128xf32>
    %143 = arith.truncf %142 : vector<2x128xf32> to vector<2x128xbf16>
    %cst_39 = arith.constant dense<0.000000e+00> : vector<2x64xf32>
    %144 = tpu.matmul %143, %21, %cst_39 {dimension_numbers = #tpu.dot_dimension_numbers<[1], [0], [0], [1], [0, 0, 1, 1], [], []>} : vector<2x128xbf16>, vector<128x64xbf16>, vector<2x64xf32> -> vector<2x64xf32>
    %cst_40 = arith.constant 0.000000e+00 : f32
    %145 = vector.broadcast %cst_40 : f32 to vector<2x64xf32>
    %146 = arith.subf %145, %144 : vector<2x64xf32>
    %147 = math.exp %146 : vector<2x64xf32>
    %cst_41 = arith.constant 1.000000e+00 : f32
    %148 = vector.broadcast %cst_41 : f32 to vector<2x64xf32>
    %149 = arith.addf %148, %147 : vector<2x64xf32>
    %150 = tpu.reciprocal %149 {approx = true} : vector<2x64xf32> -> vector<2x64xf32>
    %151 = arith.mulf %110, %150 : vector<2x64xf32>
    %152 = vector.extract_strided_slice %11 {offsets = [4, 0], sizes = [2, 192], strides = [1, 1]} : vector<8x192xf32> to vector<2x192xf32>
    %153 = arith.truncf %151 : vector<2x64xf32> to vector<2x64xbf16>
    %cst_42 = arith.constant dense<0.000000e+00> : vector<2x192xf32>
    %154 = tpu.matmul %153, %13, %cst_42 {dimension_numbers = #tpu.dot_dimension_numbers<[1], [0], [0], [1], [0, 0, 1, 1], [], []>} : vector<2x64xbf16>, vector<64x192xbf16>, vector<2x192xf32> -> vector<2x192xf32>
    %155 = arith.addf %154, %17 : vector<2x192xf32>
    %156 = vector.extract_strided_slice %152 {offsets = [0, 0], sizes = [2, 128], strides = [1, 1]} : vector<2x192xf32> to vector<2x128xf32>
    %157 = vector.extract_strided_slice %155 {offsets = [0, 0], sizes = [2, 128], strides = [1, 1]} : vector<2x192xf32> to vector<2x128xf32>
    %158 = arith.addf %156, %157 : vector<2x128xf32>
    %cst_43 = arith.constant 0.000000e+00 : f32
    %159 = vector.broadcast %cst_43 : f32 to vector<2x128xf32>
    %160 = arith.subf %159, %158 : vector<2x128xf32>
    %161 = math.exp %160 : vector<2x128xf32>
    %cst_44 = arith.constant 1.000000e+00 : f32
    %162 = vector.broadcast %cst_44 : f32 to vector<2x128xf32>
    %163 = arith.addf %162, %161 : vector<2x128xf32>
    %164 = tpu.reciprocal %163 {approx = true} : vector<2x128xf32> -> vector<2x128xf32>
    %165 = vector.extract_strided_slice %164 {offsets = [0, 0], sizes = [2, 64], strides = [1, 1]} : vector<2x128xf32> to vector<2x64xf32>
    %166 = vector.extract_strided_slice %164 {offsets = [0, 64], sizes = [2, 64], strides = [1, 1]} : vector<2x128xf32> to vector<2x64xf32>
    %167 = vector.extract_strided_slice %152 {offsets = [0, 128], sizes = [2, 64], strides = [1, 1]} : vector<2x192xf32> to vector<2x64xf32>
    %168 = vector.extract_strided_slice %155 {offsets = [0, 128], sizes = [2, 64], strides = [1, 1]} : vector<2x192xf32> to vector<2x64xf32>
    %169 = arith.mulf %165, %168 : vector<2x64xf32>
    %170 = arith.addf %167, %169 : vector<2x64xf32>
    %171 = math.tanh %170 : vector<2x64xf32>
    %172 = arith.subf %151, %171 : vector<2x64xf32>
    %173 = arith.mulf %166, %172 : vector<2x64xf32>
    %174 = arith.addf %171, %173 : vector<2x64xf32>
    %175 = vector.shape_cast %174 : vector<2x64xf32> to vector<2x1x64xf32>
    %176 = vector.shape_cast %174 : vector<2x64xf32> to vector<2x64x1xf32>
    %177 = vector.broadcast %175 : vector<2x1x64xf32> to vector<2x64x64xf32>
    %178 = vector.broadcast %176 : vector<2x64x1xf32> to vector<2x64x64xf32>
    %179 = arith.cmpf olt, %177, %178 : vector<2x64x64xf32>
    %180 = vector.broadcast %175 : vector<2x1x64xf32> to vector<2x64x64xf32>
    %181 = vector.broadcast %176 : vector<2x64x1xf32> to vector<2x64x64xf32>
    %182 = arith.cmpf oeq, %180, %181 : vector<2x64x64xf32>
    %183 = arith.cmpi slt, %1, %0 : vector<64x64xi32>
    %184 = vector.shape_cast %183 : vector<64x64xi1> to vector<1x64x64xi1>
    %185 = vector.broadcast %184 : vector<1x64x64xi1> to vector<2x64x64xi1>
    %186 = arith.andi %182, %185 : vector<2x64x64xi1>
    %187 = arith.ori %179, %186 : vector<2x64x64xi1>
    %188 = arith.extui %187 : vector<2x64x64xi1> to vector<2x64x64xi32>
    %189 = arith.sitofp %188 : vector<2x64x64xi32> to vector<2x64x64xf32>
    %cst_45 = arith.constant dense<0.000000e+00> : vector<2x64xf32>
    %190 = vector.multi_reduction <add>, %189, %cst_45 [2] : vector<2x64x64xf32> to vector<2x64xf32>
    %191 = vector.shape_cast %190 : vector<2x64xf32> to vector<2x64x1xf32>
    %192 = vector.shape_cast %2 : vector<64x64xf32> to vector<1x64x64xf32>
    %193 = vector.broadcast %191 : vector<2x64x1xf32> to vector<2x64x64xf32>
    %194 = vector.broadcast %192 : vector<1x64x64xf32> to vector<2x64x64xf32>
    %195 = arith.cmpf oeq, %193, %194 : vector<2x64x64xf32>
    %196 = arith.extui %195 : vector<2x64x64xi1> to vector<2x64x64xi32>
    %197 = arith.sitofp %196 : vector<2x64x64xi32> to vector<2x64x64xf32>
    %198 = vector.shape_cast %174 : vector<2x64xf32> to vector<2x64x1xf32>
    %199 = vector.broadcast %198 : vector<2x64x1xf32> to vector<2x64x64xf32>
    %200 = arith.mulf %197, %199 : vector<2x64x64xf32>
    %cst_46 = arith.constant dense<0.000000e+00> : vector<2x64xf32>
    %201 = vector.multi_reduction <add>, %200, %cst_46 [1] : vector<2x64x64xf32> to vector<2x64xf32>
    %202 = tpu.concatenate %174, %201 in 1 : vector<2x64xf32>, vector<2x64xf32> -> vector<2x128xf32>
    %203 = arith.truncf %202 : vector<2x128xf32> to vector<2x128xbf16>
    %cst_47 = arith.constant dense<0.000000e+00> : vector<2x128xf32>
    %204 = tpu.matmul %203, %19, %cst_47 {dimension_numbers = #tpu.dot_dimension_numbers<[1], [0], [0], [1], [0, 0, 1, 1], [], []>} : vector<2x128xbf16>, vector<128x128xbf16>, vector<2x128xf32> -> vector<2x128xf32>
    %cst_48 = arith.constant 0.000000e+00 : f32
    %205 = vector.broadcast %cst_48 : f32 to vector<2x128xf32>
    %206 = arith.maximumf %204, %205 : vector<2x128xf32>
    %207 = arith.truncf %206 : vector<2x128xf32> to vector<2x128xbf16>
    %cst_49 = arith.constant dense<0.000000e+00> : vector<2x64xf32>
    %208 = tpu.matmul %207, %21, %cst_49 {dimension_numbers = #tpu.dot_dimension_numbers<[1], [0], [0], [1], [0, 0, 1, 1], [], []>} : vector<2x128xbf16>, vector<128x64xbf16>, vector<2x64xf32> -> vector<2x64xf32>
    %cst_50 = arith.constant 0.000000e+00 : f32
    %209 = vector.broadcast %cst_50 : f32 to vector<2x64xf32>
    %210 = arith.subf %209, %208 : vector<2x64xf32>
    %211 = math.exp %210 : vector<2x64xf32>
    %cst_51 = arith.constant 1.000000e+00 : f32
    %212 = vector.broadcast %cst_51 : f32 to vector<2x64xf32>
    %213 = arith.addf %212, %211 : vector<2x64xf32>
    %214 = tpu.reciprocal %213 {approx = true} : vector<2x64xf32> -> vector<2x64xf32>
    %215 = arith.mulf %174, %214 : vector<2x64xf32>
    %216 = vector.extract_strided_slice %11 {offsets = [6, 0], sizes = [2, 192], strides = [1, 1]} : vector<8x192xf32> to vector<2x192xf32>
    %217 = arith.truncf %215 : vector<2x64xf32> to vector<2x64xbf16>
    %cst_52 = arith.constant dense<0.000000e+00> : vector<2x192xf32>
    %218 = tpu.matmul %217, %13, %cst_52 {dimension_numbers = #tpu.dot_dimension_numbers<[1], [0], [0], [1], [0, 0, 1, 1], [], []>} : vector<2x64xbf16>, vector<64x192xbf16>, vector<2x192xf32> -> vector<2x192xf32>
    %219 = arith.addf %218, %17 : vector<2x192xf32>
    %220 = vector.extract_strided_slice %216 {offsets = [0, 0], sizes = [2, 128], strides = [1, 1]} : vector<2x192xf32> to vector<2x128xf32>
    %221 = vector.extract_strided_slice %219 {offsets = [0, 0], sizes = [2, 128], strides = [1, 1]} : vector<2x192xf32> to vector<2x128xf32>
    %222 = arith.addf %220, %221 : vector<2x128xf32>
    %cst_53 = arith.constant 0.000000e+00 : f32
    %223 = vector.broadcast %cst_53 : f32 to vector<2x128xf32>
    %224 = arith.subf %223, %222 : vector<2x128xf32>
    %225 = math.exp %224 : vector<2x128xf32>
    %cst_54 = arith.constant 1.000000e+00 : f32
    %226 = vector.broadcast %cst_54 : f32 to vector<2x128xf32>
    %227 = arith.addf %226, %225 : vector<2x128xf32>
    %228 = tpu.reciprocal %227 {approx = true} : vector<2x128xf32> -> vector<2x128xf32>
    %229 = vector.extract_strided_slice %228 {offsets = [0, 0], sizes = [2, 64], strides = [1, 1]} : vector<2x128xf32> to vector<2x64xf32>
    %230 = vector.extract_strided_slice %228 {offsets = [0, 64], sizes = [2, 64], strides = [1, 1]} : vector<2x128xf32> to vector<2x64xf32>
    %231 = vector.extract_strided_slice %216 {offsets = [0, 128], sizes = [2, 64], strides = [1, 1]} : vector<2x192xf32> to vector<2x64xf32>
    %232 = vector.extract_strided_slice %219 {offsets = [0, 128], sizes = [2, 64], strides = [1, 1]} : vector<2x192xf32> to vector<2x64xf32>
    %233 = arith.mulf %229, %232 : vector<2x64xf32>
    %234 = arith.addf %231, %233 : vector<2x64xf32>
    %235 = math.tanh %234 : vector<2x64xf32>
    %236 = arith.subf %215, %235 : vector<2x64xf32>
    %237 = arith.mulf %230, %236 : vector<2x64xf32>
    %238 = arith.addf %235, %237 : vector<2x64xf32>
    %239 = vector.shape_cast %238 : vector<2x64xf32> to vector<2x1x64xf32>
    %240 = vector.shape_cast %238 : vector<2x64xf32> to vector<2x64x1xf32>
    %241 = vector.broadcast %239 : vector<2x1x64xf32> to vector<2x64x64xf32>
    %242 = vector.broadcast %240 : vector<2x64x1xf32> to vector<2x64x64xf32>
    %243 = arith.cmpf olt, %241, %242 : vector<2x64x64xf32>
    %244 = vector.broadcast %239 : vector<2x1x64xf32> to vector<2x64x64xf32>
    %245 = vector.broadcast %240 : vector<2x64x1xf32> to vector<2x64x64xf32>
    %246 = arith.cmpf oeq, %244, %245 : vector<2x64x64xf32>
    %247 = arith.cmpi slt, %1, %0 : vector<64x64xi32>
    %248 = vector.shape_cast %247 : vector<64x64xi1> to vector<1x64x64xi1>
    %249 = vector.broadcast %248 : vector<1x64x64xi1> to vector<2x64x64xi1>
    %250 = arith.andi %246, %249 : vector<2x64x64xi1>
    %251 = arith.ori %243, %250 : vector<2x64x64xi1>
    %252 = arith.extui %251 : vector<2x64x64xi1> to vector<2x64x64xi32>
    %253 = arith.sitofp %252 : vector<2x64x64xi32> to vector<2x64x64xf32>
    %cst_55 = arith.constant dense<0.000000e+00> : vector<2x64xf32>
    %254 = vector.multi_reduction <add>, %253, %cst_55 [2] : vector<2x64x64xf32> to vector<2x64xf32>
    %255 = vector.shape_cast %254 : vector<2x64xf32> to vector<2x64x1xf32>
    %256 = vector.shape_cast %2 : vector<64x64xf32> to vector<1x64x64xf32>
    %257 = vector.broadcast %255 : vector<2x64x1xf32> to vector<2x64x64xf32>
    %258 = vector.broadcast %256 : vector<1x64x64xf32> to vector<2x64x64xf32>
    %259 = arith.cmpf oeq, %257, %258 : vector<2x64x64xf32>
    %260 = arith.extui %259 : vector<2x64x64xi1> to vector<2x64x64xi32>
    %261 = arith.sitofp %260 : vector<2x64x64xi32> to vector<2x64x64xf32>
    %262 = vector.shape_cast %238 : vector<2x64xf32> to vector<2x64x1xf32>
    %263 = vector.broadcast %262 : vector<2x64x1xf32> to vector<2x64x64xf32>
    %264 = arith.mulf %261, %263 : vector<2x64x64xf32>
    %cst_56 = arith.constant dense<0.000000e+00> : vector<2x64xf32>
    %265 = vector.multi_reduction <add>, %264, %cst_56 [1] : vector<2x64x64xf32> to vector<2x64xf32>
    %266 = tpu.concatenate %238, %265 in 1 : vector<2x64xf32>, vector<2x64xf32> -> vector<2x128xf32>
    %267 = arith.truncf %266 : vector<2x128xf32> to vector<2x128xbf16>
    %cst_57 = arith.constant dense<0.000000e+00> : vector<2x128xf32>
    %268 = tpu.matmul %267, %19, %cst_57 {dimension_numbers = #tpu.dot_dimension_numbers<[1], [0], [0], [1], [0, 0, 1, 1], [], []>} : vector<2x128xbf16>, vector<128x128xbf16>, vector<2x128xf32> -> vector<2x128xf32>
    %cst_58 = arith.constant 0.000000e+00 : f32
    %269 = vector.broadcast %cst_58 : f32 to vector<2x128xf32>
    %270 = arith.maximumf %268, %269 : vector<2x128xf32>
    %271 = arith.truncf %270 : vector<2x128xf32> to vector<2x128xbf16>
    %cst_59 = arith.constant dense<0.000000e+00> : vector<2x64xf32>
    %272 = tpu.matmul %271, %21, %cst_59 {dimension_numbers = #tpu.dot_dimension_numbers<[1], [0], [0], [1], [0, 0, 1, 1], [], []>} : vector<2x128xbf16>, vector<128x64xbf16>, vector<2x64xf32> -> vector<2x64xf32>
    %cst_60 = arith.constant 0.000000e+00 : f32
    %273 = vector.broadcast %cst_60 : f32 to vector<2x64xf32>
    %274 = arith.subf %273, %272 : vector<2x64xf32>
    %275 = math.exp %274 : vector<2x64xf32>
    %cst_61 = arith.constant 1.000000e+00 : f32
    %276 = vector.broadcast %cst_61 : f32 to vector<2x64xf32>
    %277 = arith.addf %276, %275 : vector<2x64xf32>
    %278 = tpu.reciprocal %277 {approx = true} : vector<2x64xf32> -> vector<2x64xf32>
    %279 = arith.mulf %238, %278 : vector<2x64xf32>
    %c0_62 = arith.constant 0 : index
    %c0_63 = arith.constant 0 : index
    %c0_64 = arith.constant 0 : index
    %280 = vector.load %arg12[%c0_62, %c0_63, %c0_64] : memref<2x2x64xf32, #tpu.memory_space<vmem>>, vector<1x2x64xf32>
    %281 = vector.shape_cast %280 : vector<1x2x64xf32> to vector<2x64xf32>
    %282 = vector.shape_cast %279 : vector<2x64xf32> to vector<1x2x64xf32>
    tpu.vector_store %arg12[%c0_62, %c0_63, %c0_64], %282 {strides = array<i32>} : memref<2x2x64xf32, #tpu.memory_space<vmem>>, vector<1x2x64xf32>,
    %283 = tpu.concatenate %87, %151, %215, %279 in 0 : vector<2x64xf32>, vector<2x64xf32>, vector<2x64xf32>, vector<2x64xf32> -> vector<8x64xf32>
    %284 = arith.truncf %283 : vector<8x64xf32> to vector<8x64xbf16>
    %c1 = arith.constant 1 : index
    %c0_65 = arith.constant 0 : index
    %c0_66 = arith.constant 0 : index
    %285 = vector.load %arg2[%c1, %c0_65, %c0_66] : memref<2x64x192xbf16, #tpu.memory_space<vmem>>, vector<1x64x192xbf16>
    %286 = vector.shape_cast %285 : vector<1x64x192xbf16> to vector<64x192xbf16>
    %cst_67 = arith.constant dense<0.000000e+00> : vector<8x192xf32>
    %287 = tpu.matmul %284, %286, %cst_67 {dimension_numbers = #tpu.dot_dimension_numbers<[1], [0], [0], [1], [0, 0, 1, 1], [], []>} : vector<8x64xbf16>, vector<64x192xbf16>, vector<8x192xf32> -> vector<8x192xf32>
    %c1_68 = arith.constant 1 : index
    %c0_69 = arith.constant 0 : index
    %c0_70 = arith.constant 0 : index
    %288 = vector.load %arg3[%c1_68, %c0_69, %c0_70] : memref<2x1x192xf32, #tpu.memory_space<vmem>>, vector<1x1x192xf32>
    %289 = vector.shape_cast %288 : vector<1x1x192xf32> to vector<1x192xf32>
    %290 = vector.broadcast %289 : vector<1x192xf32> to vector<8x192xf32>
    %291 = arith.addf %287, %290 : vector<8x192xf32>
    %c1_71 = arith.constant 1 : index
    %c0_72 = arith.constant 0 : index
    %c0_73 = arith.constant 0 : index
    %292 = vector.load %arg4[%c1_71, %c0_72, %c0_73] : memref<2x64x192xbf16, #tpu.memory_space<vmem>>, vector<1x64x192xbf16>
    %293 = vector.shape_cast %292 : vector<1x64x192xbf16> to vector<64x192xbf16>
    %c1_74 = arith.constant 1 : index
    %c0_75 = arith.constant 0 : index
    %c0_76 = arith.constant 0 : index
    %294 = vector.load %arg5[%c1_74, %c0_75, %c0_76] : memref<2x1x192xf32, #tpu.memory_space<vmem>>, vector<1x1x192xf32>
    %295 = vector.shape_cast %294 : vector<1x1x192xf32> to vector<1x192xf32>
    %296 = vector.shape_cast %295 : vector<1x192xf32> to vector<1x192xf32>
    %297 = vector.broadcast %296 : vector<1x192xf32> to vector<2x192xf32>
    %c1_77 = arith.constant 1 : index
    %c0_78 = arith.constant 0 : index
    %c0_79 = arith.constant 0 : index
    %298 = vector.load %arg6[%c1_77, %c0_78, %c0_79] : memref<2x128x128xbf16, #tpu.memory_space<vmem>>, vector<1x128x128xbf16>
    %299 = vector.shape_cast %298 : vector<1x128x128xbf16> to vector<128x128xbf16>
    %c1_80 = arith.constant 1 : index
    %c0_81 = arith.constant 0 : index
    %c0_82 = arith.constant 0 : index
    %300 = vector.load %arg7[%c1_80, %c0_81, %c0_82] : memref<2x128x64xbf16, #tpu.memory_space<vmem>>, vector<1x128x64xbf16>
    %301 = vector.shape_cast %300 : vector<1x128x64xbf16> to vector<128x64xbf16>
    %c1_83 = arith.constant 1 : index
    %c0_84 = arith.constant 0 : index
    %c0_85 = arith.constant 0 : index
    %302 = vector.load %arg1[%c1_83, %c0_84, %c0_85] : memref<2x2x64xf32, #tpu.memory_space<vmem>>, vector<1x2x64xf32>
    %303 = vector.shape_cast %302 : vector<1x2x64xf32> to vector<2x64xf32>
    %304 = vector.extract_strided_slice %291 {offsets = [0, 0], sizes = [2, 192], strides = [1, 1]} : vector<8x192xf32> to vector<2x192xf32>
    %305 = arith.truncf %303 : vector<2x64xf32> to vector<2x64xbf16>
    %cst_86 = arith.constant dense<0.000000e+00> : vector<2x192xf32>
    %306 = tpu.matmul %305, %293, %cst_86 {dimension_numbers = #tpu.dot_dimension_numbers<[1], [0], [0], [1], [0, 0, 1, 1], [], []>} : vector<2x64xbf16>, vector<64x192xbf16>, vector<2x192xf32> -> vector<2x192xf32>
    %307 = arith.addf %306, %297 : vector<2x192xf32>
    %308 = vector.extract_strided_slice %304 {offsets = [0, 0], sizes = [2, 128], strides = [1, 1]} : vector<2x192xf32> to vector<2x128xf32>
    %309 = vector.extract_strided_slice %307 {offsets = [0, 0], sizes = [2, 128], strides = [1, 1]} : vector<2x192xf32> to vector<2x128xf32>
    %310 = arith.addf %308, %309 : vector<2x128xf32>
    %cst_87 = arith.constant 0.000000e+00 : f32
    %311 = vector.broadcast %cst_87 : f32 to vector<2x128xf32>
    %312 = arith.subf %311, %310 : vector<2x128xf32>
    %313 = math.exp %312 : vector<2x128xf32>
    %cst_88 = arith.constant 1.000000e+00 : f32
    %314 = vector.broadcast %cst_88 : f32 to vector<2x128xf32>
    %315 = arith.addf %314, %313 : vector<2x128xf32>
    %316 = tpu.reciprocal %315 {approx = true} : vector<2x128xf32> -> vector<2x128xf32>
    %317 = vector.extract_strided_slice %316 {offsets = [0, 0], sizes = [2, 64], strides = [1, 1]} : vector<2x128xf32> to vector<2x64xf32>
    %318 = vector.extract_strided_slice %316 {offsets = [0, 64], sizes = [2, 64], strides = [1, 1]} : vector<2x128xf32> to vector<2x64xf32>
    %319 = vector.extract_strided_slice %304 {offsets = [0, 128], sizes = [2, 64], strides = [1, 1]} : vector<2x192xf32> to vector<2x64xf32>
    %320 = vector.extract_strided_slice %307 {offsets = [0, 128], sizes = [2, 64], strides = [1, 1]} : vector<2x192xf32> to vector<2x64xf32>
    %321 = arith.mulf %317, %320 : vector<2x64xf32>
    %322 = arith.addf %319, %321 : vector<2x64xf32>
    %323 = math.tanh %322 : vector<2x64xf32>
    %324 = arith.subf %303, %323 : vector<2x64xf32>
    %325 = arith.mulf %318, %324 : vector<2x64xf32>
    %326 = arith.addf %323, %325 : vector<2x64xf32>
    %327 = vector.shape_cast %326 : vector<2x64xf32> to vector<2x1x64xf32>
    %328 = vector.shape_cast %326 : vector<2x64xf32> to vector<2x64x1xf32>
    %329 = vector.broadcast %327 : vector<2x1x64xf32> to vector<2x64x64xf32>
    %330 = vector.broadcast %328 : vector<2x64x1xf32> to vector<2x64x64xf32>
    %331 = arith.cmpf olt, %329, %330 : vector<2x64x64xf32>
    %332 = vector.broadcast %327 : vector<2x1x64xf32> to vector<2x64x64xf32>
    %333 = vector.broadcast %328 : vector<2x64x1xf32> to vector<2x64x64xf32>
    %334 = arith.cmpf oeq, %332, %333 : vector<2x64x64xf32>
    %335 = arith.cmpi slt, %1, %0 : vector<64x64xi32>
    %336 = vector.shape_cast %335 : vector<64x64xi1> to vector<1x64x64xi1>
    %337 = vector.broadcast %336 : vector<1x64x64xi1> to vector<2x64x64xi1>
    %338 = arith.andi %334, %337 : vector<2x64x64xi1>
    %339 = arith.ori %331, %338 : vector<2x64x64xi1>
    %340 = arith.extui %339 : vector<2x64x64xi1> to vector<2x64x64xi32>
    %341 = arith.sitofp %340 : vector<2x64x64xi32> to vector<2x64x64xf32>
    %cst_89 = arith.constant dense<0.000000e+00> : vector<2x64xf32>
    %342 = vector.multi_reduction <add>, %341, %cst_89 [2] : vector<2x64x64xf32> to vector<2x64xf32>
    %343 = vector.shape_cast %342 : vector<2x64xf32> to vector<2x64x1xf32>
    %344 = vector.shape_cast %2 : vector<64x64xf32> to vector<1x64x64xf32>
    %345 = vector.broadcast %343 : vector<2x64x1xf32> to vector<2x64x64xf32>
    %346 = vector.broadcast %344 : vector<1x64x64xf32> to vector<2x64x64xf32>
    %347 = arith.cmpf oeq, %345, %346 : vector<2x64x64xf32>
    %348 = arith.extui %347 : vector<2x64x64xi1> to vector<2x64x64xi32>
    %349 = arith.sitofp %348 : vector<2x64x64xi32> to vector<2x64x64xf32>
    %350 = vector.shape_cast %326 : vector<2x64xf32> to vector<2x64x1xf32>
    %351 = vector.broadcast %350 : vector<2x64x1xf32> to vector<2x64x64xf32>
    %352 = arith.mulf %349, %351 : vector<2x64x64xf32>
    %cst_90 = arith.constant dense<0.000000e+00> : vector<2x64xf32>
    %353 = vector.multi_reduction <add>, %352, %cst_90 [1] : vector<2x64x64xf32> to vector<2x64xf32>
    %354 = tpu.concatenate %326, %353 in 1 : vector<2x64xf32>, vector<2x64xf32> -> vector<2x128xf32>
    %355 = arith.truncf %354 : vector<2x128xf32> to vector<2x128xbf16>
    %cst_91 = arith.constant dense<0.000000e+00> : vector<2x128xf32>
    %356 = tpu.matmul %355, %299, %cst_91 {dimension_numbers = #tpu.dot_dimension_numbers<[1], [0], [0], [1], [0, 0, 1, 1], [], []>} : vector<2x128xbf16>, vector<128x128xbf16>, vector<2x128xf32> -> vector<2x128xf32>
    %cst_92 = arith.constant 0.000000e+00 : f32
    %357 = vector.broadcast %cst_92 : f32 to vector<2x128xf32>
    %358 = arith.maximumf %356, %357 : vector<2x128xf32>
    %359 = arith.truncf %358 : vector<2x128xf32> to vector<2x128xbf16>
    %cst_93 = arith.constant dense<0.000000e+00> : vector<2x64xf32>
    %360 = tpu.matmul %359, %301, %cst_93 {dimension_numbers = #tpu.dot_dimension_numbers<[1], [0], [0], [1], [0, 0, 1, 1], [], []>} : vector<2x128xbf16>, vector<128x64xbf16>, vector<2x64xf32> -> vector<2x64xf32>
    %cst_94 = arith.constant 0.000000e+00 : f32
    %361 = vector.broadcast %cst_94 : f32 to vector<2x64xf32>
    %362 = arith.subf %361, %360 : vector<2x64xf32>
    %363 = math.exp %362 : vector<2x64xf32>
    %cst_95 = arith.constant 1.000000e+00 : f32
    %364 = vector.broadcast %cst_95 : f32 to vector<2x64xf32>
    %365 = arith.addf %364, %363 : vector<2x64xf32>
    %366 = tpu.reciprocal %365 {approx = true} : vector<2x64xf32> -> vector<2x64xf32>
    %367 = arith.mulf %326, %366 : vector<2x64xf32>
    %368 = vector.extract_strided_slice %291 {offsets = [2, 0], sizes = [2, 192], strides = [1, 1]} : vector<8x192xf32> to vector<2x192xf32>
    %369 = arith.truncf %367 : vector<2x64xf32> to vector<2x64xbf16>
    %cst_96 = arith.constant dense<0.000000e+00> : vector<2x192xf32>
    %370 = tpu.matmul %369, %293, %cst_96 {dimension_numbers = #tpu.dot_dimension_numbers<[1], [0], [0], [1], [0, 0, 1, 1], [], []>} : vector<2x64xbf16>, vector<64x192xbf16>, vector<2x192xf32> -> vector<2x192xf32>
    %371 = arith.addf %370, %297 : vector<2x192xf32>
    %372 = vector.extract_strided_slice %368 {offsets = [0, 0], sizes = [2, 128], strides = [1, 1]} : vector<2x192xf32> to vector<2x128xf32>
    %373 = vector.extract_strided_slice %371 {offsets = [0, 0], sizes = [2, 128], strides = [1, 1]} : vector<2x192xf32> to vector<2x128xf32>
    %374 = arith.addf %372, %373 : vector<2x128xf32>
    %cst_97 = arith.constant 0.000000e+00 : f32
    %375 = vector.broadcast %cst_97 : f32 to vector<2x128xf32>
    %376 = arith.subf %375, %374 : vector<2x128xf32>
    %377 = math.exp %376 : vector<2x128xf32>
    %cst_98 = arith.constant 1.000000e+00 : f32
    %378 = vector.broadcast %cst_98 : f32 to vector<2x128xf32>
    %379 = arith.addf %378, %377 : vector<2x128xf32>
    %380 = tpu.reciprocal %379 {approx = true} : vector<2x128xf32> -> vector<2x128xf32>
    %381 = vector.extract_strided_slice %380 {offsets = [0, 0], sizes = [2, 64], strides = [1, 1]} : vector<2x128xf32> to vector<2x64xf32>
    %382 = vector.extract_strided_slice %380 {offsets = [0, 64], sizes = [2, 64], strides = [1, 1]} : vector<2x128xf32> to vector<2x64xf32>
    %383 = vector.extract_strided_slice %368 {offsets = [0, 128], sizes = [2, 64], strides = [1, 1]} : vector<2x192xf32> to vector<2x64xf32>
    %384 = vector.extract_strided_slice %371 {offsets = [0, 128], sizes = [2, 64], strides = [1, 1]} : vector<2x192xf32> to vector<2x64xf32>
    %385 = arith.mulf %381, %384 : vector<2x64xf32>
    %386 = arith.addf %383, %385 : vector<2x64xf32>
    %387 = math.tanh %386 : vector<2x64xf32>
    %388 = arith.subf %367, %387 : vector<2x64xf32>
    %389 = arith.mulf %382, %388 : vector<2x64xf32>
    %390 = arith.addf %387, %389 : vector<2x64xf32>
    %391 = vector.shape_cast %390 : vector<2x64xf32> to vector<2x1x64xf32>
    %392 = vector.shape_cast %390 : vector<2x64xf32> to vector<2x64x1xf32>
    %393 = vector.broadcast %391 : vector<2x1x64xf32> to vector<2x64x64xf32>
    %394 = vector.broadcast %392 : vector<2x64x1xf32> to vector<2x64x64xf32>
    %395 = arith.cmpf olt, %393, %394 : vector<2x64x64xf32>
    %396 = vector.broadcast %391 : vector<2x1x64xf32> to vector<2x64x64xf32>
    %397 = vector.broadcast %392 : vector<2x64x1xf32> to vector<2x64x64xf32>
    %398 = arith.cmpf oeq, %396, %397 : vector<2x64x64xf32>
    %399 = arith.cmpi slt, %1, %0 : vector<64x64xi32>
    %400 = vector.shape_cast %399 : vector<64x64xi1> to vector<1x64x64xi1>
    %401 = vector.broadcast %400 : vector<1x64x64xi1> to vector<2x64x64xi1>
    %402 = arith.andi %398, %401 : vector<2x64x64xi1>
    %403 = arith.ori %395, %402 : vector<2x64x64xi1>
    %404 = arith.extui %403 : vector<2x64x64xi1> to vector<2x64x64xi32>
    %405 = arith.sitofp %404 : vector<2x64x64xi32> to vector<2x64x64xf32>
    %cst_99 = arith.constant dense<0.000000e+00> : vector<2x64xf32>
    %406 = vector.multi_reduction <add>, %405, %cst_99 [2] : vector<2x64x64xf32> to vector<2x64xf32>
    %407 = vector.shape_cast %406 : vector<2x64xf32> to vector<2x64x1xf32>
    %408 = vector.shape_cast %2 : vector<64x64xf32> to vector<1x64x64xf32>
    %409 = vector.broadcast %407 : vector<2x64x1xf32> to vector<2x64x64xf32>
    %410 = vector.broadcast %408 : vector<1x64x64xf32> to vector<2x64x64xf32>
    %411 = arith.cmpf oeq, %409, %410 : vector<2x64x64xf32>
    %412 = arith.extui %411 : vector<2x64x64xi1> to vector<2x64x64xi32>
    %413 = arith.sitofp %412 : vector<2x64x64xi32> to vector<2x64x64xf32>
    %414 = vector.shape_cast %390 : vector<2x64xf32> to vector<2x64x1xf32>
    %415 = vector.broadcast %414 : vector<2x64x1xf32> to vector<2x64x64xf32>
    %416 = arith.mulf %413, %415 : vector<2x64x64xf32>
    %cst_100 = arith.constant dense<0.000000e+00> : vector<2x64xf32>
    %417 = vector.multi_reduction <add>, %416, %cst_100 [1] : vector<2x64x64xf32> to vector<2x64xf32>
    %418 = tpu.concatenate %390, %417 in 1 : vector<2x64xf32>, vector<2x64xf32> -> vector<2x128xf32>
    %419 = arith.truncf %418 : vector<2x128xf32> to vector<2x128xbf16>
    %cst_101 = arith.constant dense<0.000000e+00> : vector<2x128xf32>
    %420 = tpu.matmul %419, %299, %cst_101 {dimension_numbers = #tpu.dot_dimension_numbers<[1], [0], [0], [1], [0, 0, 1, 1], [], []>} : vector<2x128xbf16>, vector<128x128xbf16>, vector<2x128xf32> -> vector<2x128xf32>
    %cst_102 = arith.constant 0.000000e+00 : f32
    %421 = vector.broadcast %cst_102 : f32 to vector<2x128xf32>
    %422 = arith.maximumf %420, %421 : vector<2x128xf32>
    %423 = arith.truncf %422 : vector<2x128xf32> to vector<2x128xbf16>
    %cst_103 = arith.constant dense<0.000000e+00> : vector<2x64xf32>
    %424 = tpu.matmul %423, %301, %cst_103 {dimension_numbers = #tpu.dot_dimension_numbers<[1], [0], [0], [1], [0, 0, 1, 1], [], []>} : vector<2x128xbf16>, vector<128x64xbf16>, vector<2x64xf32> -> vector<2x64xf32>
    %cst_104 = arith.constant 0.000000e+00 : f32
    %425 = vector.broadcast %cst_104 : f32 to vector<2x64xf32>
    %426 = arith.subf %425, %424 : vector<2x64xf32>
    %427 = math.exp %426 : vector<2x64xf32>
    %cst_105 = arith.constant 1.000000e+00 : f32
    %428 = vector.broadcast %cst_105 : f32 to vector<2x64xf32>
    %429 = arith.addf %428, %427 : vector<2x64xf32>
    %430 = tpu.reciprocal %429 {approx = true} : vector<2x64xf32> -> vector<2x64xf32>
    %431 = arith.mulf %390, %430 : vector<2x64xf32>
    %432 = vector.extract_strided_slice %291 {offsets = [4, 0], sizes = [2, 192], strides = [1, 1]} : vector<8x192xf32> to vector<2x192xf32>
    %433 = arith.truncf %431 : vector<2x64xf32> to vector<2x64xbf16>
    %cst_106 = arith.constant dense<0.000000e+00> : vector<2x192xf32>
    %434 = tpu.matmul %433, %293, %cst_106 {dimension_numbers = #tpu.dot_dimension_numbers<[1], [0], [0], [1], [0, 0, 1, 1], [], []>} : vector<2x64xbf16>, vector<64x192xbf16>, vector<2x192xf32> -> vector<2x192xf32>
    %435 = arith.addf %434, %297 : vector<2x192xf32>
    %436 = vector.extract_strided_slice %432 {offsets = [0, 0], sizes = [2, 128], strides = [1, 1]} : vector<2x192xf32> to vector<2x128xf32>
    %437 = vector.extract_strided_slice %435 {offsets = [0, 0], sizes = [2, 128], strides = [1, 1]} : vector<2x192xf32> to vector<2x128xf32>
    %438 = arith.addf %436, %437 : vector<2x128xf32>
    %cst_107 = arith.constant 0.000000e+00 : f32
    %439 = vector.broadcast %cst_107 : f32 to vector<2x128xf32>
    %440 = arith.subf %439, %438 : vector<2x128xf32>
    %441 = math.exp %440 : vector<2x128xf32>
    %cst_108 = arith.constant 1.000000e+00 : f32
    %442 = vector.broadcast %cst_108 : f32 to vector<2x128xf32>
    %443 = arith.addf %442, %441 : vector<2x128xf32>
    %444 = tpu.reciprocal %443 {approx = true} : vector<2x128xf32> -> vector<2x128xf32>
    %445 = vector.extract_strided_slice %444 {offsets = [0, 0], sizes = [2, 64], strides = [1, 1]} : vector<2x128xf32> to vector<2x64xf32>
    %446 = vector.extract_strided_slice %444 {offsets = [0, 64], sizes = [2, 64], strides = [1, 1]} : vector<2x128xf32> to vector<2x64xf32>
    %447 = vector.extract_strided_slice %432 {offsets = [0, 128], sizes = [2, 64], strides = [1, 1]} : vector<2x192xf32> to vector<2x64xf32>
    %448 = vector.extract_strided_slice %435 {offsets = [0, 128], sizes = [2, 64], strides = [1, 1]} : vector<2x192xf32> to vector<2x64xf32>
    %449 = arith.mulf %445, %448 : vector<2x64xf32>
    %450 = arith.addf %447, %449 : vector<2x64xf32>
    %451 = math.tanh %450 : vector<2x64xf32>
    %452 = arith.subf %431, %451 : vector<2x64xf32>
    %453 = arith.mulf %446, %452 : vector<2x64xf32>
    %454 = arith.addf %451, %453 : vector<2x64xf32>
    %455 = vector.shape_cast %454 : vector<2x64xf32> to vector<2x1x64xf32>
    %456 = vector.shape_cast %454 : vector<2x64xf32> to vector<2x64x1xf32>
    %457 = vector.broadcast %455 : vector<2x1x64xf32> to vector<2x64x64xf32>
    %458 = vector.broadcast %456 : vector<2x64x1xf32> to vector<2x64x64xf32>
    %459 = arith.cmpf olt, %457, %458 : vector<2x64x64xf32>
    %460 = vector.broadcast %455 : vector<2x1x64xf32> to vector<2x64x64xf32>
    %461 = vector.broadcast %456 : vector<2x64x1xf32> to vector<2x64x64xf32>
    %462 = arith.cmpf oeq, %460, %461 : vector<2x64x64xf32>
    %463 = arith.cmpi slt, %1, %0 : vector<64x64xi32>
    %464 = vector.shape_cast %463 : vector<64x64xi1> to vector<1x64x64xi1>
    %465 = vector.broadcast %464 : vector<1x64x64xi1> to vector<2x64x64xi1>
    %466 = arith.andi %462, %465 : vector<2x64x64xi1>
    %467 = arith.ori %459, %466 : vector<2x64x64xi1>
    %468 = arith.extui %467 : vector<2x64x64xi1> to vector<2x64x64xi32>
    %469 = arith.sitofp %468 : vector<2x64x64xi32> to vector<2x64x64xf32>
    %cst_109 = arith.constant dense<0.000000e+00> : vector<2x64xf32>
    %470 = vector.multi_reduction <add>, %469, %cst_109 [2] : vector<2x64x64xf32> to vector<2x64xf32>
    %471 = vector.shape_cast %470 : vector<2x64xf32> to vector<2x64x1xf32>
    %472 = vector.shape_cast %2 : vector<64x64xf32> to vector<1x64x64xf32>
    %473 = vector.broadcast %471 : vector<2x64x1xf32> to vector<2x64x64xf32>
    %474 = vector.broadcast %472 : vector<1x64x64xf32> to vector<2x64x64xf32>
    %475 = arith.cmpf oeq, %473, %474 : vector<2x64x64xf32>
    %476 = arith.extui %475 : vector<2x64x64xi1> to vector<2x64x64xi32>
    %477 = arith.sitofp %476 : vector<2x64x64xi32> to vector<2x64x64xf32>
    %478 = vector.shape_cast %454 : vector<2x64xf32> to vector<2x64x1xf32>
    %479 = vector.broadcast %478 : vector<2x64x1xf32> to vector<2x64x64xf32>
    %480 = arith.mulf %477, %479 : vector<2x64x64xf32>
    %cst_110 = arith.constant dense<0.000000e+00> : vector<2x64xf32>
    %481 = vector.multi_reduction <add>, %480, %cst_110 [1] : vector<2x64x64xf32> to vector<2x64xf32>
    %482 = tpu.concatenate %454, %481 in 1 : vector<2x64xf32>, vector<2x64xf32> -> vector<2x128xf32>
    %483 = arith.truncf %482 : vector<2x128xf32> to vector<2x128xbf16>
    %cst_111 = arith.constant dense<0.000000e+00> : vector<2x128xf32>
    %484 = tpu.matmul %483, %299, %cst_111 {dimension_numbers = #tpu.dot_dimension_numbers<[1], [0], [0], [1], [0, 0, 1, 1], [], []>} : vector<2x128xbf16>, vector<128x128xbf16>, vector<2x128xf32> -> vector<2x128xf32>
    %cst_112 = arith.constant 0.000000e+00 : f32
    %485 = vector.broadcast %cst_112 : f32 to vector<2x128xf32>
    %486 = arith.maximumf %484, %485 : vector<2x128xf32>
    %487 = arith.truncf %486 : vector<2x128xf32> to vector<2x128xbf16>
    %cst_113 = arith.constant dense<0.000000e+00> : vector<2x64xf32>
    %488 = tpu.matmul %487, %301, %cst_113 {dimension_numbers = #tpu.dot_dimension_numbers<[1], [0], [0], [1], [0, 0, 1, 1], [], []>} : vector<2x128xbf16>, vector<128x64xbf16>, vector<2x64xf32> -> vector<2x64xf32>
    %cst_114 = arith.constant 0.000000e+00 : f32
    %489 = vector.broadcast %cst_114 : f32 to vector<2x64xf32>
    %490 = arith.subf %489, %488 : vector<2x64xf32>
    %491 = math.exp %490 : vector<2x64xf32>
    %cst_115 = arith.constant 1.000000e+00 : f32
    %492 = vector.broadcast %cst_115 : f32 to vector<2x64xf32>
    %493 = arith.addf %492, %491 : vector<2x64xf32>
    %494 = tpu.reciprocal %493 {approx = true} : vector<2x64xf32> -> vector<2x64xf32>
    %495 = arith.mulf %454, %494 : vector<2x64xf32>
    %496 = vector.extract_strided_slice %291 {offsets = [6, 0], sizes = [2, 192], strides = [1, 1]} : vector<8x192xf32> to vector<2x192xf32>
    %497 = arith.truncf %495 : vector<2x64xf32> to vector<2x64xbf16>
    %cst_116 = arith.constant dense<0.000000e+00> : vector<2x192xf32>
    %498 = tpu.matmul %497, %293, %cst_116 {dimension_numbers = #tpu.dot_dimension_numbers<[1], [0], [0], [1], [0, 0, 1, 1], [], []>} : vector<2x64xbf16>, vector<64x192xbf16>, vector<2x192xf32> -> vector<2x192xf32>
    %499 = arith.addf %498, %297 : vector<2x192xf32>
    %500 = vector.extract_strided_slice %496 {offsets = [0, 0], sizes = [2, 128], strides = [1, 1]} : vector<2x192xf32> to vector<2x128xf32>
    %501 = vector.extract_strided_slice %499 {offsets = [0, 0], sizes = [2, 128], strides = [1, 1]} : vector<2x192xf32> to vector<2x128xf32>
    %502 = arith.addf %500, %501 : vector<2x128xf32>
    %cst_117 = arith.constant 0.000000e+00 : f32
    %503 = vector.broadcast %cst_117 : f32 to vector<2x128xf32>
    %504 = arith.subf %503, %502 : vector<2x128xf32>
    %505 = math.exp %504 : vector<2x128xf32>
    %cst_118 = arith.constant 1.000000e+00 : f32
    %506 = vector.broadcast %cst_118 : f32 to vector<2x128xf32>
    %507 = arith.addf %506, %505 : vector<2x128xf32>
    %508 = tpu.reciprocal %507 {approx = true} : vector<2x128xf32> -> vector<2x128xf32>
    %509 = vector.extract_strided_slice %508 {offsets = [0, 0], sizes = [2, 64], strides = [1, 1]} : vector<2x128xf32> to vector<2x64xf32>
    %510 = vector.extract_strided_slice %508 {offsets = [0, 64], sizes = [2, 64], strides = [1, 1]} : vector<2x128xf32> to vector<2x64xf32>
    %511 = vector.extract_strided_slice %496 {offsets = [0, 128], sizes = [2, 64], strides = [1, 1]} : vector<2x192xf32> to vector<2x64xf32>
    %512 = vector.extract_strided_slice %499 {offsets = [0, 128], sizes = [2, 64], strides = [1, 1]} : vector<2x192xf32> to vector<2x64xf32>
    %513 = arith.mulf %509, %512 : vector<2x64xf32>
    %514 = arith.addf %511, %513 : vector<2x64xf32>
    %515 = math.tanh %514 : vector<2x64xf32>
    %516 = arith.subf %495, %515 : vector<2x64xf32>
    %517 = arith.mulf %510, %516 : vector<2x64xf32>
    %518 = arith.addf %515, %517 : vector<2x64xf32>
    %519 = vector.shape_cast %518 : vector<2x64xf32> to vector<2x1x64xf32>
    %520 = vector.shape_cast %518 : vector<2x64xf32> to vector<2x64x1xf32>
    %521 = vector.broadcast %519 : vector<2x1x64xf32> to vector<2x64x64xf32>
    %522 = vector.broadcast %520 : vector<2x64x1xf32> to vector<2x64x64xf32>
    %523 = arith.cmpf olt, %521, %522 : vector<2x64x64xf32>
    %524 = vector.broadcast %519 : vector<2x1x64xf32> to vector<2x64x64xf32>
    %525 = vector.broadcast %520 : vector<2x64x1xf32> to vector<2x64x64xf32>
    %526 = arith.cmpf oeq, %524, %525 : vector<2x64x64xf32>
    %527 = arith.cmpi slt, %1, %0 : vector<64x64xi32>
    %528 = vector.shape_cast %527 : vector<64x64xi1> to vector<1x64x64xi1>
    %529 = vector.broadcast %528 : vector<1x64x64xi1> to vector<2x64x64xi1>
    %530 = arith.andi %526, %529 : vector<2x64x64xi1>
    %531 = arith.ori %523, %530 : vector<2x64x64xi1>
    %532 = arith.extui %531 : vector<2x64x64xi1> to vector<2x64x64xi32>
    %533 = arith.sitofp %532 : vector<2x64x64xi32> to vector<2x64x64xf32>
    %cst_119 = arith.constant dense<0.000000e+00> : vector<2x64xf32>
    %534 = vector.multi_reduction <add>, %533, %cst_119 [2] : vector<2x64x64xf32> to vector<2x64xf32>
    %535 = vector.shape_cast %534 : vector<2x64xf32> to vector<2x64x1xf32>
    %536 = vector.shape_cast %2 : vector<64x64xf32> to vector<1x64x64xf32>
    %537 = vector.broadcast %535 : vector<2x64x1xf32> to vector<2x64x64xf32>
    %538 = vector.broadcast %536 : vector<1x64x64xf32> to vector<2x64x64xf32>
    %539 = arith.cmpf oeq, %537, %538 : vector<2x64x64xf32>
    %540 = arith.extui %539 : vector<2x64x64xi1> to vector<2x64x64xi32>
    %541 = arith.sitofp %540 : vector<2x64x64xi32> to vector<2x64x64xf32>
    %542 = vector.shape_cast %518 : vector<2x64xf32> to vector<2x64x1xf32>
    %543 = vector.broadcast %542 : vector<2x64x1xf32> to vector<2x64x64xf32>
    %544 = arith.mulf %541, %543 : vector<2x64x64xf32>
    %cst_120 = arith.constant dense<0.000000e+00> : vector<2x64xf32>
    %545 = vector.multi_reduction <add>, %544, %cst_120 [1] : vector<2x64x64xf32> to vector<2x64xf32>
    %546 = tpu.concatenate %518, %545 in 1 : vector<2x64xf32>, vector<2x64xf32> -> vector<2x128xf32>
    %547 = arith.truncf %546 : vector<2x128xf32> to vector<2x128xbf16>
    %cst_121 = arith.constant dense<0.000000e+00> : vector<2x128xf32>
    %548 = tpu.matmul %547, %299, %cst_121 {dimension_numbers = #tpu.dot_dimension_numbers<[1], [0], [0], [1], [0, 0, 1, 1], [], []>} : vector<2x128xbf16>, vector<128x128xbf16>, vector<2x128xf32> -> vector<2x128xf32>
    %cst_122 = arith.constant 0.000000e+00 : f32
    %549 = vector.broadcast %cst_122 : f32 to vector<2x128xf32>
    %550 = arith.maximumf %548, %549 : vector<2x128xf32>
    %551 = arith.truncf %550 : vector<2x128xf32> to vector<2x128xbf16>
    %cst_123 = arith.constant dense<0.000000e+00> : vector<2x64xf32>
    %552 = tpu.matmul %551, %301, %cst_123 {dimension_numbers = #tpu.dot_dimension_numbers<[1], [0], [0], [1], [0, 0, 1, 1], [], []>} : vector<2x128xbf16>, vector<128x64xbf16>, vector<2x64xf32> -> vector<2x64xf32>
    %cst_124 = arith.constant 0.000000e+00 : f32
    %553 = vector.broadcast %cst_124 : f32 to vector<2x64xf32>
    %554 = arith.subf %553, %552 : vector<2x64xf32>
    %555 = math.exp %554 : vector<2x64xf32>
    %cst_125 = arith.constant 1.000000e+00 : f32
    %556 = vector.broadcast %cst_125 : f32 to vector<2x64xf32>
    %557 = arith.addf %556, %555 : vector<2x64xf32>
    %558 = tpu.reciprocal %557 {approx = true} : vector<2x64xf32> -> vector<2x64xf32>
    %559 = arith.mulf %518, %558 : vector<2x64xf32>
    %c1_126 = arith.constant 1 : index
    %c0_127 = arith.constant 0 : index
    %c0_128 = arith.constant 0 : index
    %560 = vector.load %arg12[%c1_126, %c0_127, %c0_128] : memref<2x2x64xf32, #tpu.memory_space<vmem>>, vector<1x2x64xf32>
    %561 = vector.shape_cast %560 : vector<1x2x64xf32> to vector<2x64xf32>
    %562 = vector.shape_cast %559 : vector<2x64xf32> to vector<1x2x64xf32>
    tpu.vector_store %arg12[%c1_126, %c0_127, %c0_128], %562 {strides = array<i32>} : memref<2x2x64xf32, #tpu.memory_space<vmem>>, vector<1x2x64xf32>,
    %563 = tpu.concatenate %367, %431, %495, %559 in 0 : vector<2x64xf32>, vector<2x64xf32>, vector<2x64xf32>, vector<2x64xf32> -> vector<8x64xf32>
    %564 = arith.truncf %563 : vector<8x64xf32> to vector<8x64xbf16>
    %c0_129 = arith.constant 0 : index
    %c0_130 = arith.constant 0 : index
    %565 = vector.load %arg8[%c0_129, %c0_130] : memref<64x64xbf16, #tpu.memory_space<vmem>>, vector<64x64xbf16>
    %cst_131 = arith.constant dense<0.000000e+00> : vector<8x64xf32>
    %566 = tpu.matmul %564, %565, %cst_131 {dimension_numbers = #tpu.dot_dimension_numbers<[1], [0], [0], [1], [0, 0, 1, 1], [], []>} : vector<8x64xbf16>, vector<64x64xbf16>, vector<8x64xf32> -> vector<8x64xf32>
    %567 = tpu.concatenate %563, %566 in 1 : vector<8x64xf32>, vector<8x64xf32> -> vector<8x128xf32>
    %c0_132 = arith.constant 0 : index
    %c0_133 = arith.constant 0 : index
    %568 = vector.load %arg11[%c0_132, %c0_133] : memref<8x128xf32, #tpu.memory_space<vmem>>, vector<8x128xf32>
    tpu.vector_store %arg11[%c0_132, %c0_133], %567 {strides = array<i32>} : memref<8x128xf32, #tpu.memory_space<vmem>>, vector<8x128xf32>,
    %569 = tpu.concatenate %279, %559 in 1 : vector<2x64xf32>, vector<2x64xf32> -> vector<2x128xf32>
    %570 = arith.truncf %569 : vector<2x128xf32> to vector<2x128xbf16>
    %c0_134 = arith.constant 0 : index
    %c0_135 = arith.constant 0 : index
    %571 = vector.load %arg9[%c0_134, %c0_135] : memref<128x32xbf16, #tpu.memory_space<vmem>>, vector<128x32xbf16>
    %cst_136 = arith.constant dense<0.000000e+00> : vector<2x32xf32>
    %572 = tpu.matmul %570, %571, %cst_136 {dimension_numbers = #tpu.dot_dimension_numbers<[1], [0], [0], [1], [0, 0, 1, 1], [], []>} : vector<2x128xbf16>, vector<128x32xbf16>, vector<2x32xf32> -> vector<2x32xf32>
    %cst_137 = arith.constant 0.000000e+00 : f32
    %573 = vector.broadcast %cst_137 : f32 to vector<2x32xf32>
    %574 = arith.maximumf %572, %573 : vector<2x32xf32>
    %575 = arith.truncf %574 : vector<2x32xf32> to vector<2x32xbf16>
    %c0_138 = arith.constant 0 : index
    %c0_139 = arith.constant 0 : index
    %576 = vector.load %arg10[%c0_138, %c0_139] : memref<32x4xbf16, #tpu.memory_space<vmem>>, vector<32x4xbf16>
    %cst_140 = arith.constant dense<0.000000e+00> : vector<2x4xf32>
    %577 = tpu.matmul %575, %576, %cst_140 {dimension_numbers = #tpu.dot_dimension_numbers<[1], [0], [0], [1], [0, 0, 1, 1], [], []>} : vector<2x32xbf16>, vector<32x4xbf16>, vector<2x4xf32> -> vector<2x4xf32>
    %c0_141 = arith.constant 0 : index
    %c0_142 = arith.constant 0 : index
    %578 = vector.load %arg13[%c0_141, %c0_142] : memref<2x4xf32, #tpu.memory_space<vmem>>, vector<2x4xf32>
    tpu.vector_store %arg13[%c0_141, %c0_142], %577 {strides = array<i32>} : memref<2x4xf32, #tpu.memory_space<vmem>>, vector<2x4xf32>,
    return
  }
}

</mosaic_0001>

<llo_original>
// kernel: run_kernel.1
$region0: #{run_kernel.1}
  #allocation0 [shape = 'u32[]', space=smem, size = 0x4, offset = 0x4, fixed_abs, tag = 'smem constant byte address 0x4 - core index']
  #allocation1 [shape = 'u32[144,128]{1,0:T(1,128)}', space=vmem, size = 0x12000, scoped, tag = 'internal scratch']
  %s0 = inlined_call_operand.hbm [shape: f32[8,64], index: 0, kind: input, shape index: {}]
  %s1 = inlined_call_operand.hbm [shape: f32[2,2,64], index: 1, kind: input, shape index: {}]
  %s2 = inlined_call_operand.vmem [shape: bf16[2,64,192], index: 2, kind: input, shape index: {}]
  %s3 = inlined_call_operand.hbm [shape: f32[2,1,192], index: 3, kind: input, shape index: {}]
  %s4 = inlined_call_operand.vmem [shape: bf16[2,64,192], index: 4, kind: input, shape index: {}]
  %s5 = inlined_call_operand.vmem [shape: f32[2,1,192], index: 5, kind: input, shape index: {}]
  %s6 = inlined_call_operand.hbm [shape: bf16[2,128,128], index: 6, kind: input, shape index: {}]
  %s7 = inlined_call_operand.vmem [shape: bf16[2,128,64], index: 7, kind: input, shape index: {}]
  %s8 = inlined_call_operand.vmem [shape: bf16[64,64], index: 8, kind: input, shape index: {}]
  %s9 = inlined_call_operand.vmem [shape: bf16[128,32], index: 9, kind: input, shape index: {}]
  %s10 = inlined_call_operand.vmem [shape: bf16[32,4], index: 10, kind: input, shape index: {}]
  %s11 = inlined_call_operand.hbm [shape: f32[8,128], index: 11, kind: output, shape index: {0}]
  %s12 = inlined_call_operand.hbm [shape: f32[2,2,64], index: 12, kind: output, shape index: {1}]
  %s13 = inlined_call_operand.hbm [shape: f32[2,4], index: 13, kind: output, shape index: {2}]
  %14 = xla_tuple %s11, %s12, %s13
  %s15 = sld [smem:[#allocation0]]
  $region86: #{run_kernel.1} parent=0
    _
  %s17 = ssub.s32 1, %s15
  %s18 = scalar_select 0, %s17, %s15
  $region1: #{run_kernel.1} parent=0
    #allocation2 [shape = 'u8[4096]{0}', space=vmem, size = 0x1000, scoped, tag = 'input window, operand 0, single buffered']
    #allocation3 [shape = 's32[1]{0}', space=sflag, size = 0x4, scoped, tag = 'scoped memory for run_kernel.1']
    #allocation4 [shape = 's32[1]{0}', space=sflag, size = 0x4, scoped, tag = 'scoped memory for run_kernel.1']
    #allocation5 [shape = 'u8[2048]{0}', space=vmem, size = 0x800, scoped, tag = 'input window, operand 1, single buffered']
    #allocation6 [shape = 's32[1]{0}', space=sflag, size = 0x4, scoped, tag = 'scoped memory for run_kernel.1']
    #allocation7 [shape = 'u8[2048]{0}', space=vmem, size = 0x800, scoped, tag = 'input window, operand 3, single buffered']
    #allocation8 [shape = 'u8[65536]{0}', space=vmem, size = 0x10000, scoped, tag = 'input window, operand 6, single buffered']
    #allocation9 [shape = 's32[1]{0}', space=sflag, size = 0x4, scoped, tag = 'scoped memory for run_kernel.1']
    #allocation10 [shape = 'u8[4096]{0}', space=vmem, size = 0x1000, scoped, tag = 'output window, operand 0, single buffered']
    #allocation11 [shape = 'u8[2048]{0}', space=vmem, size = 0x800, scoped, tag = 'output window, operand 1, single buffered']
    #allocation12 [shape = 's32[1]{0}', space=sflag, size = 0x4, scoped, tag = 'scoped memory for run_kernel.1']
    #allocation13 [shape = 'u8[1024]{0}', space=vmem, size = 0x400, scoped, tag = 'output window, operand 2, single buffered']
    %19 = vsyncpa [#allocation3], 0
    %20 = vsyncpa [#allocation6], 0
    %21 = vsyncpa [#allocation9], 0
    %22 = vsyncpa [#allocation4], 0
    %23 = vsyncpa [#allocation12], 0
    // Predicated region
    $region2: #{run_kernel.1} parent=1 // pred_check
      _
    $region3: #{run_kernel.1} parent=1 // pred_check_branch
      %25 = sbr.rel (0) target = $region5
    $region4: #{run_kernel.1} parent=1 // pred_region
      %s27 = ssub.s32 128, 128
      %28 = vsyncadd [#allocation3], %s27
      %s30 = sshll.u32 [#allocation2], 4
      %s31 = int_to_ptr.vmem [resolvable:$true] %s30
      %33 = dma.hbm_to_vmem [thread:$0]  %s0, 128, %s31, [#allocation3]
    $region5: #{run_kernel.1} parent=1 // pred_fallthru
      _
    // Predicated region
    $region6: #{run_kernel.1} parent=1 // pred_check
      _
    $region7: #{run_kernel.1} parent=1 // pred_check_branch
      %35 = sbr.rel (0) target = $region9
    $region8: #{run_kernel.1} parent=1 // pred_region
      %s37 = ssub.s32 64, 64
      %38 = vsyncadd [#allocation6], %s37
      %s39 = sshll.u32 [#allocation5], 4
      %s40 = int_to_ptr.vmem [resolvable:$true] %s39
      %45 = dma.hbm_to_vmem [thread:$0]  %s1, 64, %s40, [#allocation6], 32, 32, 2
    $region9: #{run_kernel.1} parent=1 // pred_fallthru
      _
    // Predicated region
    $region10: #{run_kernel.1} parent=1 // pred_check
      _
    $region11: #{run_kernel.1} parent=1 // pred_check_branch
      %47 = sbr.rel (0) target = $region13
    $region12: #{run_kernel.1} parent=1 // pred_region
      _
    $region13: #{run_kernel.1} parent=1 // pred_fallthru
      _
    // Predicated region
    $region14: #{run_kernel.1} parent=1 // pred_check
      _
    $region15: #{run_kernel.1} parent=1 // pred_check_branch
      %49 = sbr.rel (0) target = $region17
    $region16: #{run_kernel.1} parent=1 // pred_region
      %s51 = ssub.s32 64, 64
      %52 = vsyncadd [#allocation6], %s51
      %s53 = sshll.u32 [#allocation7], 4
      %s54 = int_to_ptr.vmem [resolvable:$true] %s53
      %59 = dma.hbm_to_vmem [thread:$0]  %s3, 64, %s54, [#allocation6], 32, 32, 2
    $region17: #{run_kernel.1} parent=1 // pred_fallthru
      _
    // Predicated region
    $region18: #{run_kernel.1} parent=1 // pred_check
      _
    $region19: #{run_kernel.1} parent=1 // pred_check_branch
      %61 = sbr.rel (0) target = $region21
    $region20: #{run_kernel.1} parent=1 // pred_region
      _
    $region21: #{run_kernel.1} parent=1 // pred_fallthru
      _
    // Predicated region
    $region22: #{run_kernel.1} parent=1 // pred_check
      _
    $region23: #{run_kernel.1} parent=1 // pred_check_branch
      %63 = sbr.rel (0) target = $region25
    $region24: #{run_kernel.1} parent=1 // pred_region
      _
    $region25: #{run_kernel.1} parent=1 // pred_fallthru
      _
    // Predicated region
    $region26: #{run_kernel.1} parent=1 // pred_check
      _
    $region27: #{run_kernel.1} parent=1 // pred_check_branch
      %65 = sbr.rel (0) target = $region29
    $region28: #{run_kernel.1} parent=1 // pred_region
      %s67 = ssub.s32 2048, 2048
      %68 = vsyncadd [#allocation9], %s67
      %s69 = sshll.u32 [#allocation8], 4
      %s70 = int_to_ptr.vmem [resolvable:$true] %s69
      %75 = dma.hbm_to_vmem [thread:$0]  %s6, 2048, %s70, [#allocation9], 64, 64, 4
    $region29: #{run_kernel.1} parent=1 // pred_fallthru
      _
    // Predicated region
    $region30: #{run_kernel.1} parent=1 // pred_check
      _
    $region31: #{run_kernel.1} parent=1 // pred_check_branch
      %77 = sbr.rel (0) target = $region33
    $region32: #{run_kernel.1} parent=1 // pred_region
      _
    $region33: #{run_kernel.1} parent=1 // pred_fallthru
      _
    // Predicated region
    $region34: #{run_kernel.1} parent=1 // pred_check
      _
    $region35: #{run_kernel.1} parent=1 // pred_check_branch
      %79 = sbr.rel (0) target = $region37
    $region36: #{run_kernel.1} parent=1 // pred_region
      _
    $region37: #{run_kernel.1} parent=1 // pred_fallthru
      _
    // Predicated region
    $region38: #{run_kernel.1} parent=1 // pred_check
      _
    $region39: #{run_kernel.1} parent=1 // pred_check_branch
      %81 = sbr.rel (0) target = $region41
    $region40: #{run_kernel.1} parent=1 // pred_region
      _
    $region41: #{run_kernel.1} parent=1 // pred_fallthru
      _
    // Predicated region
    $region42: #{run_kernel.1} parent=1 // pred_check
      _
    $region43: #{run_kernel.1} parent=1 // pred_check_branch
      %83 = sbr.rel (0) target = $region45
    $region44: #{run_kernel.1} parent=1 // pred_region
      _
    $region45: #{run_kernel.1} parent=1 // pred_fallthru
      _
    // Predicated region
    $region46: #{run_kernel.1} parent=1 // pred_check
      _
    $region47: #{run_kernel.1} parent=1 // pred_check_branch
      %85 = sbr.rel (0) target = $region49
    $region48: #{run_kernel.1} parent=1 // pred_region
      %86 = dma.done [#allocation3], 128
    $region49: #{run_kernel.1} parent=1 // pred_fallthru
      _
    // Predicated region
    $region50: #{run_kernel.1} parent=1 // pred_check
      _
    $region51: #{run_kernel.1} parent=1 // pred_check_branch
      %88 = sbr.rel (0) target = $region53
    $region52: #{run_kernel.1} parent=1 // pred_region
      %89 = dma.done [#allocation6], 64
    $region53: #{run_kernel.1} parent=1 // pred_fallthru
      _
    // Predicated region
    $region54: #{run_kernel.1} parent=1 // pred_check
      _
    $region55: #{run_kernel.1} parent=1 // pred_check_branch
      %91 = sbr.rel (0) target = $region57
    $region56: #{run_kernel.1} parent=1 // pred_region
      %92 = dma.done [#allocation6], 64
    $region57: #{run_kernel.1} parent=1 // pred_fallthru
      _
    // Predicated region
    $region58: #{run_kernel.1} parent=1 // pred_check
      _
    $region59: #{run_kernel.1} parent=1 // pred_check_branch
      %94 = sbr.rel (0) target = $region61
    $region60: #{run_kernel.1} parent=1 // pred_region
      %95 = dma.done [#allocation9], 2048
    $region61: #{run_kernel.1} parent=1 // pred_fallthru
      _
    %v97 = vlaneseq
    %v98 = vshrl.u32 %v97, 7
    %v99 = vadd.s32 %v98, 8
    %v100 = vadd.s32 %v98, 16
    %v101 = vadd.s32 %v98, 24
    %v102 = vadd.s32 %v98, 32
    %v103 = vadd.s32 %v98, 40
    %v104 = vadd.s32 %v98, 48
    %v105 = vadd.s32 %v98, 56
    %v106 = vlaneseq
    %v107 = vand.u32 %v106, 127
    %v108 = vcvt.s32.f32 %v107
    %v109 = vld [vmem:[#allocation2] sm:$0xff]
    %v110 = vpack.c.bf16 %v109, %v109
    %v111 = vld [vmem:[%s2] sm:$0xff]
    %v112 = vld [vmem:[%s2 + $0x8] sm:$0xff]
    %v113 = vld [vmem:[%s2 + $0x10] sm:$0xff]
    %v114 = vld [vmem:[%s2 + $0x18] sm:$0xff]
    %v115 = vld [vmem:[%s2 + $0x20] sm:$0xff]
    %v116 = vld [vmem:[%s2 + $0x28] sm:$0xff]
    %v117 = vld [vmem:[%s2 + $0x30] sm:$0xff]
    %v118 = vld [vmem:[%s2 + $0x38] sm:$0xff]
    %v119 = vld [vmem:[#allocation7] sm:$0x3]
    %v121 = vlaneseq
    %v122 = vshrl.u32 %v121, 7
    %v123 = vsub.s32 0, %v122
    %v124 = vrot.slane %v119, %v123
    %v125 = vlaneseq
    %v126 = vshrl.u32 %v125, 7
    %v127 = vsub.s32 1, %v126
    %v128 = vrot.slane %v119, %v127
    %v139 = vunpack.c.l.b16 %v111
    %v140 = vunpack.c.h.b16 %v111
    %v141 = vunpack.c.l.b16 %v112
    %v142 = vunpack.c.h.b16 %v112
    %v143 = vunpack.c.l.b16 %v113
    %v144 = vunpack.c.h.b16 %v113
    %v145 = vunpack.c.l.b16 %v114
    %v146 = vunpack.c.h.b16 %v114
    %v147 = vunpack.c.l.b16 %v115
    %v148 = vunpack.c.h.b16 %v115
    %v149 = vunpack.c.l.b16 %v116
    %v150 = vunpack.c.h.b16 %v116
    %v151 = vunpack.c.l.b16 %v117
    %v152 = vunpack.c.h.b16 %v117
    %v153 = vunpack.c.l.b16 %v118
    %v154 = vunpack.c.h.b16 %v118
    %v155 = vpack.c.b16 %v141, %v139
    %v156 = vpack.c.b16 %v142, %v140
    %v157 = vpack.c.b16 %v145, %v143
    %v158 = vpack.c.b16 %v146, %v144
    %v159 = vpack.c.b16 %v149, %v147
    %v160 = vpack.c.b16 %v150, %v148
    %v161 = vpack.c.b16 %v153, %v151
    %v162 = vpack.c.b16 %v154, %v152
    %vm171 = vcmask 523264
    %v173 = vsel %vm171, %v110, 0
    %175 = vmatprep.subr.bf16.mxu0 %v156
    %176 = vmatpush1.bf16.msra.mxu0 %v155
    %177 = vmatprep.subr.bf16.mxu0 %v158
    %178 = vmatpush1.bf16.msra.mxu0 %v157
    %179 = vmatprep.subr.bf16.mxu0 %v160
    %180 = vmatpush1.bf16.msra.mxu0 %v159
    %181 = vmatprep.subr.bf16.mxu0 %v162
    %182 = vmatpush1.bf16.msra.mxu0 %v161
    %183 = vmatprep.subr.bf16.mxu0 0
    %184 = vmatpush1.bf16.msra.mxu0 0
    %185 = vmatprep.subr.bf16.mxu0 0
    %186 = vmatpush1.bf16.msra.mxu0 0
    %187 = vmatprep.subr.bf16.mxu0 0
    %188 = vmatpush1.bf16.msra.mxu0 0
    %189 = vmatprep.subr.bf16.mxu0 0
    %190 = vmatpush1.bf16.msra.mxu0 0
    %191 = vmatprep.subr.bf16.mxu0 0
    %192 = vmatpush1.bf16.msra.mxu0 0
    %193 = vmatprep.subr.bf16.mxu0 0
    %194 = vmatpush1.bf16.msra.mxu0 0
    %195 = vmatprep.subr.bf16.mxu0 0
    %196 = vmatpush1.bf16.msra.mxu0 0
    %197 = vmatprep.subr.bf16.mxu0 0
    %198 = vmatpush1.bf16.msra.mxu0 0
    %199 = vmatprep.subr.bf16.mxu0 0
    %200 = vmatpush1.bf16.msra.mxu0 0
    %201 = vmatprep.subr.bf16.mxu0 0
    %202 = vmatpush1.bf16.msra.mxu0 0
    %203 = vmatprep.subr.bf16.mxu0 0
    %204 = vmatpush1.bf16.msra.mxu0 0
    %205 = vmatprep.subr.bf16.mxu0 0
    %206 = vmatpush1.bf16.msra.mxu0 0
    %207 = vmatprep.mubr.bf16.mxu0 0
    %208 = vmatmul.mubr.bf16.gmra.mrb[0].mxu0 %v173
    %v209 = vpop.f32.mrb[0].mxu0
    %v210 = vadd.f32 %v124, %v209
    %v211 = vpop.f32.mrb[0].mxu0
    %v212 = vadd.f32 %v128, %v211
    %v213 = vpop.f32.mrb[0].mxu0
    %v214 = vpop.f32.mrb[0].mxu0
    %215 = vdwg.mxu0
    %v216 = vld [vmem:[%s4] sm:$0xff]
    %v217 = vld [vmem:[%s4 + $0x8] sm:$0xff]
    %v218 = vld [vmem:[%s4 + $0x10] sm:$0xff]
    %v219 = vld [vmem:[%s4 + $0x18] sm:$0xff]
    %v220 = vld [vmem:[%s4 + $0x20] sm:$0xff]
    %v221 = vld [vmem:[%s4 + $0x28] sm:$0xff]
    %v222 = vld [vmem:[%s4 + $0x30] sm:$0xff]
    %v223 = vld [vmem:[%s4 + $0x38] sm:$0xff]
    %v224 = vld [vmem:[%s5] sm:$0x3]
    %v226 = vlaneseq
    %v227 = vshrl.u32 %v226, 7
    %v228 = vsub.s32 0, %v227
    %v229 = vrot.slane %v224, %v228
    %v230 = vlaneseq
    %v231 = vshrl.u32 %v230, 7
    %v232 = vsub.s32 1, %v231
    %v233 = vrot.slane %v224, %v232
    %v236 = vld [vmem:[#allocation8] sm:$0xf]
    %v237 = vld [vmem:[#allocation8 + $0x4] sm:$0xf]
    %v238 = vld [vmem:[#allocation8 + $0x8] sm:$0xf]
    %v239 = vld [vmem:[#allocation8 + $0xc] sm:$0xf]
    %v240 = vld [vmem:[#allocation8 + $0x10] sm:$0xf]
    %v241 = vld [vmem:[#allocation8 + $0x14] sm:$0xf]
    %v242 = vld [vmem:[#allocation8 + $0x18] sm:$0xf]
    %v243 = vld [vmem:[#allocation8 + $0x1c] sm:$0xf]
    %v244 = vld [vmem:[#allocation8 + $0x20] sm:$0xf]
    %v245 = vld [vmem:[#allocation8 + $0x24] sm:$0xf]
    %v246 = vld [vmem:[#allocation8 + $0x28] sm:$0xf]
    %v247 = vld [vmem:[#allocation8 + $0x2c] sm:$0xf]
    %v248 = vld [vmem:[#allocation8 + $0x30] sm:$0xf]
    %v249 = vld [vmem:[#allocation8 + $0x34] sm:$0xf]
    %v250 = vld [vmem:[#allocation8 + $0x38] sm:$0xf]
    %v251 = vld [vmem:[#allocation8 + $0x3c] sm:$0xf]
    %v252 = vld [vmem:[%s7] sm:$0xf]
    %v253 = vld [vmem:[%s7 + $0x4] sm:$0xf]
    %v254 = vld [vmem:[%s7 + $0x8] sm:$0xf]
    %v255 = vld [vmem:[%s7 + $0xc] sm:$0xf]
    %v256 = vld [vmem:[%s7 + $0x10] sm:$0xf]
    %v257 = vld [vmem:[%s7 + $0x14] sm:$0xf]
    %v258 = vld [vmem:[%s7 + $0x18] sm:$0xf]
    %v259 = vld [vmem:[%s7 + $0x1c] sm:$0xf]
    %v260 = vld [vmem:[%s7 + $0x20] sm:$0xf]
    %v261 = vld [vmem:[%s7 + $0x24] sm:$0xf]
    %v262 = vld [vmem:[%s7 + $0x28] sm:$0xf]
    %v263 = vld [vmem:[%s7 + $0x2c] sm:$0xf]
    %v264 = vld [vmem:[%s7 + $0x30] sm:$0xf]
    %v265 = vld [vmem:[%s7 + $0x34] sm:$0xf]
    %v266 = vld [vmem:[%s7 + $0x38] sm:$0xf]
    %v267 = vld [vmem:[%s7 + $0x3c] sm:$0xf]
    %v268 = vld [vmem:[#allocation5] sm:$0x3]
    %v269 = vpack.c.bf16 %v268, %v268
    %v278 = vunpack.c.l.b16 %v216
    %v279 = vunpack.c.h.b16 %v216
    %v280 = vunpack.c.l.b16 %v217
    %v281 = vunpack.c.h.b16 %v217
    %v282 = vunpack.c.l.b16 %v218
    %v283 = vunpack.c.h.b16 %v218
    %v284 = vunpack.c.l.b16 %v219
    %v285 = vunpack.c.h.b16 %v219
    %v286 = vunpack.c.l.b16 %v220
    %v287 = vunpack.c.h.b16 %v220
    %v288 = vunpack.c.l.b16 %v221
    %v289 = vunpack.c.h.b16 %v221
    %v290 = vunpack.c.l.b16 %v222
    %v291 = vunpack.c.h.b16 %v222
    %v292 = vunpack.c.l.b16 %v223
    %v293 = vunpack.c.h.b16 %v223
    %v294 = vpack.c.b16 %v280, %v278
    %v295 = vpack.c.b16 %v281, %v279
    %v296 = vpack.c.b16 %v284, %v282
    %v297 = vpack.c.b16 %v285, %v283
    %v298 = vpack.c.b16 %v288, %v286
    %v299 = vpack.c.b16 %v289, %v287
    %v300 = vpack.c.b16 %v292, %v290
    %v301 = vpack.c.b16 %v293, %v291
    %v311 = vsel %vm171, %v269, 0
    %313 = vmatprep.subr.bf16.mxu0 %v295
    %314 = vmatpush1.bf16.msra.mxu0 %v294
    %315 = vmatprep.subr.bf16.mxu0 %v297
    %316 = vmatpush1.bf16.msra.mxu0 %v296
    %317 = vmatprep.subr.bf16.mxu0 %v299
    %318 = vmatpush1.bf16.msra.mxu0 %v298
    %319 = vmatprep.subr.bf16.mxu0 %v301
    %320 = vmatpush1.bf16.msra.mxu0 %v300
    %321 = vmatprep.subr.bf16.mxu0 0
    %322 = vmatpush1.bf16.msra.mxu0 0
    %323 = vmatprep.subr.bf16.mxu0 0
    %324 = vmatpush1.bf16.msra.mxu0 0
    %325 = vmatprep.subr.bf16.mxu0 0
    %326 = vmatpush1.bf16.msra.mxu0 0
    %327 = vmatprep.subr.bf16.mxu0 0
    %328 = vmatpush1.bf16.msra.mxu0 0
    %329 = vmatprep.subr.bf16.mxu0 0
    %330 = vmatpush1.bf16.msra.mxu0 0
    %331 = vmatprep.subr.bf16.mxu0 0
    %332 = vmatpush1.bf16.msra.mxu0 0
    %333 = vmatprep.subr.bf16.mxu0 0
    %334 = vmatpush1.bf16.msra.mxu0 0
    %335 = vmatprep.subr.bf16.mxu0 0
    %336 = vmatpush1.bf16.msra.mxu0 0
    %337 = vmatprep.subr.bf16.mxu0 0
    %338 = vmatpush1.bf16.msra.mxu0 0
    %339 = vmatprep.subr.bf16.mxu0 0
    %340 = vmatpush1.bf16.msra.mxu0 0
    %341 = vmatprep.subr.bf16.mxu0 0
    %342 = vmatpush1.bf16.msra.mxu0 0
    %343 = vmatprep.subr.bf16.mxu0 0
    %344 = vmatpush1.bf16.msra.mxu0 0
    %345 = vmatprep.mubr.bf16.mxu0 0
    %346 = vmatmul.mubr.bf16.gmra.mrb[0].mxu0 %v311
    %v347 = vpop.f32.mrb[0].mxu0
    %v348 = vadd.f32 %v229, %v347
    %v349 = vpop.f32.mrb[0].mxu0
    %v350 = vadd.f32 %v233, %v349
    %v351 = vpop.f32.mrb[0].mxu0
    %v352 = vpop.f32.mrb[0].mxu0
    %353 = vdwg.mxu0
    %v354 = vadd.f32 %v210, %v348
    %v355 = vsub.f32 0.0, %v354
    %v356 = vmul.f32 %v355, 1.442695
    %v357 = vpow.pop %v356
    %v358 = vadd.f32 %v357, 1.0
    %v359 = vrcp.pop %v358
    %v360 = vmul.f32 %v359, %v350
    %v361 = vadd.f32 %v212, %v360
    %v362 = vtanh.pop %v361
    %v363 = vsub.f32 %v268, %v362
    %365 = vrot.lane.b32.xlu0 %v363, 64
    %v366 = vpop.permute.xlu0 %365
    %v368 = vmul.f32 %v359, %v366
    %370 = vrot.lane.b32.xlu0 %v368, 64
    %v371 = vpop.permute.xlu0 %370
    %v373 = vadd.f32 %v362, %v371
    %v376 = vunpack.c.l.s4 1966171168
    %v377 = vunpack.c.0.s8 %v376
    %v378 = vlaneseq
    %v379 = vshrl.u32 %v378, 7
    %v380 = vsub.s32 %v377, %v379
    %v381 = vrot.slane %v373, %v380
    %v382 = vcombine.high %v381, %v381
    %v384 = vunpack.c.l.s4 1966171168
    %v385 = vunpack.c.0.s8 %v384
    %v386 = vlaneseq
    %v387 = vshrl.u32 %v386, 7
    %v388 = vsub.s32 %v385, %v387
    %v389 = vrot.slane %v381, %v388
    %v391 = vunpack.c.l.s4 1966171168
    %v392 = vunpack.c.0.s8 %v391
    %v393 = vlaneseq
    %v394 = vshrl.u32 %v393, 7
    %v395 = vsub.s32 %v392, %v394
    %v396 = vrot.slane %v382, %v395
    %v397 = vlaneseq
    %v398 = vshrl.u32 %v397, 7
    %v399 = vsub.s32 0, %v398
    %v400 = vrot.slane %v373, %v399
    %402 = vbcast.lane.b32.xlu0 %v400, 256
    %v403 = vpop.permute.xlu0 %402
    %s405 = sor.u32 256, 8
    %406 = vbcast.lane.b32.xlu0 %v400, %s405
    %v407 = vpop.permute.xlu0 %406
    %s409 = sor.u32 256, 16
    %410 = vbcast.lane.b32.xlu0 %v400, %s409
    %v411 = vpop.permute.xlu0 %410
    %s413 = sor.u32 256, 24
    %414 = vbcast.lane.b32.xlu0 %v400, %s413
    %v415 = vpop.permute.xlu0 %414
    %s417 = sor.u32 256, 32
    %418 = vbcast.lane.b32.xlu0 %v400, %s417
    %v419 = vpop.permute.xlu0 %418
    %s421 = sor.u32 256, 40
    %422 = vbcast.lane.b32.xlu0 %v400, %s421
    %v423 = vpop.permute.xlu0 %422
    %s425 = sor.u32 256, 48
    %426 = vbcast.lane.b32.xlu0 %v400, %s425
    %v427 = vpop.permute.xlu0 %426
    %s429 = sor.u32 256, 56
    %430 = vbcast.lane.b32.xlu0 %v400, %s429
    %v431 = vpop.permute.xlu0 %430
    %v432 = vlaneseq
    %v433 = vshrl.u32 %v432, 7
    %v434 = vsub.s32 1, %v433
    %v435 = vrot.slane %v373, %v434
    %437 = vbcast.lane.b32.xlu0 %v435, 256
    %v438 = vpop.permute.xlu0 %437
    %s440 = sor.u32 256, 8
    %441 = vbcast.lane.b32.xlu0 %v435, %s440
    %v442 = vpop.permute.xlu0 %441
    %s444 = sor.u32 256, 16
    %445 = vbcast.lane.b32.xlu0 %v435, %s444
    %v446 = vpop.permute.xlu0 %445
    %s448 = sor.u32 256, 24
    %449 = vbcast.lane.b32.xlu0 %v435, %s448
    %v450 = vpop.permute.xlu0 %449
    %s452 = sor.u32 256, 32
    %453 = vbcast.lane.b32.xlu0 %v435, %s452
    %v454 = vpop.permute.xlu0 %453
    %s456 = sor.u32 256, 40
    %457 = vbcast.lane.b32.xlu0 %v435, %s456
    %v458 = vpop.permute.xlu0 %457
    %s460 = sor.u32 256, 48
    %461 = vbcast.lane.b32.xlu0 %v435, %s460
    %v462 = vpop.permute.xlu0 %461
    %s464 = sor.u32 256, 56
    %465 = vbcast.lane.b32.xlu0 %v435, %s464
    %v466 = vpop.permute.xlu0 %465
    %v467 = vlaneseq
    %v468 = vshrl.u32 %v467, 7
    %v469 = vsub.s32 0, %v468
    %v470 = vrot.slane %v389, %v469
    %v471 = vlaneseq
    %v472 = vshrl.u32 %v471, 7
    %v473 = vsub.s32 0, %v472
    %v474 = vrot.slane %v396, %v473
    %vm477 = vcmp.lt.f32.partialorder %v470, %v403
    %vm478 = vcmp.lt.f32.partialorder %v470, %v407
    %vm479 = vcmp.lt.f32.partialorder %v470, %v411
    %vm480 = vcmp.lt.f32.partialorder %v470, %v415
    %vm481 = vcmp.lt.f32.partialorder %v470, %v419
    %vm482 = vcmp.lt.f32.partialorder %v470, %v423
    %vm483 = vcmp.lt.f32.partialorder %v470, %v427
    %vm484 = vcmp.lt.f32.partialorder %v470, %v431
    %vm485 = vcmp.lt.f32.partialorder %v474, %v438
    %vm486 = vcmp.lt.f32.partialorder %v474, %v442
    %vm487 = vcmp.lt.f32.partialorder %v474, %v446
    %vm488 = vcmp.lt.f32.partialorder %v474, %v450
    %vm489 = vcmp.lt.f32.partialorder %v474, %v454
    %vm490 = vcmp.lt.f32.partialorder %v474, %v458
    %vm491 = vcmp.lt.f32.partialorder %v474, %v462
    %vm492 = vcmp.lt.f32.partialorder %v474, %v466
    %vm493 = vcmp.eq.f32.partialorder %v470, %v403
    %vm494 = vcmp.eq.f32.partialorder %v470, %v407
    %vm495 = vcmp.eq.f32.partialorder %v470, %v411
    %vm496 = vcmp.eq.f32.partialorder %v470, %v415
    %vm497 = vcmp.eq.f32.partialorder %v470, %v419
    %vm498 = vcmp.eq.f32.partialorder %v470, %v423
    %vm499 = vcmp.eq.f32.partialorder %v470, %v427
    %vm500 = vcmp.eq.f32.partialorder %v470, %v431
    %vm501 = vcmp.eq.f32.partialorder %v474, %v438
    %vm502 = vcmp.eq.f32.partialorder %v474, %v442
    %vm503 = vcmp.eq.f32.partialorder %v474, %v446
    %vm504 = vcmp.eq.f32.partialorder %v474, %v450
    %vm505 = vcmp.eq.f32.partialorder %v474, %v454
    %vm506 = vcmp.eq.f32.partialorder %v474, %v458
    %vm507 = vcmp.eq.f32.partialorder %v474, %v462
    %vm508 = vcmp.eq.f32.partialorder %v474, %v466
    %vm509 = vcmp.lt.s32.totalorder %v107, %v98
    %vm510 = vcmp.lt.s32.totalorder %v107, %v99
    %vm511 = vcmp.lt.s32.totalorder %v107, %v100
    %vm512 = vcmp.lt.s32.totalorder %v107, %v101
    %vm513 = vcmp.lt.s32.totalorder %v107, %v102
    %vm514 = vcmp.lt.s32.totalorder %v107, %v103
    %vm515 = vcmp.lt.s32.totalorder %v107, %v104
    %vm516 = vcmp.lt.s32.totalorder %v107, %v105
    %v517 = vsel %vm509, 1, 0
    %v518 = vsel %vm510, 1, 0
    %v519 = vsel %vm511, 1, 0
    %v520 = vsel %vm512, 1, 0
    %v521 = vsel %vm513, 1, 0
    %v522 = vsel %vm514, 1, 0
    %v523 = vsel %vm515, 1, 0
    %v524 = vsel %vm516, 1, 0
    %vm525 = vcmp.eq.s32.totalorder %v517, 1
    %vm526 = vcmp.eq.s32.totalorder %v518, 1
    %vm527 = vcmp.eq.s32.totalorder %v519, 1
    %vm528 = vcmp.eq.s32.totalorder %v520, 1
    %vm529 = vcmp.eq.s32.totalorder %v521, 1
    %vm530 = vcmp.eq.s32.totalorder %v522, 1
    %vm531 = vcmp.eq.s32.totalorder %v523, 1
    %vm532 = vcmp.eq.s32.totalorder %v524, 1
    %vm533 = vmand %vm493, %vm525
    %vm534 = vmand %vm494, %vm526
    %vm535 = vmand %vm495, %vm527
    %vm536 = vmand %vm496, %vm528
    %vm537 = vmand %vm497, %vm529
    %vm538 = vmand %vm498, %vm530
    %vm539 = vmand %vm499, %vm531
    %vm540 = vmand %vm500, %vm532
    %vm541 = vmand %vm501, %vm525
    %vm542 = vmand %vm502, %vm526
    %vm543 = vmand %vm503, %vm527
    %vm544 = vmand %vm504, %vm528
    %vm545 = vmand %vm505, %vm529
    %vm546 = vmand %vm506, %vm530
    %vm547 = vmand %vm507, %vm531
    %vm548 = vmand %vm508, %vm532
    %vm549 = vmor %vm477, %vm533
    %vm550 = vmor %vm478, %vm534
    %vm551 = vmor %vm479, %vm535
    %vm552 = vmor %vm480, %vm536
    %vm553 = vmor %vm481, %vm537
    %vm554 = vmor %vm482, %vm538
    %vm555 = vmor %vm483, %vm539
    %vm556 = vmor %vm484, %vm540
    %vm557 = vmor %vm485, %vm541
    %vm558 = vmor %vm486, %vm542
    %vm559 = vmor %vm487, %vm543
    %vm560 = vmor %vm488, %vm544
    %vm561 = vmor %vm489, %vm545
    %vm562 = vmor %vm490, %vm546
    %vm563 = vmor %vm491, %vm547
    %vm564 = vmor %vm492, %vm548
    %v565 = vsel %vm549, 1, 0
    %v566 = vsel %vm550, 1, 0
    %v567 = vsel %vm551, 1, 0
    %v568 = vsel %vm552, 1, 0
    %v569 = vsel %vm553, 1, 0
    %v570 = vsel %vm554, 1, 0
    %v571 = vsel %vm555, 1, 0
    %v572 = vsel %vm556, 1, 0
    %v573 = vsel %vm557, 1, 0
    %v574 = vsel %vm558, 1, 0
    %v575 = vsel %vm559, 1, 0
    %v576 = vsel %vm560, 1, 0
    %v577 = vsel %vm561, 1, 0
    %v578 = vsel %vm562, 1, 0
    %v579 = vsel %vm563, 1, 0
    %v580 = vsel %vm564, 1, 0
    %v581 = vcvt.s32.f32 %v565
    %v582 = vcvt.s32.f32 %v566
    %v583 = vcvt.s32.f32 %v567
    %v584 = vcvt.s32.f32 %v568
    %v585 = vcvt.s32.f32 %v569
    %v586 = vcvt.s32.f32 %v570
    %v587 = vcvt.s32.f32 %v571
    %v588 = vcvt.s32.f32 %v572
    %v589 = vcvt.s32.f32 %v573
    %v590 = vcvt.s32.f32 %v574
    %v591 = vcvt.s32.f32 %v575
    %v592 = vcvt.s32.f32 %v576
    %v593 = vcvt.s32.f32 %v577
    %v594 = vcvt.s32.f32 %v578
    %v595 = vcvt.s32.f32 %v579
    %v596 = vcvt.s32.f32 %v580
    %v597 = vsel %vm171, %v581, 0.0
    %598 = vadd.xlane.f32.xlu0 %v597
    %v599 = vpop.xlane.xlu0 %598
    %v600 = vsel %vm171, %v582, 0.0
    %601 = vadd.xlane.f32.xlu0 %v600
    %v602 = vpop.xlane.xlu0 %601
    %v603 = vsel %vm171, %v583, 0.0
    %604 = vadd.xlane.f32.xlu0 %v603
    %v605 = vpop.xlane.xlu0 %604
    %v606 = vsel %vm171, %v584, 0.0
    %607 = vadd.xlane.f32.xlu0 %v606
    %v608 = vpop.xlane.xlu0 %607
    %v609 = vsel %vm171, %v585, 0.0
    %610 = vadd.xlane.f32.xlu0 %v609
    %v611 = vpop.xlane.xlu0 %610
    %v612 = vsel %vm171, %v586, 0.0
    %613 = vadd.xlane.f32.xlu0 %v612
    %v614 = vpop.xlane.xlu0 %613
    %v615 = vsel %vm171, %v587, 0.0
    %616 = vadd.xlane.f32.xlu0 %v615
    %v617 = vpop.xlane.xlu0 %616
    %v618 = vsel %vm171, %v588, 0.0
    %619 = vadd.xlane.f32.xlu0 %v618
    %v620 = vpop.xlane.xlu0 %619
    %v621 = vsel %vm171, %v589, 0.0
    %622 = vadd.xlane.f32.xlu0 %v621
    %v623 = vpop.xlane.xlu0 %622
    %v624 = vsel %vm171, %v590, 0.0
    %625 = vadd.xlane.f32.xlu0 %v624
    %v626 = vpop.xlane.xlu0 %625
    %v627 = vsel %vm171, %v591, 0.0
    %628 = vadd.xlane.f32.xlu0 %v627
    %v629 = vpop.xlane.xlu0 %628
    %v630 = vsel %vm171, %v592, 0.0
    %631 = vadd.xlane.f32.xlu0 %v630
    %v632 = vpop.xlane.xlu0 %631
    %v633 = vsel %vm171, %v593, 0.0
    %634 = vadd.xlane.f32.xlu0 %v633
    %v635 = vpop.xlane.xlu0 %634
    %v636 = vsel %vm171, %v594, 0.0
    %637 = vadd.xlane.f32.xlu0 %v636
    %v638 = vpop.xlane.xlu0 %637
    %v639 = vsel %vm171, %v595, 0.0
    %640 = vadd.xlane.f32.xlu0 %v639
    %v641 = vpop.xlane.xlu0 %640
    %v642 = vsel %vm171, %v596, 0.0
    %643 = vadd.xlane.f32.xlu0 %v642
    %v644 = vpop.xlane.xlu0 %643
    %vm645 = vcmp.eq.f32.partialorder %v599, %v108
    %vm646 = vcmp.eq.f32.partialorder %v602, %v108
    %vm647 = vcmp.eq.f32.partialorder %v605, %v108
    %vm648 = vcmp.eq.f32.partialorder %v608, %v108
    %vm649 = vcmp.eq.f32.partialorder %v611, %v108
    %vm650 = vcmp.eq.f32.partialorder %v614, %v108
    %vm651 = vcmp.eq.f32.partialorder %v617, %v108
    %vm652 = vcmp.eq.f32.partialorder %v620, %v108
    %vm653 = vcmp.eq.f32.partialorder %v623, %v108
    %vm654 = vcmp.eq.f32.partialorder %v626, %v108
    %vm655 = vcmp.eq.f32.partialorder %v629, %v108
    %vm656 = vcmp.eq.f32.partialorder %v632, %v108
    %vm657 = vcmp.eq.f32.partialorder %v635, %v108
    %vm658 = vcmp.eq.f32.partialorder %v638, %v108
    %vm659 = vcmp.eq.f32.partialorder %v641, %v108
    %vm660 = vcmp.eq.f32.partialorder %v644, %v108
    %v661 = vsel %vm645, 1, 0
    %v662 = vsel %vm646, 1, 0
    %v663 = vsel %vm647, 1, 0
    %v664 = vsel %vm648, 1, 0
    %v665 = vsel %vm649, 1, 0
    %v666 = vsel %vm650, 1, 0
    %v667 = vsel %vm651, 1, 0
    %v668 = vsel %vm652, 1, 0
    %v669 = vsel %vm653, 1, 0
    %v670 = vsel %vm654, 1, 0
    %v671 = vsel %vm655, 1, 0
    %v672 = vsel %vm656, 1, 0
    %v673 = vsel %vm657, 1, 0
    %v674 = vsel %vm658, 1, 0
    %v675 = vsel %vm659, 1, 0
    %v676 = vsel %vm660, 1, 0
    %v677 = vcvt.s32.f32 %v661
    %v678 = vcvt.s32.f32 %v662
    %v679 = vcvt.s32.f32 %v663
    %v680 = vcvt.s32.f32 %v664
    %v681 = vcvt.s32.f32 %v665
    %v682 = vcvt.s32.f32 %v666
    %v683 = vcvt.s32.f32 %v667
    %v684 = vcvt.s32.f32 %v668
    %v685 = vcvt.s32.f32 %v669
    %v686 = vcvt.s32.f32 %v670
    %v687 = vcvt.s32.f32 %v671
    %v688 = vcvt.s32.f32 %v672
    %v689 = vcvt.s32.f32 %v673
    %v690 = vcvt.s32.f32 %v674
    %v691 = vcvt.s32.f32 %v675
    %v692 = vcvt.s32.f32 %v676
    %v693 = vmul.f32 %v677, %v403
    %v694 = vmul.f32 %v678, %v407
    %v695 = vmul.f32 %v679, %v411
    %v696 = vmul.f32 %v680, %v415
    %v697 = vmul.f32 %v681, %v419
    %v698 = vmul.f32 %v682, %v423
    %v699 = vmul.f32 %v683, %v427
    %v700 = vmul.f32 %v684, %v431
    %v701 = vmul.f32 %v685, %v438
    %v702 = vmul.f32 %v686, %v442
    %v703 = vmul.f32 %v687, %v446
    %v704 = vmul.f32 %v688, %v450
    %v705 = vmul.f32 %v689, %v454
    %v706 = vmul.f32 %v690, %v458
    %v707 = vmul.f32 %v691, %v462
    %v708 = vmul.f32 %v692, %v466
    %v709 = vsel %vm171, %v693, 0.0
    %v710 = vsel %vm171, %v694, 0.0
    %v711 = vadd.f32 %v709, %v710
    %v712 = vsel %vm171, %v695, 0.0
    %v713 = vadd.f32 %v711, %v712
    %v714 = vsel %vm171, %v696, 0.0
    %v715 = vadd.f32 %v713, %v714
    %v716 = vsel %vm171, %v697, 0.0
    %v717 = vadd.f32 %v715, %v716
    %v718 = vsel %vm171, %v698, 0.0
    %v719 = vadd.f32 %v717, %v718
    %v720 = vsel %vm171, %v699, 0.0
    %v721 = vadd.f32 %v719, %v720
    %v722 = vsel %vm171, %v700, 0.0
    %v723 = vadd.f32 %v721, %v722
    %v724 = vrot.slane %v723, 4
    %v725 = vadd.f32 %v723, %v724
    %v726 = vrot.slane %v725, 2
    %v727 = vadd.f32 %v725, %v726
    %v728 = vrot.slane %v727, 1
    %v729 = vadd.f32 %v727, %v728
    %v730 = vsel %vm171, %v701, 0.0
    %v731 = vsel %vm171, %v702, 0.0
    %v732 = vadd.f32 %v730, %v731
    %v733 = vsel %vm171, %v703, 0.0
    %v734 = vadd.f32 %v732, %v733
    %v735 = vsel %vm171, %v704, 0.0
    %v736 = vadd.f32 %v734, %v735
    %v737 = vsel %vm171, %v705, 0.0
    %v738 = vadd.f32 %v736, %v737
    %v739 = vsel %vm171, %v706, 0.0
    %v740 = vadd.f32 %v738, %v739
    %v741 = vsel %vm171, %v707, 0.0
    %v742 = vadd.f32 %v740, %v741
    %v743 = vsel %vm171, %v708, 0.0
    %v744 = vadd.f32 %v742, %v743
    %v745 = vrot.slane %v744, 4
    %v746 = vadd.f32 %v744, %v745
    %v747 = vrot.slane %v746, 2
    %v748 = vadd.f32 %v746, %v747
    %v749 = vrot.slane %v748, 1
    %v750 = vadd.f32 %v748, %v749
    %vm753 = vcmask 1041409
    %v754 = vsel %vm753, %v750, %v729
    %755 = vrot.lane.b32.xlu0 %v754, 64
    %v756 = vpop.permute.xlu0 %755
    %v758 = vsel %vm171, %v373, %v756
    %v759 = vpack.c.bf16 %v758, %v758
    %v776 = vunpack.c.l.b16 %v236
    %v777 = vunpack.c.l.b16 %v237
    %v778 = vunpack.c.l.b16 %v238
    %v779 = vunpack.c.l.b16 %v239
    %v780 = vunpack.c.l.b16 %v240
    %v781 = vunpack.c.l.b16 %v241
    %v782 = vunpack.c.l.b16 %v242
    %v783 = vunpack.c.l.b16 %v243
    %v784 = vunpack.c.l.b16 %v244
    %v785 = vunpack.c.l.b16 %v245
    %v786 = vunpack.c.l.b16 %v246
    %v787 = vunpack.c.l.b16 %v247
    %v788 = vunpack.c.l.b16 %v248
    %v789 = vunpack.c.l.b16 %v249
    %v790 = vunpack.c.l.b16 %v250
    %v791 = vunpack.c.l.b16 %v251
    %v792 = vpack.c.b16 %v777, %v776
    %v793 = vpack.c.b16 %v779, %v778
    %v794 = vpack.c.b16 %v781, %v780
    %v795 = vpack.c.b16 %v783, %v782
    %v796 = vpack.c.b16 %v785, %v784
    %v797 = vpack.c.b16 %v787, %v786
    %v798 = vpack.c.b16 %v789, %v788
    %v799 = vpack.c.b16 %v791, %v790
    %808 = vmatprep.subr.bf16.mxu0 0
    %809 = vmatpush1.bf16.msra.mxu0 %v792
    %810 = vmatprep.subr.bf16.mxu0 0
    %811 = vmatpush1.bf16.msra.mxu0 %v793
    %812 = vmatprep.subr.bf16.mxu0 0
    %813 = vmatpush1.bf16.msra.mxu0 %v794
    %814 = vmatprep.subr.bf16.mxu0 0
    %815 = vmatpush1.bf16.msra.mxu0 %v795
    %816 = vmatprep.subr.bf16.mxu0 0
    %817 = vmatpush1.bf16.msra.mxu0 %v796
    %818 = vmatprep.subr.bf16.mxu0 0
    %819 = vmatpush1.bf16.msra.mxu0 %v797
    %820 = vmatprep.subr.bf16.mxu0 0
    %821 = vmatpush1.bf16.msra.mxu0 %v798
    %822 = vmatprep.subr.bf16.mxu0 0
    %823 = vmatpush1.bf16.msra.mxu0 %v799
    %824 = vmatprep.subr.bf16.mxu0 0
    %825 = vmatpush1.bf16.msra.mxu0 0
    %826 = vmatprep.subr.bf16.mxu0 0
    %827 = vmatpush1.bf16.msra.mxu0 0
    %828 = vmatprep.subr.bf16.mxu0 0
    %829 = vmatpush1.bf16.msra.mxu0 0
    %830 = vmatprep.subr.bf16.mxu0 0
    %831 = vmatpush1.bf16.msra.mxu0 0
    %832 = vmatprep.subr.bf16.mxu0 0
    %833 = vmatpush1.bf16.msra.mxu0 0
    %834 = vmatprep.subr.bf16.mxu0 0
    %835 = vmatpush1.bf16.msra.mxu0 0
    %836 = vmatprep.subr.bf16.mxu0 0
    %837 = vmatpush1.bf16.msra.mxu0 0
    %838 = vmatprep.subr.bf16.mxu0 0
    %839 = vmatpush1.bf16.msra.mxu0 0
    %840 = vmatprep.mubr.bf16.mxu0 0
    %841 = vmatmul.mubr.bf16.gmra.mrb[0].mxu0 %v759
    %v842 = vpop.f32.mrb[0].mxu0
    %v843 = vadd.f32 0.0, %v842
    %v844 = vpop.f32.mrb[0].mxu0
    %v845 = vpop.f32.mrb[0].mxu0
    %v846 = vpop.f32.mrb[0].mxu0
    %847 = vdwg.mxu0
    %v848 = vmax.f32 %v843, 0.0
    %v849 = vpack.c.bf16 %v848, %v848
    %v866 = vunpack.c.l.b16 %v252
    %v867 = vunpack.c.l.b16 %v253
    %v868 = vunpack.c.l.b16 %v254
    %v869 = vunpack.c.l.b16 %v255
    %v870 = vunpack.c.l.b16 %v256
    %v871 = vunpack.c.l.b16 %v257
    %v872 = vunpack.c.l.b16 %v258
    %v873 = vunpack.c.l.b16 %v259
    %v874 = vunpack.c.l.b16 %v260
    %v875 = vunpack.c.l.b16 %v261
    %v876 = vunpack.c.l.b16 %v262
    %v877 = vunpack.c.l.b16 %v263
    %v878 = vunpack.c.l.b16 %v264
    %v879 = vunpack.c.l.b16 %v265
    %v880 = vunpack.c.l.b16 %v266
    %v881 = vunpack.c.l.b16 %v267
    %v882 = vpack.c.b16 %v867, %v866
    %v883 = vpack.c.b16 %v869, %v868
    %v884 = vpack.c.b16 %v871, %v870
    %v885 = vpack.c.b16 %v873, %v872
    %v886 = vpack.c.b16 %v875, %v874
    %v887 = vpack.c.b16 %v877, %v876
    %v888 = vpack.c.b16 %v879, %v878
    %v889 = vpack.c.b16 %v881, %v880
    %898 = vmatprep.subr.bf16.mxu0 0
    %899 = vmatpush1.bf16.msra.mxu0 %v882
    %900 = vmatprep.subr.bf16.mxu0 0
    %901 = vmatpush1.bf16.msra.mxu0 %v883
    %902 = vmatprep.subr.bf16.mxu0 0
    %903 = vmatpush1.bf16.msra.mxu0 %v884
    %904 = vmatprep.subr.bf16.mxu0 0
    %905 = vmatpush1.bf16.msra.mxu0 %v885
    %906 = vmatprep.subr.bf16.mxu0 0
    %907 = vmatpush1.bf16.msra.mxu0 %v886
    %908 = vmatprep.subr.bf16.mxu0 0
    %909 = vmatpush1.bf16.msra.mxu0 %v887
    %910 = vmatprep.subr.bf16.mxu0 0
    %911 = vmatpush1.bf16.msra.mxu0 %v888
    %912 = vmatprep.subr.bf16.mxu0 0
    %913 = vmatpush1.bf16.msra.mxu0 %v889
    %914 = vmatprep.subr.bf16.mxu0 0
    %915 = vmatpush1.bf16.msra.mxu0 0
    %916 = vmatprep.subr.bf16.mxu0 0
    %917 = vmatpush1.bf16.msra.mxu0 0
    %918 = vmatprep.subr.bf16.mxu0 0
    %919 = vmatpush1.bf16.msra.mxu0 0
    %920 = vmatprep.subr.bf16.mxu0 0
    %921 = vmatpush1.bf16.msra.mxu0 0
    %922 = vmatprep.subr.bf16.mxu0 0
    %923 = vmatpush1.bf16.msra.mxu0 0
    %924 = vmatprep.subr.bf16.mxu0 0
    %925 = vmatpush1.bf16.msra.mxu0 0
    %926 = vmatprep.subr.bf16.mxu0 0
    %927 = vmatpush1.bf16.msra.mxu0 0
    %928 = vmatprep.subr.bf16.mxu0 0
    %929 = vmatpush1.bf16.msra.mxu0 0
    %930 = vmatprep.mubr.bf16.mxu0 0
    %931 = vmatmul.mubr.bf16.gmra.mrb[0].mxu0 %v849
    %v932 = vpop.f32.mrb[0].mxu0
    %v933 = vadd.f32 0.0, %v932
    %v934 = vpop.f32.mrb[0].mxu0
    %v935 = vpop.f32.mrb[0].mxu0
    %v936 = vpop.f32.mrb[0].mxu0
    %937 = vdwg.mxu0
    %v938 = vsub.f32 0.0, %v933
    %v939 = vmul.f32 %v938, 1.442695
    %v940 = vpow.pop %v939
    %v941 = vadd.f32 %v940, 1.0
    %v942 = vrcp.pop %v941
    %v943 = vmul.f32 %v373, %v942
    %v944 = vpack.c.bf16 %v943, %v943
    %v946 = vsel %vm171, %v944, 0
    %948 = vmatprep.subr.bf16.mxu0 %v295
    %949 = vmatpush1.bf16.msra.mxu0 %v294
    %950 = vmatprep.subr.bf16.mxu0 %v297
    %951 = vmatpush1.bf16.msra.mxu0 %v296
    %952 = vmatprep.subr.bf16.mxu0 %v299
    %953 = vmatpush1.bf16.msra.mxu0 %v298
    %954 = vmatprep.subr.bf16.mxu0 %v301
    %955 = vmatpush1.bf16.msra.mxu0 %v300
    %956 = vmatprep.subr.bf16.mxu0 0
    %957 = vmatpush1.bf16.msra.mxu0 0
    %958 = vmatprep.subr.bf16.mxu0 0
    %959 = vmatpush1.bf16.msra.mxu0 0
    %960 = vmatprep.subr.bf16.mxu0 0
    %961 = vmatpush1.bf16.msra.mxu0 0
    %962 = vmatprep.subr.bf16.mxu0 0
    %963 = vmatpush1.bf16.msra.mxu0 0
    %964 = vmatprep.subr.bf16.mxu0 0
    %965 = vmatpush1.bf16.msra.mxu0 0
    %966 = vmatprep.subr.bf16.mxu0 0
    %967 = vmatpush1.bf16.msra.mxu0 0
    %968 = vmatprep.subr.bf16.mxu0 0
    %969 = vmatpush1.bf16.msra.mxu0 0
    %970 = vmatprep.subr.bf16.mxu0 0
    %971 = vmatpush1.bf16.msra.mxu0 0
    %972 = vmatprep.subr.bf16.mxu0 0
    %973 = vmatpush1.bf16.msra.mxu0 0
    %974 = vmatprep.subr.bf16.mxu0 0
    %975 = vmatpush1.bf16.msra.mxu0 0
    %976 = vmatprep.subr.bf16.mxu0 0
    %977 = vmatpush1.bf16.msra.mxu0 0
    %978 = vmatprep.subr.bf16.mxu0 0
    %979 = vmatpush1.bf16.msra.mxu0 0
    %980 = vmatprep.mubr.bf16.mxu0 0
    %981 = vmatmul.mubr.bf16.gmra.mrb[0].mxu0 %v946
    %v982 = vpop.f32.mrb[0].mxu0
    %v983 = vadd.f32 %v229, %v982
    %v984 = vpop.f32.mrb[0].mxu0
    %v985 = vadd.f32 %v233, %v984
    %v986 = vpop.f32.mrb[0].mxu0
    %v987 = vpop.f32.mrb[0].mxu0
    %988 = vdwg.mxu0
    %v990 = vrot.slane %v983, 6
    %v992 = vadd.f32 %v210, %v990
    %v993 = vsub.f32 0.0, %v992
    %v994 = vmul.f32 %v993, 1.442695
    %v995 = vpow.pop %v994
    %v996 = vadd.f32 %v995, 1.0
    %v997 = vrcp.pop %v996
    %v999 = vrot.slane %v985, 6
    %v1001 = vmul.f32 %v997, %v999
    %v1002 = vadd.f32 %v212, %v1001
    %v1003 = vtanh.pop %v1002
    %v1005 = vrot.slane %v1003, 2
    %v1007 = vsub.f32 %v943, %v1005
    %v1009 = vrot.slane %v1007, 6
    %1010 = vrot.lane.b32.xlu0 %v1009, 64
    %v1011 = vpop.permute.xlu0 %1010
    %v1013 = vmul.f32 %v997, %v1011
    %1015 = vrot.lane.b32.xlu0 %v1013, 64
    %v1016 = vpop.permute.xlu0 %1015
    %v1018 = vadd.f32 %v1003, %v1016
    %v1021 = vunpack.c.l.s4 1966171168
    %v1022 = vunpack.c.0.s8 %v1021
    %v1023 = vlaneseq
    %v1024 = vshrl.u32 %v1023, 7
    %v1025 = vsub.s32 %v1022, %v1024
    %v1026 = vrot.slane %v1018, %v1025
    %v1027 = vcombine.high %v1026, %v1026
    %v1029 = vunpack.c.l.s4 1966171168
    %v1030 = vunpack.c.0.s8 %v1029
    %v1031 = vlaneseq
    %v1032 = vshrl.u32 %v1031, 7
    %v1033 = vsub.s32 %v1030, %v1032
    %v1034 = vrot.slane %v1026, %v1033
    %v1036 = vunpack.c.l.s4 1966171168
    %v1037 = vunpack.c.0.s8 %v1036
    %v1038 = vlaneseq
    %v1039 = vshrl.u32 %v1038, 7
    %v1040 = vsub.s32 %v1037, %v1039
    %v1041 = vrot.slane %v1027, %v1040
    %v1042 = vcombine.high %v1034, %v1034
    %v1043 = vcombine.high %v1041, %v1041
    %v1044 = vlaneseq
    %v1045 = vshrl.u32 %v1044, 7
    %v1046 = vsub.s32 2, %v1045
    %v1047 = vrot.slane %v1018, %v1046
    %1049 = vbcast.lane.b32.xlu0 %v1047, 256
    %v1050 = vpop.permute.xlu0 %1049
    %s1052 = sor.u32 256, 8
    %1053 = vbcast.lane.b32.xlu0 %v1047, %s1052
    %v1054 = vpop.permute.xlu0 %1053
    %s1056 = sor.u32 256, 16
    %1057 = vbcast.lane.b32.xlu0 %v1047, %s1056
    %v1058 = vpop.permute.xlu0 %1057
    %s1060 = sor.u32 256, 24
    %1061 = vbcast.lane.b32.xlu0 %v1047, %s1060
    %v1062 = vpop.permute.xlu0 %1061
    %s1064 = sor.u32 256, 32
    %1065 = vbcast.lane.b32.xlu0 %v1047, %s1064
    %v1066 = vpop.permute.xlu0 %1065
    %s1068 = sor.u32 256, 40
    %1069 = vbcast.lane.b32.xlu0 %v1047, %s1068
    %v1070 = vpop.permute.xlu0 %1069
    %s1072 = sor.u32 256, 48
    %1073 = vbcast.lane.b32.xlu0 %v1047, %s1072
    %v1074 = vpop.permute.xlu0 %1073
    %s1076 = sor.u32 256, 56
    %1077 = vbcast.lane.b32.xlu0 %v1047, %s1076
    %v1078 = vpop.permute.xlu0 %1077
    %v1079 = vlaneseq
    %v1080 = vshrl.u32 %v1079, 7
    %v1081 = vsub.s32 3, %v1080
    %v1082 = vrot.slane %v1018, %v1081
    %1084 = vbcast.lane.b32.xlu0 %v1082, 256
    %v1085 = vpop.permute.xlu0 %1084
    %s1087 = sor.u32 256, 8
    %1088 = vbcast.lane.b32.xlu0 %v1082, %s1087
    %v1089 = vpop.permute.xlu0 %1088
    %s1091 = sor.u32 256, 16
    %1092 = vbcast.lane.b32.xlu0 %v1082, %s1091
    %v1093 = vpop.permute.xlu0 %1092
    %s1095 = sor.u32 256, 24
    %1096 = vbcast.lane.b32.xlu0 %v1082, %s1095
    %v1097 = vpop.permute.xlu0 %1096
    %s1099 = sor.u32 256, 32
    %1100 = vbcast.lane.b32.xlu0 %v1082, %s1099
    %v1101 = vpop.permute.xlu0 %1100
    %s1103 = sor.u32 256, 40
    %1104 = vbcast.lane.b32.xlu0 %v1082, %s1103
    %v1105 = vpop.permute.xlu0 %1104
    %s1107 = sor.u32 256, 48
    %1108 = vbcast.lane.b32.xlu0 %v1082, %s1107
    %v1109 = vpop.permute.xlu0 %1108
    %s1111 = sor.u32 256, 56
    %1112 = vbcast.lane.b32.xlu0 %v1082, %s1111
    %v1113 = vpop.permute.xlu0 %1112
    %v1114 = vlaneseq
    %v1115 = vshrl.u32 %v1114, 7
    %v1116 = vsub.s32 0, %v1115
    %v1117 = vrot.slane %v1042, %v1116
    %v1118 = vlaneseq
    %v1119 = vshrl.u32 %v1118, 7
    %v1120 = vsub.s32 0, %v1119
    %v1121 = vrot.slane %v1043, %v1120
    %vm1124 = vcmp.lt.f32.partialorder %v1117, %v1050
    %vm1125 = vcmp.lt.f32.partialorder %v1117, %v1054
    %vm1126 = vcmp.lt.f32.partialorder %v1117, %v1058
    %vm1127 = vcmp.lt.f32.partialorder %v1117, %v1062
    %vm1128 = vcmp.lt.f32.partialorder %v1117, %v1066
    %vm1129 = vcmp.lt.f32.partialorder %v1117, %v1070
    %vm1130 = vcmp.lt.f32.partialorder %v1117, %v1074
    %vm1131 = vcmp.lt.f32.partialorder %v1117, %v1078
    %vm1132 = vcmp.lt.f32.partialorder %v1121, %v1085
    %vm1133 = vcmp.lt.f32.partialorder %v1121, %v1089
    %vm1134 = vcmp.lt.f32.partialorder %v1121, %v1093
    %vm1135 = vcmp.lt.f32.partialorder %v1121, %v1097
    %vm1136 = vcmp.lt.f32.partialorder %v1121, %v1101
    %vm1137 = vcmp.lt.f32.partialorder %v1121, %v1105
    %vm1138 = vcmp.lt.f32.partialorder %v1121, %v1109
    %vm1139 = vcmp.lt.f32.partialorder %v1121, %v1113
    %vm1140 = vcmp.eq.f32.partialorder %v1117, %v1050
    %vm1141 = vcmp.eq.f32.partialorder %v1117, %v1054
    %vm1142 = vcmp.eq.f32.partialorder %v1117, %v1058
    %vm1143 = vcmp.eq.f32.partialorder %v1117, %v1062
    %vm1144 = vcmp.eq.f32.partialorder %v1117, %v1066
    %vm1145 = vcmp.eq.f32.partialorder %v1117, %v1070
    %vm1146 = vcmp.eq.f32.partialorder %v1117, %v1074
    %vm1147 = vcmp.eq.f32.partialorder %v1117, %v1078
    %vm1148 = vcmp.eq.f32.partialorder %v1121, %v1085
    %vm1149 = vcmp.eq.f32.partialorder %v1121, %v1089
    %vm1150 = vcmp.eq.f32.partialorder %v1121, %v1093
    %vm1151 = vcmp.eq.f32.partialorder %v1121, %v1097
    %vm1152 = vcmp.eq.f32.partialorder %v1121, %v1101
    %vm1153 = vcmp.eq.f32.partialorder %v1121, %v1105
    %vm1154 = vcmp.eq.f32.partialorder %v1121, %v1109
    %vm1155 = vcmp.eq.f32.partialorder %v1121, %v1113
    %vm1156 = vmand %vm1140, %vm525
    %vm1157 = vmand %vm1141, %vm526
    %vm1158 = vmand %vm1142, %vm527
    %vm1159 = vmand %vm1143, %vm528
    %vm1160 = vmand %vm1144, %vm529
    %vm1161 = vmand %vm1145, %vm530
    %vm1162 = vmand %vm1146, %vm531
    %vm1163 = vmand %vm1147, %vm532
    %vm1164 = vmand %vm1148, %vm525
    %vm1165 = vmand %vm1149, %vm526
    %vm1166 = vmand %vm1150, %vm527
    %vm1167 = vmand %vm1151, %vm528
    %vm1168 = vmand %vm1152, %vm529
    %vm1169 = vmand %vm1153, %vm530
    %vm1170 = vmand %vm1154, %vm531
    %vm1171 = vmand %vm1155, %vm532
    %vm1172 = vmor %vm1124, %vm1156
    %vm1173 = vmor %vm1125, %vm1157
    %vm1174 = vmor %vm1126, %vm1158
    %vm1175 = vmor %vm1127, %vm1159
    %vm1176 = vmor %vm1128, %vm1160
    %vm1177 = vmor %vm1129, %vm1161
    %vm1178 = vmor %vm1130, %vm1162
    %vm1179 = vmor %vm1131, %vm1163
    %vm1180 = vmor %vm1132, %vm1164
    %vm1181 = vmor %vm1133, %vm1165
    %vm1182 = vmor %vm1134, %vm1166
    %vm1183 = vmor %vm1135, %vm1167
    %vm1184 = vmor %vm1136, %vm1168
    %vm1185 = vmor %vm1137, %vm1169
    %vm1186 = vmor %vm1138, %vm1170
    %vm1187 = vmor %vm1139, %vm1171
    %v1188 = vsel %vm1172, 1, 0
    %v1189 = vsel %vm1173, 1, 0
    %v1190 = vsel %vm1174, 1, 0
    %v1191 = vsel %vm1175, 1, 0
    %v1192 = vsel %vm1176, 1, 0
    %v1193 = vsel %vm1177, 1, 0
    %v1194 = vsel %vm1178, 1, 0
    %v1195 = vsel %vm1179, 1, 0
    %v1196 = vsel %vm1180, 1, 0
    %v1197 = vsel %vm1181, 1, 0
    %v1198 = vsel %vm1182, 1, 0
    %v1199 = vsel %vm1183, 1, 0
    %v1200 = vsel %vm1184, 1, 0
    %v1201 = vsel %vm1185, 1, 0
    %v1202 = vsel %vm1186, 1, 0
    %v1203 = vsel %vm1187, 1, 0
    %v1204 = vcvt.s32.f32 %v1188
    %v1205 = vcvt.s32.f32 %v1189
    %v1206 = vcvt.s32.f32 %v1190
    %v1207 = vcvt.s32.f32 %v1191
    %v1208 = vcvt.s32.f32 %v1192
    %v1209 = vcvt.s32.f32 %v1193
    %v1210 = vcvt.s32.f32 %v1194
    %v1211 = vcvt.s32.f32 %v1195
    %v1212 = vcvt.s32.f32 %v1196
    %v1213 = vcvt.s32.f32 %v1197
    %v1214 = vcvt.s32.f32 %v1198
    %v1215 = vcvt.s32.f32 %v1199
    %v1216 = vcvt.s32.f32 %v1200
    %v1217 = vcvt.s32.f32 %v1201
    %v1218 = vcvt.s32.f32 %v1202
    %v1219 = vcvt.s32.f32 %v1203
    %v1220 = vsel %vm171, %v1204, 0.0
    %1221 = vadd.xlane.f32.xlu0 %v1220
    %v1222 = vpop.xlane.xlu0 %1221
    %v1223 = vsel %vm171, %v1205, 0.0
    %1224 = vadd.xlane.f32.xlu0 %v1223
    %v1225 = vpop.xlane.xlu0 %1224
    %v1226 = vsel %vm171, %v1206, 0.0
    %1227 = vadd.xlane.f32.xlu0 %v1226
    %v1228 = vpop.xlane.xlu0 %1227
    %v1229 = vsel %vm171, %v1207, 0.0
    %1230 = vadd.xlane.f32.xlu0 %v1229
    %v1231 = vpop.xlane.xlu0 %1230
    %v1232 = vsel %vm171, %v1208, 0.0
    %1233 = vadd.xlane.f32.xlu0 %v1232
    %v1234 = vpop.xlane.xlu0 %1233
    %v1235 = vsel %vm171, %v1209, 0.0
    %1236 = vadd.xlane.f32.xlu0 %v1235
    %v1237 = vpop.xlane.xlu0 %1236
    %v1238 = vsel %vm171, %v1210, 0.0
    %1239 = vadd.xlane.f32.xlu0 %v1238
    %v1240 = vpop.xlane.xlu0 %1239
    %v1241 = vsel %vm171, %v1211, 0.0
    %1242 = vadd.xlane.f32.xlu0 %v1241
    %v1243 = vpop.xlane.xlu0 %1242
    %v1244 = vsel %vm171, %v1212, 0.0
    %1245 = vadd.xlane.f32.xlu0 %v1244
    %v1246 = vpop.xlane.xlu0 %1245
    %v1247 = vsel %vm171, %v1213, 0.0
    %1248 = vadd.xlane.f32.xlu0 %v1247
    %v1249 = vpop.xlane.xlu0 %1248
    %v1250 = vsel %vm171, %v1214, 0.0
    %1251 = vadd.xlane.f32.xlu0 %v1250
    %v1252 = vpop.xlane.xlu0 %1251
    %v1253 = vsel %vm171, %v1215, 0.0
    %1254 = vadd.xlane.f32.xlu0 %v1253
    %v1255 = vpop.xlane.xlu0 %1254
    %v1256 = vsel %vm171, %v1216, 0.0
    %1257 = vadd.xlane.f32.xlu0 %v1256
    %v1258 = vpop.xlane.xlu0 %1257
    %v1259 = vsel %vm171, %v1217, 0.0
    %1260 = vadd.xlane.f32.xlu0 %v1259
    %v1261 = vpop.xlane.xlu0 %1260
    %v1262 = vsel %vm171, %v1218, 0.0
    %1263 = vadd.xlane.f32.xlu0 %v1262
    %v1264 = vpop.xlane.xlu0 %1263
    %v1265 = vsel %vm171, %v1219, 0.0
    %1266 = vadd.xlane.f32.xlu0 %v1265
    %v1267 = vpop.xlane.xlu0 %1266
    %vm1268 = vcmp.eq.f32.partialorder %v1222, %v108
    %vm1269 = vcmp.eq.f32.partialorder %v1225, %v108
    %vm1270 = vcmp.eq.f32.partialorder %v1228, %v108
    %vm1271 = vcmp.eq.f32.partialorder %v1231, %v108
    %vm1272 = vcmp.eq.f32.partialorder %v1234, %v108
    %vm1273 = vcmp.eq.f32.partialorder %v1237, %v108
    %vm1274 = vcmp.eq.f32.partialorder %v1240, %v108
    %vm1275 = vcmp.eq.f32.partialorder %v1243, %v108
    %vm1276 = vcmp.eq.f32.partialorder %v1246, %v108
    %vm1277 = vcmp.eq.f32.partialorder %v1249, %v108
    %vm1278 = vcmp.eq.f32.partialorder %v1252, %v108
    %vm1279 = vcmp.eq.f32.partialorder %v1255, %v108
    %vm1280 = vcmp.eq.f32.partialorder %v1258, %v108
    %vm1281 = vcmp.eq.f32.partialorder %v1261, %v108
    %vm1282 = vcmp.eq.f32.partialorder %v1264, %v108
    %vm1283 = vcmp.eq.f32.partialorder %v1267, %v108
    %v1284 = vsel %vm1268, 1, 0
    %v1285 = vsel %vm1269, 1, 0
    %v1286 = vsel %vm1270, 1, 0
    %v1287 = vsel %vm1271, 1, 0
    %v1288 = vsel %vm1272, 1, 0
    %v1289 = vsel %vm1273, 1, 0
    %v1290 = vsel %vm1274, 1, 0
    %v1291 = vsel %vm1275, 1, 0
    %v1292 = vsel %vm1276, 1, 0
    %v1293 = vsel %vm1277, 1, 0
    %v1294 = vsel %vm1278, 1, 0
    %v1295 = vsel %vm1279, 1, 0
    %v1296 = vsel %vm1280, 1, 0
    %v1297 = vsel %vm1281, 1, 0
    %v1298 = vsel %vm1282, 1, 0
    %v1299 = vsel %vm1283, 1, 0
    %v1300 = vcvt.s32.f32 %v1284
    %v1301 = vcvt.s32.f32 %v1285
    %v1302 = vcvt.s32.f32 %v1286
    %v1303 = vcvt.s32.f32 %v1287
    %v1304 = vcvt.s32.f32 %v1288
    %v1305 = vcvt.s32.f32 %v1289
    %v1306 = vcvt.s32.f32 %v1290
    %v1307 = vcvt.s32.f32 %v1291
    %v1308 = vcvt.s32.f32 %v1292
    %v1309 = vcvt.s32.f32 %v1293
    %v1310 = vcvt.s32.f32 %v1294
    %v1311 = vcvt.s32.f32 %v1295
    %v1312 = vcvt.s32.f32 %v1296
    %v1313 = vcvt.s32.f32 %v1297
    %v1314 = vcvt.s32.f32 %v1298
    %v1315 = vcvt.s32.f32 %v1299
    %v1316 = vmul.f32 %v1300, %v1050
    %v1317 = vmul.f32 %v1301, %v1054
    %v1318 = vmul.f32 %v1302, %v1058
    %v1319 = vmul.f32 %v1303, %v1062
    %v1320 = vmul.f32 %v1304, %v1066
    %v1321 = vmul.f32 %v1305, %v1070
    %v1322 = vmul.f32 %v1306, %v1074
    %v1323 = vmul.f32 %v1307, %v1078
    %v1324 = vmul.f32 %v1308, %v1085
    %v1325 = vmul.f32 %v1309, %v1089
    %v1326 = vmul.f32 %v1310, %v1093
    %v1327 = vmul.f32 %v1311, %v1097
    %v1328 = vmul.f32 %v1312, %v1101
    %v1329 = vmul.f32 %v1313, %v1105
    %v1330 = vmul.f32 %v1314, %v1109
    %v1331 = vmul.f32 %v1315, %v1113
    %v1332 = vsel %vm171, %v1316, 0.0
    %v1333 = vsel %vm171, %v1317, 0.0
    %v1334 = vadd.f32 %v1332, %v1333
    %v1335 = vsel %vm171, %v1318, 0.0
    %v1336 = vadd.f32 %v1334, %v1335
    %v1337 = vsel %vm171, %v1319, 0.0
    %v1338 = vadd.f32 %v1336, %v1337
    %v1339 = vsel %vm171, %v1320, 0.0
    %v1340 = vadd.f32 %v1338, %v1339
    %v1341 = vsel %vm171, %v1321, 0.0
    %v1342 = vadd.f32 %v1340, %v1341
    %v1343 = vsel %vm171, %v1322, 0.0
    %v1344 = vadd.f32 %v1342, %v1343
    %v1345 = vsel %vm171, %v1323, 0.0
    %v1346 = vadd.f32 %v1344, %v1345
    %v1347 = vrot.slane %v1346, 4
    %v1348 = vadd.f32 %v1346, %v1347
    %v1349 = vrot.slane %v1348, 2
    %v1350 = vadd.f32 %v1348, %v1349
    %v1351 = vrot.slane %v1350, 1
    %v1352 = vadd.f32 %v1350, %v1351
    %v1353 = vsel %vm171, %v1324, 0.0
    %v1354 = vsel %vm171, %v1325, 0.0
    %v1355 = vadd.f32 %v1353, %v1354
    %v1356 = vsel %vm171, %v1326, 0.0
    %v1357 = vadd.f32 %v1355, %v1356
    %v1358 = vsel %vm171, %v1327, 0.0
    %v1359 = vadd.f32 %v1357, %v1358
    %v1360 = vsel %vm171, %v1328, 0.0
    %v1361 = vadd.f32 %v1359, %v1360
    %v1362 = vsel %vm171, %v1329, 0.0
    %v1363 = vadd.f32 %v1361, %v1362
    %v1364 = vsel %vm171, %v1330, 0.0
    %v1365 = vadd.f32 %v1363, %v1364
    %v1366 = vsel %vm171, %v1331, 0.0
    %v1367 = vadd.f32 %v1365, %v1366
    %v1368 = vrot.slane %v1367, 4
    %v1369 = vadd.f32 %v1367, %v1368
    %v1370 = vrot.slane %v1369, 2
    %v1371 = vadd.f32 %v1369, %v1370
    %v1372 = vrot.slane %v1371, 1
    %v1373 = vadd.f32 %v1371, %v1372
    %vm1376 = vcmask 1043459
    %v1377 = vsel %vm1376, %v1373, %v1352
    %1378 = vrot.lane.b32.xlu0 %v1377, 64
    %v1379 = vpop.permute.xlu0 %1378
    %v1381 = vsel %vm171, %v1018, %v1379
    %v1382 = vpack.c.bf16 %v1381, %v1381
    %v1384 = vrot.slane %v1382, 1
    %1386 = vmatprep.subr.bf16.mxu0 0
    %1387 = vmatpush1.bf16.msra.mxu0 %v792
    %1388 = vmatprep.subr.bf16.mxu0 0
    %1389 = vmatpush1.bf16.msra.mxu0 %v793
    %1390 = vmatprep.subr.bf16.mxu0 0
    %1391 = vmatpush1.bf16.msra.mxu0 %v794
    %1392 = vmatprep.subr.bf16.mxu0 0
    %1393 = vmatpush1.bf16.msra.mxu0 %v795
    %1394 = vmatprep.subr.bf16.mxu0 0
    %1395 = vmatpush1.bf16.msra.mxu0 %v796
    %1396 = vmatprep.subr.bf16.mxu0 0
    %1397 = vmatpush1.bf16.msra.mxu0 %v797
    %1398 = vmatprep.subr.bf16.mxu0 0
    %1399 = vmatpush1.bf16.msra.mxu0 %v798
    %1400 = vmatprep.subr.bf16.mxu0 0
    %1401 = vmatpush1.bf16.msra.mxu0 %v799
    %1402 = vmatprep.subr.bf16.mxu0 0
    %1403 = vmatpush1.bf16.msra.mxu0 0
    %1404 = vmatprep.subr.bf16.mxu0 0
    %1405 = vmatpush1.bf16.msra.mxu0 0
    %1406 = vmatprep.subr.bf16.mxu0 0
    %1407 = vmatpush1.bf16.msra.mxu0 0
    %1408 = vmatprep.subr.bf16.mxu0 0
    %1409 = vmatpush1.bf16.msra.mxu0 0
    %1410 = vmatprep.subr.bf16.mxu0 0
    %1411 = vmatpush1.bf16.msra.mxu0 0
    %1412 = vmatprep.subr.bf16.mxu0 0
    %1413 = vmatpush1.bf16.msra.mxu0 0
    %1414 = vmatprep.subr.bf16.mxu0 0
    %1415 = vmatpush1.bf16.msra.mxu0 0
    %1416 = vmatprep.subr.bf16.mxu0 0
    %1417 = vmatpush1.bf16.msra.mxu0 0
    %1418 = vmatprep.mubr.bf16.mxu0 0
    %1419 = vmatmul.mubr.bf16.gmra.mrb[0].mxu0 %v1384
    %v1420 = vpop.f32.mrb[0].mxu0
    %v1421 = vadd.f32 0.0, %v1420
    %v1422 = vpop.f32.mrb[0].mxu0
    %v1423 = vpop.f32.mrb[0].mxu0
    %v1424 = vpop.f32.mrb[0].mxu0
    %1425 = vdwg.mxu0
    %v1426 = vmax.f32 %v1421, 0.0
    %v1427 = vpack.c.bf16 %v1426, %v1426
    %1428 = vmatprep.subr.bf16.mxu0 0
    %1429 = vmatpush1.bf16.msra.mxu0 %v882
    %1430 = vmatprep.subr.bf16.mxu0 0
    %1431 = vmatpush1.bf16.msra.mxu0 %v883
    %1432 = vmatprep.subr.bf16.mxu0 0
    %1433 = vmatpush1.bf16.msra.mxu0 %v884
    %1434 = vmatprep.subr.bf16.mxu0 0
    %1435 = vmatpush1.bf16.msra.mxu0 %v885
    %1436 = vmatprep.subr.bf16.mxu0 0
    %1437 = vmatpush1.bf16.msra.mxu0 %v886
    %1438 = vmatprep.subr.bf16.mxu0 0
    %1439 = vmatpush1.bf16.msra.mxu0 %v887
    %1440 = vmatprep.subr.bf16.mxu0 0
    %1441 = vmatpush1.bf16.msra.mxu0 %v888
    %1442 = vmatprep.subr.bf16.mxu0 0
    %1443 = vmatpush1.bf16.msra.mxu0 %v889
    %1444 = vmatprep.subr.bf16.mxu0 0
    %1445 = vmatpush1.bf16.msra.mxu0 0
    %1446 = vmatprep.subr.bf16.mxu0 0
    %1447 = vmatpush1.bf16.msra.mxu0 0
    %1448 = vmatprep.subr.bf16.mxu0 0
    %1449 = vmatpush1.bf16.msra.mxu0 0
    %1450 = vmatprep.subr.bf16.mxu0 0
    %1451 = vmatpush1.bf16.msra.mxu0 0
    %1452 = vmatprep.subr.bf16.mxu0 0
    %1453 = vmatpush1.bf16.msra.mxu0 0
    %1454 = vmatprep.subr.bf16.mxu0 0
    %1455 = vmatpush1.bf16.msra.mxu0 0
    %1456 = vmatprep.subr.bf16.mxu0 0
    %1457 = vmatpush1.bf16.msra.mxu0 0
    %1458 = vmatprep.subr.bf16.mxu0 0
    %1459 = vmatpush1.bf16.msra.mxu0 0
    %1460 = vmatprep.mubr.bf16.mxu0 0
    %1461 = vmatmul.mubr.bf16.gmra.mrb[0].mxu0 %v1427
    %v1462 = vpop.f32.mrb[0].mxu0
    %v1463 = vadd.f32 0.0, %v1462
    %v1464 = vpop.f32.mrb[0].mxu0
    %v1465 = vpop.f32.mrb[0].mxu0
    %v1466 = vpop.f32.mrb[0].mxu0
    %1467 = vdwg.mxu0
    %v1468 = vsub.f32 0.0, %v1463
    %v1469 = vmul.f32 %v1468, 1.442695
    %v1470 = vpow.pop %v1469
    %v1471 = vadd.f32 %v1470, 1.0
    %v1472 = vrcp.pop %v1471
    %v1474 = vrot.slane %v1472, 6
    %v1476 = vmul.f32 %v1018, %v1474
    %v1477 = vpack.c.bf16 %v1476, %v1476
    %v1479 = vrot.slane %v1477, 1
    %v1481 = vsel %vm171, %v1479, 0
    %1483 = vmatprep.subr.bf16.mxu0 %v295
    %1484 = vmatpush1.bf16.msra.mxu0 %v294
    %1485 = vmatprep.subr.bf16.mxu0 %v297
    %1486 = vmatpush1.bf16.msra.mxu0 %v296
    %1487 = vmatprep.subr.bf16.mxu0 %v299
    %1488 = vmatpush1.bf16.msra.mxu0 %v298
    %1489 = vmatprep.subr.bf16.mxu0 %v301
    %1490 = vmatpush1.bf16.msra.mxu0 %v300
    %1491 = vmatprep.subr.bf16.mxu0 0
    %1492 = vmatpush1.bf16.msra.mxu0 0
    %1493 = vmatprep.subr.bf16.mxu0 0
    %1494 = vmatpush1.bf16.msra.mxu0 0
    %1495 = vmatprep.subr.bf16.mxu0 0
    %1496 = vmatpush1.bf16.msra.mxu0 0
    %1497 = vmatprep.subr.bf16.mxu0 0
    %1498 = vmatpush1.bf16.msra.mxu0 0
    %1499 = vmatprep.subr.bf16.mxu0 0
    %1500 = vmatpush1.bf16.msra.mxu0 0
    %1501 = vmatprep.subr.bf16.mxu0 0
    %1502 = vmatpush1.bf16.msra.mxu0 0
    %1503 = vmatprep.subr.bf16.mxu0 0
    %1504 = vmatpush1.bf16.msra.mxu0 0
    %1505 = vmatprep.subr.bf16.mxu0 0
    %1506 = vmatpush1.bf16.msra.mxu0 0
    %1507 = vmatprep.subr.bf16.mxu0 0
    %1508 = vmatpush1.bf16.msra.mxu0 0
    %1509 = vmatprep.subr.bf16.mxu0 0
    %1510 = vmatpush1.bf16.msra.mxu0 0
    %1511 = vmatprep.subr.bf16.mxu0 0
    %1512 = vmatpush1.bf16.msra.mxu0 0
    %1513 = vmatprep.subr.bf16.mxu0 0
    %1514 = vmatpush1.bf16.msra.mxu0 0
    %1515 = vmatprep.mubr.bf16.mxu0 0
    %1516 = vmatmul.mubr.bf16.gmra.mrb[0].mxu0 %v1481
    %v1517 = vpop.f32.mrb[0].mxu0
    %v1518 = vadd.f32 %v229, %v1517
    %v1519 = vpop.f32.mrb[0].mxu0
    %v1520 = vadd.f32 %v233, %v1519
    %v1521 = vpop.f32.mrb[0].mxu0
    %v1522 = vpop.f32.mrb[0].mxu0
    %1523 = vdwg.mxu0
    %v1525 = vrot.slane %v1518, 4
    %v1527 = vadd.f32 %v210, %v1525
    %v1528 = vsub.f32 0.0, %v1527
    %v1529 = vmul.f32 %v1528, 1.442695
    %v1530 = vpow.pop %v1529
    %v1531 = vadd.f32 %v1530, 1.0
    %v1532 = vrcp.pop %v1531
    %v1534 = vrot.slane %v1520, 4
    %v1536 = vmul.f32 %v1532, %v1534
    %v1537 = vadd.f32 %v212, %v1536
    %v1538 = vtanh.pop %v1537
    %v1540 = vrot.slane %v1538, 2
    %v1542 = vsub.f32 %v1476, %v1540
    %v1544 = vrot.slane %v1542, 6
    %1545 = vrot.lane.b32.xlu0 %v1544, 64
    %v1546 = vpop.permute.xlu0 %1545
    %v1548 = vmul.f32 %v1532, %v1546
    %1550 = vrot.lane.b32.xlu0 %v1548, 64
    %v1551 = vpop.permute.xlu0 %1550
    %v1553 = vadd.f32 %v1538, %v1551
    %v1555 = vcombine.high %v1553, %v1553
    %v1557 = vunpack.c.l.s4 1966171168
    %v1558 = vunpack.c.0.s8 %v1557
    %v1559 = vlaneseq
    %v1560 = vshrl.u32 %v1559, 7
    %v1561 = vsub.s32 %v1558, %v1560
    %v1562 = vrot.slane %v1555, %v1561
    %v1563 = vcombine.high %v1562, %v1562
    %v1565 = vunpack.c.l.s4 1966171168
    %v1566 = vunpack.c.0.s8 %v1565
    %v1567 = vlaneseq
    %v1568 = vshrl.u32 %v1567, 7
    %v1569 = vsub.s32 %v1566, %v1568
    %v1570 = vrot.slane %v1562, %v1569
    %v1572 = vunpack.c.l.s4 1966171168
    %v1573 = vunpack.c.0.s8 %v1572
    %v1574 = vlaneseq
    %v1575 = vshrl.u32 %v1574, 7
    %v1576 = vsub.s32 %v1573, %v1575
    %v1577 = vrot.slane %v1563, %v1576
    %v1578 = vlaneseq
    %v1579 = vshrl.u32 %v1578, 7
    %v1580 = vsub.s32 4, %v1579
    %v1581 = vrot.slane %v1553, %v1580
    %1583 = vbcast.lane.b32.xlu0 %v1581, 256
    %v1584 = vpop.permute.xlu0 %1583
    %s1586 = sor.u32 256, 8
    %1587 = vbcast.lane.b32.xlu0 %v1581, %s1586
    %v1588 = vpop.permute.xlu0 %1587
    %s1590 = sor.u32 256, 16
    %1591 = vbcast.lane.b32.xlu0 %v1581, %s1590
    %v1592 = vpop.permute.xlu0 %1591
    %s1594 = sor.u32 256, 24
    %1595 = vbcast.lane.b32.xlu0 %v1581, %s1594
    %v1596 = vpop.permute.xlu0 %1595
    %s1598 = sor.u32 256, 32
    %1599 = vbcast.lane.b32.xlu0 %v1581, %s1598
    %v1600 = vpop.permute.xlu0 %1599
    %s1602 = sor.u32 256, 40
    %1603 = vbcast.lane.b32.xlu0 %v1581, %s1602
    %v1604 = vpop.permute.xlu0 %1603
    %s1606 = sor.u32 256, 48
    %1607 = vbcast.lane.b32.xlu0 %v1581, %s1606
    %v1608 = vpop.permute.xlu0 %1607
    %s1610 = sor.u32 256, 56
    %1611 = vbcast.lane.b32.xlu0 %v1581, %s1610
    %v1612 = vpop.permute.xlu0 %1611
    %v1613 = vlaneseq
    %v1614 = vshrl.u32 %v1613, 7
    %v1615 = vsub.s32 5, %v1614
    %v1616 = vrot.slane %v1553, %v1615
    %1618 = vbcast.lane.b32.xlu0 %v1616, 256
    %v1619 = vpop.permute.xlu0 %1618
    %s1621 = sor.u32 256, 8
    %1622 = vbcast.lane.b32.xlu0 %v1616, %s1621
    %v1623 = vpop.permute.xlu0 %1622
    %s1625 = sor.u32 256, 16
    %1626 = vbcast.lane.b32.xlu0 %v1616, %s1625
    %v1627 = vpop.permute.xlu0 %1626
    %s1629 = sor.u32 256, 24
    %1630 = vbcast.lane.b32.xlu0 %v1616, %s1629
    %v1631 = vpop.permute.xlu0 %1630
    %s1633 = sor.u32 256, 32
    %1634 = vbcast.lane.b32.xlu0 %v1616, %s1633
    %v1635 = vpop.permute.xlu0 %1634
    %s1637 = sor.u32 256, 40
    %1638 = vbcast.lane.b32.xlu0 %v1616, %s1637
    %v1639 = vpop.permute.xlu0 %1638
    %s1641 = sor.u32 256, 48
    %1642 = vbcast.lane.b32.xlu0 %v1616, %s1641
    %v1643 = vpop.permute.xlu0 %1642
    %s1645 = sor.u32 256, 56
    %1646 = vbcast.lane.b32.xlu0 %v1616, %s1645
    %v1647 = vpop.permute.xlu0 %1646
    %v1648 = vlaneseq
    %v1649 = vshrl.u32 %v1648, 7
    %v1650 = vsub.s32 0, %v1649
    %v1651 = vrot.slane %v1570, %v1650
    %v1652 = vlaneseq
    %v1653 = vshrl.u32 %v1652, 7
    %v1654 = vsub.s32 0, %v1653
    %v1655 = vrot.slane %v1577, %v1654
    %vm1658 = vcmp.lt.f32.partialorder %v1651, %v1584
    %vm1659 = vcmp.lt.f32.partialorder %v1651, %v1588
    %vm1660 = vcmp.lt.f32.partialorder %v1651, %v1592
    %vm1661 = vcmp.lt.f32.partialorder %v1651, %v1596
    %vm1662 = vcmp.lt.f32.partialorder %v1651, %v1600
    %vm1663 = vcmp.lt.f32.partialorder %v1651, %v1604
    %vm1664 = vcmp.lt.f32.partialorder %v1651, %v1608
    %vm1665 = vcmp.lt.f32.partialorder %v1651, %v1612
    %vm1666 = vcmp.lt.f32.partialorder %v1655, %v1619
    %vm1667 = vcmp.lt.f32.partialorder %v1655, %v1623
    %vm1668 = vcmp.lt.f32.partialorder %v1655, %v1627
    %vm1669 = vcmp.lt.f32.partialorder %v1655, %v1631
    %vm1670 = vcmp.lt.f32.partialorder %v1655, %v1635
    %vm1671 = vcmp.lt.f32.partialorder %v1655, %v1639
    %vm1672 = vcmp.lt.f32.partialorder %v1655, %v1643
    %vm1673 = vcmp.lt.f32.partialorder %v1655, %v1647
    %vm1674 = vcmp.eq.f32.partialorder %v1651, %v1584
    %vm1675 = vcmp.eq.f32.partialorder %v1651, %v1588
    %vm1676 = vcmp.eq.f32.partialorder %v1651, %v1592
    %vm1677 = vcmp.eq.f32.partialorder %v1651, %v1596
    %vm1678 = vcmp.eq.f32.partialorder %v1651, %v1600
    %vm1679 = vcmp.eq.f32.partialorder %v1651, %v1604
    %vm1680 = vcmp.eq.f32.partialorder %v1651, %v1608
    %vm1681 = vcmp.eq.f32.partialorder %v1651, %v1612
    %vm1682 = vcmp.eq.f32.partialorder %v1655, %v1619
    %vm1683 = vcmp.eq.f32.partialorder %v1655, %v1623
    %vm1684 = vcmp.eq.f32.partialorder %v1655, %v1627
    %vm1685 = vcmp.eq.f32.partialorder %v1655, %v1631
    %vm1686 = vcmp.eq.f32.partialorder %v1655, %v1635
    %vm1687 = vcmp.eq.f32.partialorder %v1655, %v1639
    %vm1688 = vcmp.eq.f32.partialorder %v1655, %v1643
    %vm1689 = vcmp.eq.f32.partialorder %v1655, %v1647
    %vm1690 = vmand %vm1674, %vm525
    %vm1691 = vmand %vm1675, %vm526
    %vm1692 = vmand %vm1676, %vm527
    %vm1693 = vmand %vm1677, %vm528
    %vm1694 = vmand %vm1678, %vm529
    %vm1695 = vmand %vm1679, %vm530
    %vm1696 = vmand %vm1680, %vm531
    %vm1697 = vmand %vm1681, %vm532
    %vm1698 = vmand %vm1682, %vm525
    %vm1699 = vmand %vm1683, %vm526
    %vm1700 = vmand %vm1684, %vm527
    %vm1701 = vmand %vm1685, %vm528
    %vm1702 = vmand %vm1686, %vm529
    %vm1703 = vmand %vm1687, %vm530
    %vm1704 = vmand %vm1688, %vm531
    %vm1705 = vmand %vm1689, %vm532
    %vm1706 = vmor %vm1658, %vm1690
    %vm1707 = vmor %vm1659, %vm1691
    %vm1708 = vmor %vm1660, %vm1692
    %vm1709 = vmor %vm1661, %vm1693
    %vm1710 = vmor %vm1662, %vm1694
    %vm1711 = vmor %vm1663, %vm1695
    %vm1712 = vmor %vm1664, %vm1696
    %vm1713 = vmor %vm1665, %vm1697
    %vm1714 = vmor %vm1666, %vm1698
    %vm1715 = vmor %vm1667, %vm1699
    %vm1716 = vmor %vm1668, %vm1700
    %vm1717 = vmor %vm1669, %vm1701
    %vm1718 = vmor %vm1670, %vm1702
    %vm1719 = vmor %vm1671, %vm1703
    %vm1720 = vmor %vm1672, %vm1704
    %vm1721 = vmor %vm1673, %vm1705
    %v1722 = vsel %vm1706, 1, 0
    %v1723 = vsel %vm1707, 1, 0
    %v1724 = vsel %vm1708, 1, 0
    %v1725 = vsel %vm1709, 1, 0
    %v1726 = vsel %vm1710, 1, 0
    %v1727 = vsel %vm1711, 1, 0
    %v1728 = vsel %vm1712, 1, 0
    %v1729 = vsel %vm1713, 1, 0
    %v1730 = vsel %vm1714, 1, 0
    %v1731 = vsel %vm1715, 1, 0
    %v1732 = vsel %vm1716, 1, 0
    %v1733 = vsel %vm1717, 1, 0
    %v1734 = vsel %vm1718, 1, 0
    %v1735 = vsel %vm1719, 1, 0
    %v1736 = vsel %vm1720, 1, 0
    %v1737 = vsel %vm1721, 1, 0
    %v1738 = vcvt.s32.f32 %v1722
    %v1739 = vcvt.s32.f32 %v1723
    %v1740 = vcvt.s32.f32 %v1724
    %v1741 = vcvt.s32.f32 %v1725
    %v1742 = vcvt.s32.f32 %v1726
    %v1743 = vcvt.s32.f32 %v1727
    %v1744 = vcvt.s32.f32 %v1728
    %v1745 = vcvt.s32.f32 %v1729
    %v1746 = vcvt.s32.f32 %v1730
    %v1747 = vcvt.s32.f32 %v1731
    %v1748 = vcvt.s32.f32 %v1732
    %v1749 = vcvt.s32.f32 %v1733
    %v1750 = vcvt.s32.f32 %v1734
    %v1751 = vcvt.s32.f32 %v1735
    %v1752 = vcvt.s32.f32 %v1736
    %v1753 = vcvt.s32.f32 %v1737
    %v1754 = vsel %vm171, %v1738, 0.0
    %1755 = vadd.xlane.f32.xlu0 %v1754
    %v1756 = vpop.xlane.xlu0 %1755
    %v1757 = vsel %vm171, %v1739, 0.0
    %1758 = vadd.xlane.f32.xlu0 %v1757
    %v1759 = vpop.xlane.xlu0 %1758
    %v1760 = vsel %vm171, %v1740, 0.0
    %1761 = vadd.xlane.f32.xlu0 %v1760
    %v1762 = vpop.xlane.xlu0 %1761
    %v1763 = vsel %vm171, %v1741, 0.0
    %1764 = vadd.xlane.f32.xlu0 %v1763
    %v1765 = vpop.xlane.xlu0 %1764
    %v1766 = vsel %vm171, %v1742, 0.0
    %1767 = vadd.xlane.f32.xlu0 %v1766
    %v1768 = vpop.xlane.xlu0 %1767
    %v1769 = vsel %vm171, %v1743, 0.0
    %1770 = vadd.xlane.f32.xlu0 %v1769
    %v1771 = vpop.xlane.xlu0 %1770
    %v1772 = vsel %vm171, %v1744, 0.0
    %1773 = vadd.xlane.f32.xlu0 %v1772
    %v1774 = vpop.xlane.xlu0 %1773
    %v1775 = vsel %vm171, %v1745, 0.0
    %1776 = vadd.xlane.f32.xlu0 %v1775
    %v1777 = vpop.xlane.xlu0 %1776
    %v1778 = vsel %vm171, %v1746, 0.0
    %1779 = vadd.xlane.f32.xlu0 %v1778
    %v1780 = vpop.xlane.xlu0 %1779
    %v1781 = vsel %vm171, %v1747, 0.0
    %1782 = vadd.xlane.f32.xlu0 %v1781
    %v1783 = vpop.xlane.xlu0 %1782
    %v1784 = vsel %vm171, %v1748, 0.0
    %1785 = vadd.xlane.f32.xlu0 %v1784
    %v1786 = vpop.xlane.xlu0 %1785
    %v1787 = vsel %vm171, %v1749, 0.0
    %1788 = vadd.xlane.f32.xlu0 %v1787
    %v1789 = vpop.xlane.xlu0 %1788
    %v1790 = vsel %vm171, %v1750, 0.0
    %1791 = vadd.xlane.f32.xlu0 %v1790
    %v1792 = vpop.xlane.xlu0 %1791
    %v1793 = vsel %vm171, %v1751, 0.0
    %1794 = vadd.xlane.f32.xlu0 %v1793
    %v1795 = vpop.xlane.xlu0 %1794
    %v1796 = vsel %vm171, %v1752, 0.0
    %1797 = vadd.xlane.f32.xlu0 %v1796
    %v1798 = vpop.xlane.xlu0 %1797
    %v1799 = vsel %vm171, %v1753, 0.0
    %1800 = vadd.xlane.f32.xlu0 %v1799
    %v1801 = vpop.xlane.xlu0 %1800
    %vm1802 = vcmp.eq.f32.partialorder %v1756, %v108
    %vm1803 = vcmp.eq.f32.partialorder %v1759, %v108
    %vm1804 = vcmp.eq.f32.partialorder %v1762, %v108
    %vm1805 = vcmp.eq.f32.partialorder %v1765, %v108
    %vm1806 = vcmp.eq.f32.partialorder %v1768, %v108
    %vm1807 = vcmp.eq.f32.partialorder %v1771, %v108
    %vm1808 = vcmp.eq.f32.partialorder %v1774, %v108
    %vm1809 = vcmp.eq.f32.partialorder %v1777, %v108
    %vm1810 = vcmp.eq.f32.partialorder %v1780, %v108
    %vm1811 = vcmp.eq.f32.partialorder %v1783, %v108
    %vm1812 = vcmp.eq.f32.partialorder %v1786, %v108
    %vm1813 = vcmp.eq.f32.partialorder %v1789, %v108
    %vm1814 = vcmp.eq.f32.partialorder %v1792, %v108
    %vm1815 = vcmp.eq.f32.partialorder %v1795, %v108
    %vm1816 = vcmp.eq.f32.partialorder %v1798, %v108
    %vm1817 = vcmp.eq.f32.partialorder %v1801, %v108
    %v1818 = vsel %vm1802, 1, 0
    %v1819 = vsel %vm1803, 1, 0
    %v1820 = vsel %vm1804, 1, 0
    %v1821 = vsel %vm1805, 1, 0
    %v1822 = vsel %vm1806, 1, 0
    %v1823 = vsel %vm1807, 1, 0
    %v1824 = vsel %vm1808, 1, 0
    %v1825 = vsel %vm1809, 1, 0
    %v1826 = vsel %vm1810, 1, 0
    %v1827 = vsel %vm1811, 1, 0
    %v1828 = vsel %vm1812, 1, 0
    %v1829 = vsel %vm1813, 1, 0
    %v1830 = vsel %vm1814, 1, 0
    %v1831 = vsel %vm1815, 1, 0
    %v1832 = vsel %vm1816, 1, 0
    %v1833 = vsel %vm1817, 1, 0
    %v1834 = vcvt.s32.f32 %v1818
    %v1835 = vcvt.s32.f32 %v1819
    %v1836 = vcvt.s32.f32 %v1820
    %v1837 = vcvt.s32.f32 %v1821
    %v1838 = vcvt.s32.f32 %v1822
    %v1839 = vcvt.s32.f32 %v1823
    %v1840 = vcvt.s32.f32 %v1824
    %v1841 = vcvt.s32.f32 %v1825
    %v1842 = vcvt.s32.f32 %v1826
    %v1843 = vcvt.s32.f32 %v1827
    %v1844 = vcvt.s32.f32 %v1828
    %v1845 = vcvt.s32.f32 %v1829
    %v1846 = vcvt.s32.f32 %v1830
    %v1847 = vcvt.s32.f32 %v1831
    %v1848 = vcvt.s32.f32 %v1832
    %v1849 = vcvt.s32.f32 %v1833
    %v1850 = vmul.f32 %v1834, %v1584
    %v1851 = vmul.f32 %v1835, %v1588
    %v1852 = vmul.f32 %v1836, %v1592
    %v1853 = vmul.f32 %v1837, %v1596
    %v1854 = vmul.f32 %v1838, %v1600
    %v1855 = vmul.f32 %v1839, %v1604
    %v1856 = vmul.f32 %v1840, %v1608
    %v1857 = vmul.f32 %v1841, %v1612
    %v1858 = vmul.f32 %v1842, %v1619
    %v1859 = vmul.f32 %v1843, %v1623
    %v1860 = vmul.f32 %v1844, %v1627
    %v1861 = vmul.f32 %v1845, %v1631
    %v1862 = vmul.f32 %v1846, %v1635
    %v1863 = vmul.f32 %v1847, %v1639
    %v1864 = vmul.f32 %v1848, %v1643
    %v1865 = vmul.f32 %v1849, %v1647
    %v1866 = vsel %vm171, %v1850, 0.0
    %v1867 = vsel %vm171, %v1851, 0.0
    %v1868 = vadd.f32 %v1866, %v1867
    %v1869 = vsel %vm171, %v1852, 0.0
    %v1870 = vadd.f32 %v1868, %v1869
    %v1871 = vsel %vm171, %v1853, 0.0
    %v1872 = vadd.f32 %v1870, %v1871
    %v1873 = vsel %vm171, %v1854, 0.0
    %v1874 = vadd.f32 %v1872, %v1873
    %v1875 = vsel %vm171, %v1855, 0.0
    %v1876 = vadd.f32 %v1874, %v1875
    %v1877 = vsel %vm171, %v1856, 0.0
    %v1878 = vadd.f32 %v1876, %v1877
    %v1879 = vsel %vm171, %v1857, 0.0
    %v1880 = vadd.f32 %v1878, %v1879
    %v1881 = vrot.slane %v1880, 4
    %v1882 = vadd.f32 %v1880, %v1881
    %v1883 = vrot.slane %v1882, 2
    %v1884 = vadd.f32 %v1882, %v1883
    %v1885 = vrot.slane %v1884, 1
    %v1886 = vadd.f32 %v1884, %v1885
    %v1887 = vsel %vm171, %v1858, 0.0
    %v1888 = vsel %vm171, %v1859, 0.0
    %v1889 = vadd.f32 %v1887, %v1888
    %v1890 = vsel %vm171, %v1860, 0.0
    %v1891 = vadd.f32 %v1889, %v1890
    %v1892 = vsel %vm171, %v1861, 0.0
    %v1893 = vadd.f32 %v1891, %v1892
    %v1894 = vsel %vm171, %v1862, 0.0
    %v1895 = vadd.f32 %v1893, %v1894
    %v1896 = vsel %vm171, %v1863, 0.0
    %v1897 = vadd.f32 %v1895, %v1896
    %v1898 = vsel %vm171, %v1864, 0.0
    %v1899 = vadd.f32 %v1897, %v1898
    %v1900 = vsel %vm171, %v1865, 0.0
    %v1901 = vadd.f32 %v1899, %v1900
    %v1902 = vrot.slane %v1901, 4
    %v1903 = vadd.f32 %v1901, %v1902
    %v1904 = vrot.slane %v1903, 2
    %v1905 = vadd.f32 %v1903, %v1904
    %v1906 = vrot.slane %v1905, 1
    %v1907 = vadd.f32 %v1905, %v1906
    %vm1910 = vcmask 1045509
    %v1911 = vsel %vm1910, %v1907, %v1886
    %1912 = vrot.lane.b32.xlu0 %v1911, 64
    %v1913 = vpop.permute.xlu0 %1912
    %v1915 = vsel %vm171, %v1553, %v1913
    %v1916 = vpack.c.bf16 %v1915, %v1915
    %v1918 = vrot.slane %v1916, 2
    %1920 = vmatprep.subr.bf16.mxu0 0
    %1921 = vmatpush1.bf16.msra.mxu0 %v792
    %1922 = vmatprep.subr.bf16.mxu0 0
    %1923 = vmatpush1.bf16.msra.mxu0 %v793
    %1924 = vmatprep.subr.bf16.mxu0 0
    %1925 = vmatpush1.bf16.msra.mxu0 %v794
    %1926 = vmatprep.subr.bf16.mxu0 0
    %1927 = vmatpush1.bf16.msra.mxu0 %v795
    %1928 = vmatprep.subr.bf16.mxu0 0
    %1929 = vmatpush1.bf16.msra.mxu0 %v796
    %1930 = vmatprep.subr.bf16.mxu0 0
    %1931 = vmatpush1.bf16.msra.mxu0 %v797
    %1932 = vmatprep.subr.bf16.mxu0 0
    %1933 = vmatpush1.bf16.msra.mxu0 %v798
    %1934 = vmatprep.subr.bf16.mxu0 0
    %1935 = vmatpush1.bf16.msra.mxu0 %v799
    %1936 = vmatprep.subr.bf16.mxu0 0
    %1937 = vmatpush1.bf16.msra.mxu0 0
    %1938 = vmatprep.subr.bf16.mxu0 0
    %1939 = vmatpush1.bf16.msra.mxu0 0
    %1940 = vmatprep.subr.bf16.mxu0 0
    %1941 = vmatpush1.bf16.msra.mxu0 0
    %1942 = vmatprep.subr.bf16.mxu0 0
    %1943 = vmatpush1.bf16.msra.mxu0 0
    %1944 = vmatprep.subr.bf16.mxu0 0
    %1945 = vmatpush1.bf16.msra.mxu0 0
    %1946 = vmatprep.subr.bf16.mxu0 0
    %1947 = vmatpush1.bf16.msra.mxu0 0
    %1948 = vmatprep.subr.bf16.mxu0 0
    %1949 = vmatpush1.bf16.msra.mxu0 0
    %1950 = vmatprep.subr.bf16.mxu0 0
    %1951 = vmatpush1.bf16.msra.mxu0 0
    %1952 = vmatprep.mubr.bf16.mxu0 0
    %1953 = vmatmul.mubr.bf16.gmra.mrb[0].mxu0 %v1918
    %v1954 = vpop.f32.mrb[0].mxu0
    %v1955 = vadd.f32 0.0, %v1954
    %v1956 = vpop.f32.mrb[0].mxu0
    %v1957 = vpop.f32.mrb[0].mxu0
    %v1958 = vpop.f32.mrb[0].mxu0
    %1959 = vdwg.mxu0
    %v1960 = vmax.f32 %v1955, 0.0
    %v1961 = vpack.c.bf16 %v1960, %v1960
    %1962 = vmatprep.subr.bf16.mxu0 0
    %1963 = vmatpush1.bf16.msra.mxu0 %v882
    %1964 = vmatprep.subr.bf16.mxu0 0
    %1965 = vmatpush1.bf16.msra.mxu0 %v883
    %1966 = vmatprep.subr.bf16.mxu0 0
    %1967 = vmatpush1.bf16.msra.mxu0 %v884
    %1968 = vmatprep.subr.bf16.mxu0 0
    %1969 = vmatpush1.bf16.msra.mxu0 %v885
    %1970 = vmatprep.subr.bf16.mxu0 0
    %1971 = vmatpush1.bf16.msra.mxu0 %v886
    %1972 = vmatprep.subr.bf16.mxu0 0
    %1973 = vmatpush1.bf16.msra.mxu0 %v887
    %1974 = vmatprep.subr.bf16.mxu0 0
    %1975 = vmatpush1.bf16.msra.mxu0 %v888
    %1976 = vmatprep.subr.bf16.mxu0 0
    %1977 = vmatpush1.bf16.msra.mxu0 %v889
    %1978 = vmatprep.subr.bf16.mxu0 0
    %1979 = vmatpush1.bf16.msra.mxu0 0
    %1980 = vmatprep.subr.bf16.mxu0 0
    %1981 = vmatpush1.bf16.msra.mxu0 0
    %1982 = vmatprep.subr.bf16.mxu0 0
    %1983 = vmatpush1.bf16.msra.mxu0 0
    %1984 = vmatprep.subr.bf16.mxu0 0
    %1985 = vmatpush1.bf16.msra.mxu0 0
    %1986 = vmatprep.subr.bf16.mxu0 0
    %1987 = vmatpush1.bf16.msra.mxu0 0
    %1988 = vmatprep.subr.bf16.mxu0 0
    %1989 = vmatpush1.bf16.msra.mxu0 0
    %1990 = vmatprep.subr.bf16.mxu0 0
    %1991 = vmatpush1.bf16.msra.mxu0 0
    %1992 = vmatprep.subr.bf16.mxu0 0
    %1993 = vmatpush1.bf16.msra.mxu0 0
    %1994 = vmatprep.mubr.bf16.mxu0 0
    %1995 = vmatmul.mubr.bf16.gmra.mrb[0].mxu0 %v1961
    %v1996 = vpop.f32.mrb[0].mxu0
    %v1997 = vadd.f32 0.0, %v1996
    %v1998 = vpop.f32.mrb[0].mxu0
    %v1999 = vpop.f32.mrb[0].mxu0
    %v2000 = vpop.f32.mrb[0].mxu0
    %2001 = vdwg.mxu0
    %v2002 = vsub.f32 0.0, %v1997
    %v2003 = vmul.f32 %v2002, 1.442695
    %v2004 = vpow.pop %v2003
    %v2005 = vadd.f32 %v2004, 1.0
    %v2006 = vrcp.pop %v2005
    %v2008 = vrot.slane %v2006, 4
    %v2010 = vmul.f32 %v1553, %v2008
    %v2011 = vpack.c.bf16 %v2010, %v2010
    %v2013 = vrot.slane %v2011, 2
    %v2015 = vsel %vm171, %v2013, 0
    %2017 = vmatprep.subr.bf16.mxu0 %v295
    %2018 = vmatpush1.bf16.msra.mxu0 %v294
    %2019 = vmatprep.subr.bf16.mxu0 %v297
    %2020 = vmatpush1.bf16.msra.mxu0 %v296
    %2021 = vmatprep.subr.bf16.mxu0 %v299
    %2022 = vmatpush1.bf16.msra.mxu0 %v298
    %2023 = vmatprep.subr.bf16.mxu0 %v301
    %2024 = vmatpush1.bf16.msra.mxu0 %v300
    %2025 = vmatprep.subr.bf16.mxu0 0
    %2026 = vmatpush1.bf16.msra.mxu0 0
    %2027 = vmatprep.subr.bf16.mxu0 0
    %2028 = vmatpush1.bf16.msra.mxu0 0
    %2029 = vmatprep.subr.bf16.mxu0 0
    %2030 = vmatpush1.bf16.msra.mxu0 0
    %2031 = vmatprep.subr.bf16.mxu0 0
    %2032 = vmatpush1.bf16.msra.mxu0 0
    %2033 = vmatprep.subr.bf16.mxu0 0
    %2034 = vmatpush1.bf16.msra.mxu0 0
    %2035 = vmatprep.subr.bf16.mxu0 0
    %2036 = vmatpush1.bf16.msra.mxu0 0
    %2037 = vmatprep.subr.bf16.mxu0 0
    %2038 = vmatpush1.bf16.msra.mxu0 0
    %2039 = vmatprep.subr.bf16.mxu0 0
    %2040 = vmatpush1.bf16.msra.mxu0 0
    %2041 = vmatprep.subr.bf16.mxu0 0
    %2042 = vmatpush1.bf16.msra.mxu0 0
    %2043 = vmatprep.subr.bf16.mxu0 0
    %2044 = vmatpush1.bf16.msra.mxu0 0
    %2045 = vmatprep.subr.bf16.mxu0 0
    %2046 = vmatpush1.bf16.msra.mxu0 0
    %2047 = vmatprep.subr.bf16.mxu0 0
    %2048 = vmatpush1.bf16.msra.mxu0 0
    %2049 = vmatprep.mubr.bf16.mxu0 0
    %2050 = vmatmul.mubr.bf16.gmra.mrb[0].mxu0 %v2015
    %v2051 = vpop.f32.mrb[0].mxu0
    %v2052 = vadd.f32 %v229, %v2051
    %v2053 = vpop.f32.mrb[0].mxu0
    %v2054 = vadd.f32 %v233, %v2053
    %v2055 = vpop.f32.mrb[0].mxu0
    %v2056 = vpop.f32.mrb[0].mxu0
    %2057 = vdwg.mxu0
    %v2059 = vrot.slane %v2052, 2
    %v2061 = vadd.f32 %v210, %v2059
    %v2062 = vsub.f32 0.0, %v2061
    %v2063 = vmul.f32 %v2062, 1.442695
    %v2064 = vpow.pop %v2063
    %v2065 = vadd.f32 %v2064, 1.0
    %v2066 = vrcp.pop %v2065
    %v2068 = vrot.slane %v2054, 2
    %v2070 = vmul.f32 %v2066, %v2068
    %v2071 = vadd.f32 %v212, %v2070
    %v2072 = vtanh.pop %v2071
    %v2074 = vrot.slane %v2072, 2
    %v2076 = vsub.f32 %v2010, %v2074
    %v2078 = vrot.slane %v2076, 6
    %2079 = vrot.lane.b32.xlu0 %v2078, 64
    %v2080 = vpop.permute.xlu0 %2079
    %v2082 = vmul.f32 %v2066, %v2080
    %2084 = vrot.lane.b32.xlu0 %v2082, 64
    %v2085 = vpop.permute.xlu0 %2084
    %v2087 = vadd.f32 %v2072, %v2085
    %v2089 = vcombine.high %v2087, %v2087
    %v2091 = vunpack.c.l.s4 1966171168
    %v2092 = vunpack.c.0.s8 %v2091
    %v2093 = vlaneseq
    %v2094 = vshrl.u32 %v2093, 7
    %v2095 = vsub.s32 %v2092, %v2094
    %v2096 = vrot.slane %v2089, %v2095
    %v2097 = vcombine.high %v2096, %v2096
    %v2099 = vunpack.c.l.s4 1966171168
    %v2100 = vunpack.c.0.s8 %v2099
    %v2101 = vlaneseq
    %v2102 = vshrl.u32 %v2101, 7
    %v2103 = vsub.s32 %v2100, %v2102
    %v2104 = vrot.slane %v2096, %v2103
    %v2106 = vunpack.c.l.s4 1966171168
    %v2107 = vunpack.c.0.s8 %v2106
    %v2108 = vlaneseq
    %v2109 = vshrl.u32 %v2108, 7
    %v2110 = vsub.s32 %v2107, %v2109
    %v2111 = vrot.slane %v2097, %v2110
    %v2112 = vcombine.high %v2104, %v2104
    %v2113 = vcombine.high %v2111, %v2111
    %v2114 = vlaneseq
    %v2115 = vshrl.u32 %v2114, 7
    %v2116 = vsub.s32 6, %v2115
    %v2117 = vrot.slane %v2087, %v2116
    %2119 = vbcast.lane.b32.xlu0 %v2117, 256
    %v2120 = vpop.permute.xlu0 %2119
    %s2122 = sor.u32 256, 8
    %2123 = vbcast.lane.b32.xlu0 %v2117, %s2122
    %v2124 = vpop.permute.xlu0 %2123
    %s2126 = sor.u32 256, 16
    %2127 = vbcast.lane.b32.xlu0 %v2117, %s2126
    %v2128 = vpop.permute.xlu0 %2127
    %s2130 = sor.u32 256, 24
    %2131 = vbcast.lane.b32.xlu0 %v2117, %s2130
    %v2132 = vpop.permute.xlu0 %2131
    %s2134 = sor.u32 256, 32
    %2135 = vbcast.lane.b32.xlu0 %v2117, %s2134
    %v2136 = vpop.permute.xlu0 %2135
    %s2138 = sor.u32 256, 40
    %2139 = vbcast.lane.b32.xlu0 %v2117, %s2138
    %v2140 = vpop.permute.xlu0 %2139
    %s2142 = sor.u32 256, 48
    %2143 = vbcast.lane.b32.xlu0 %v2117, %s2142
    %v2144 = vpop.permute.xlu0 %2143
    %s2146 = sor.u32 256, 56
    %2147 = vbcast.lane.b32.xlu0 %v2117, %s2146
    %v2148 = vpop.permute.xlu0 %2147
    %v2149 = vlaneseq
    %v2150 = vshrl.u32 %v2149, 7
    %v2151 = vsub.s32 7, %v2150
    %v2152 = vrot.slane %v2087, %v2151
    %2154 = vbcast.lane.b32.xlu0 %v2152, 256
    %v2155 = vpop.permute.xlu0 %2154
    %s2157 = sor.u32 256, 8
    %2158 = vbcast.lane.b32.xlu0 %v2152, %s2157
    %v2159 = vpop.permute.xlu0 %2158
    %s2161 = sor.u32 256, 16
    %2162 = vbcast.lane.b32.xlu0 %v2152, %s2161
    %v2163 = vpop.permute.xlu0 %2162
    %s2165 = sor.u32 256, 24
    %2166 = vbcast.lane.b32.xlu0 %v2152, %s2165
    %v2167 = vpop.permute.xlu0 %2166
    %s2169 = sor.u32 256, 32
    %2170 = vbcast.lane.b32.xlu0 %v2152, %s2169
    %v2171 = vpop.permute.xlu0 %2170
    %s2173 = sor.u32 256, 40
    %2174 = vbcast.lane.b32.xlu0 %v2152, %s2173
    %v2175 = vpop.permute.xlu0 %2174
    %s2177 = sor.u32 256, 48
    %2178 = vbcast.lane.b32.xlu0 %v2152, %s2177
    %v2179 = vpop.permute.xlu0 %2178
    %s2181 = sor.u32 256, 56
    %2182 = vbcast.lane.b32.xlu0 %v2152, %s2181
    %v2183 = vpop.permute.xlu0 %2182
    %v2184 = vlaneseq
    %v2185 = vshrl.u32 %v2184, 7
    %v2186 = vsub.s32 0, %v2185
    %v2187 = vrot.slane %v2112, %v2186
    %v2188 = vlaneseq
    %v2189 = vshrl.u32 %v2188, 7
    %v2190 = vsub.s32 0, %v2189
    %v2191 = vrot.slane %v2113, %v2190
    %vm2194 = vcmp.lt.f32.partialorder %v2187, %v2120
    %vm2195 = vcmp.lt.f32.partialorder %v2187, %v2124
    %vm2196 = vcmp.lt.f32.partialorder %v2187, %v2128
    %vm2197 = vcmp.lt.f32.partialorder %v2187, %v2132
    %vm2198 = vcmp.lt.f32.partialorder %v2187, %v2136
    %vm2199 = vcmp.lt.f32.partialorder %v2187, %v2140
    %vm2200 = vcmp.lt.f32.partialorder %v2187, %v2144
    %vm2201 = vcmp.lt.f32.partialorder %v2187, %v2148
    %vm2202 = vcmp.lt.f32.partialorder %v2191, %v2155
    %vm2203 = vcmp.lt.f32.partialorder %v2191, %v2159
    %vm2204 = vcmp.lt.f32.partialorder %v2191, %v2163
    %vm2205 = vcmp.lt.f32.partialorder %v2191, %v2167
    %vm2206 = vcmp.lt.f32.partialorder %v2191, %v2171
    %vm2207 = vcmp.lt.f32.partialorder %v2191, %v2175
    %vm2208 = vcmp.lt.f32.partialorder %v2191, %v2179
    %vm2209 = vcmp.lt.f32.partialorder %v2191, %v2183
    %vm2210 = vcmp.eq.f32.partialorder %v2187, %v2120
    %vm2211 = vcmp.eq.f32.partialorder %v2187, %v2124
    %vm2212 = vcmp.eq.f32.partialorder %v2187, %v2128
    %vm2213 = vcmp.eq.f32.partialorder %v2187, %v2132
    %vm2214 = vcmp.eq.f32.partialorder %v2187, %v2136
    %vm2215 = vcmp.eq.f32.partialorder %v2187, %v2140
    %vm2216 = vcmp.eq.f32.partialorder %v2187, %v2144
    %vm2217 = vcmp.eq.f32.partialorder %v2187, %v2148
    %vm2218 = vcmp.eq.f32.partialorder %v2191, %v2155
    %vm2219 = vcmp.eq.f32.partialorder %v2191, %v2159
    %vm2220 = vcmp.eq.f32.partialorder %v2191, %v2163
    %vm2221 = vcmp.eq.f32.partialorder %v2191, %v2167
    %vm2222 = vcmp.eq.f32.partialorder %v2191, %v2171
    %vm2223 = vcmp.eq.f32.partialorder %v2191, %v2175
    %vm2224 = vcmp.eq.f32.partialorder %v2191, %v2179
    %vm2225 = vcmp.eq.f32.partialorder %v2191, %v2183
    %vm2226 = vmand %vm2210, %vm525
    %vm2227 = vmand %vm2211, %vm526
    %vm2228 = vmand %vm2212, %vm527
    %vm2229 = vmand %vm2213, %vm528
    %vm2230 = vmand %vm2214, %vm529
    %vm2231 = vmand %vm2215, %vm530
    %vm2232 = vmand %vm2216, %vm531
    %vm2233 = vmand %vm2217, %vm532
    %vm2234 = vmand %vm2218, %vm525
    %vm2235 = vmand %vm2219, %vm526
    %vm2236 = vmand %vm2220, %vm527
    %vm2237 = vmand %vm2221, %vm528
    %vm2238 = vmand %vm2222, %vm529
    %vm2239 = vmand %vm2223, %vm530
    %vm2240 = vmand %vm2224, %vm531
    %vm2241 = vmand %vm2225, %vm532
    %vm2242 = vmor %vm2194, %vm2226
    %vm2243 = vmor %vm2195, %vm2227
    %vm2244 = vmor %vm2196, %vm2228
    %vm2245 = vmor %vm2197, %vm2229
    %vm2246 = vmor %vm2198, %vm2230
    %vm2247 = vmor %vm2199, %vm2231
    %vm2248 = vmor %vm2200, %vm2232
    %vm2249 = vmor %vm2201, %vm2233
    %vm2250 = vmor %vm2202, %vm2234
    %vm2251 = vmor %vm2203, %vm2235
    %vm2252 = vmor %vm2204, %vm2236
    %vm2253 = vmor %vm2205, %vm2237
    %vm2254 = vmor %vm2206, %vm2238
    %vm2255 = vmor %vm2207, %vm2239
    %vm2256 = vmor %vm2208, %vm2240
    %vm2257 = vmor %vm2209, %vm2241
    %v2258 = vsel %vm2242, 1, 0
    %v2259 = vsel %vm2243, 1, 0
    %v2260 = vsel %vm2244, 1, 0
    %v2261 = vsel %vm2245, 1, 0
    %v2262 = vsel %vm2246, 1, 0
    %v2263 = vsel %vm2247, 1, 0
    %v2264 = vsel %vm2248, 1, 0
    %v2265 = vsel %vm2249, 1, 0
    %v2266 = vsel %vm2250, 1, 0
    %v2267 = vsel %vm2251, 1, 0
    %v2268 = vsel %vm2252, 1, 0
    %v2269 = vsel %vm2253, 1, 0
    %v2270 = vsel %vm2254, 1, 0
    %v2271 = vsel %vm2255, 1, 0
    %v2272 = vsel %vm2256, 1, 0
    %v2273 = vsel %vm2257, 1, 0
    %v2274 = vcvt.s32.f32 %v2258
    %v2275 = vcvt.s32.f32 %v2259
    %v2276 = vcvt.s32.f32 %v2260
    %v2277 = vcvt.s32.f32 %v2261
    %v2278 = vcvt.s32.f32 %v2262
    %v2279 = vcvt.s32.f32 %v2263
    %v2280 = vcvt.s32.f32 %v2264
    %v2281 = vcvt.s32.f32 %v2265
    %v2282 = vcvt.s32.f32 %v2266
    %v2283 = vcvt.s32.f32 %v2267
    %v2284 = vcvt.s32.f32 %v2268
    %v2285 = vcvt.s32.f32 %v2269
    %v2286 = vcvt.s32.f32 %v2270
    %v2287 = vcvt.s32.f32 %v2271
    %v2288 = vcvt.s32.f32 %v2272
    %v2289 = vcvt.s32.f32 %v2273
    %v2290 = vsel %vm171, %v2274, 0.0
    %2291 = vadd.xlane.f32.xlu0 %v2290
    %v2292 = vpop.xlane.xlu0 %2291
    %v2293 = vsel %vm171, %v2275, 0.0
    %2294 = vadd.xlane.f32.xlu0 %v2293
    %v2295 = vpop.xlane.xlu0 %2294
    %v2296 = vsel %vm171, %v2276, 0.0
    %2297 = vadd.xlane.f32.xlu0 %v2296
    %v2298 = vpop.xlane.xlu0 %2297
    %v2299 = vsel %vm171, %v2277, 0.0
    %2300 = vadd.xlane.f32.xlu0 %v2299
    %v2301 = vpop.xlane.xlu0 %2300
    %v2302 = vsel %vm171, %v2278, 0.0
    %2303 = vadd.xlane.f32.xlu0 %v2302
    %v2304 = vpop.xlane.xlu0 %2303
    %v2305 = vsel %vm171, %v2279, 0.0
    %2306 = vadd.xlane.f32.xlu0 %v2305
    %v2307 = vpop.xlane.xlu0 %2306
    %v2308 = vsel %vm171, %v2280, 0.0
    %2309 = vadd.xlane.f32.xlu0 %v2308
    %v2310 = vpop.xlane.xlu0 %2309
    %v2311 = vsel %vm171, %v2281, 0.0
    %2312 = vadd.xlane.f32.xlu0 %v2311
    %v2313 = vpop.xlane.xlu0 %2312
    %v2314 = vsel %vm171, %v2282, 0.0
    %2315 = vadd.xlane.f32.xlu0 %v2314
    %v2316 = vpop.xlane.xlu0 %2315
    %v2317 = vsel %vm171, %v2283, 0.0
    %2318 = vadd.xlane.f32.xlu0 %v2317
    %v2319 = vpop.xlane.xlu0 %2318
    %v2320 = vsel %vm171, %v2284, 0.0
    %2321 = vadd.xlane.f32.xlu0 %v2320
    %v2322 = vpop.xlane.xlu0 %2321
    %v2323 = vsel %vm171, %v2285, 0.0
    %2324 = vadd.xlane.f32.xlu0 %v2323
    %v2325 = vpop.xlane.xlu0 %2324
    %v2326 = vsel %vm171, %v2286, 0.0
    %2327 = vadd.xlane.f32.xlu0 %v2326
    %v2328 = vpop.xlane.xlu0 %2327
    %v2329 = vsel %vm171, %v2287, 0.0
    %2330 = vadd.xlane.f32.xlu0 %v2329
    %v2331 = vpop.xlane.xlu0 %2330
    %v2332 = vsel %vm171, %v2288, 0.0
    %2333 = vadd.xlane.f32.xlu0 %v2332
    %v2334 = vpop.xlane.xlu0 %2333
    %v2335 = vsel %vm171, %v2289, 0.0
    %2336 = vadd.xlane.f32.xlu0 %v2335
    %v2337 = vpop.xlane.xlu0 %2336
    %vm2338 = vcmp.eq.f32.partialorder %v2292, %v108
    %vm2339 = vcmp.eq.f32.partialorder %v2295, %v108
    %vm2340 = vcmp.eq.f32.partialorder %v2298, %v108
    %vm2341 = vcmp.eq.f32.partialorder %v2301, %v108
    %vm2342 = vcmp.eq.f32.partialorder %v2304, %v108
    %vm2343 = vcmp.eq.f32.partialorder %v2307, %v108
    %vm2344 = vcmp.eq.f32.partialorder %v2310, %v108
    %vm2345 = vcmp.eq.f32.partialorder %v2313, %v108
    %vm2346 = vcmp.eq.f32.partialorder %v2316, %v108
    %vm2347 = vcmp.eq.f32.partialorder %v2319, %v108
    %vm2348 = vcmp.eq.f32.partialorder %v2322, %v108
    %vm2349 = vcmp.eq.f32.partialorder %v2325, %v108
    %vm2350 = vcmp.eq.f32.partialorder %v2328, %v108
    %vm2351 = vcmp.eq.f32.partialorder %v2331, %v108
    %vm2352 = vcmp.eq.f32.partialorder %v2334, %v108
    %vm2353 = vcmp.eq.f32.partialorder %v2337, %v108
    %v2354 = vsel %vm2338, 1, 0
    %v2355 = vsel %vm2339, 1, 0
    %v2356 = vsel %vm2340, 1, 0
    %v2357 = vsel %vm2341, 1, 0
    %v2358 = vsel %vm2342, 1, 0
    %v2359 = vsel %vm2343, 1, 0
    %v2360 = vsel %vm2344, 1, 0
    %v2361 = vsel %vm2345, 1, 0
    %v2362 = vsel %vm2346, 1, 0
    %v2363 = vsel %vm2347, 1, 0
    %v2364 = vsel %vm2348, 1, 0
    %v2365 = vsel %vm2349, 1, 0
    %v2366 = vsel %vm2350, 1, 0
    %v2367 = vsel %vm2351, 1, 0
    %v2368 = vsel %vm2352, 1, 0
    %v2369 = vsel %vm2353, 1, 0
    %v2370 = vcvt.s32.f32 %v2354
    %v2371 = vcvt.s32.f32 %v2355
    %v2372 = vcvt.s32.f32 %v2356
    %v2373 = vcvt.s32.f32 %v2357
    %v2374 = vcvt.s32.f32 %v2358
    %v2375 = vcvt.s32.f32 %v2359
    %v2376 = vcvt.s32.f32 %v2360
    %v2377 = vcvt.s32.f32 %v2361
    %v2378 = vcvt.s32.f32 %v2362
    %v2379 = vcvt.s32.f32 %v2363
    %v2380 = vcvt.s32.f32 %v2364
    %v2381 = vcvt.s32.f32 %v2365
    %v2382 = vcvt.s32.f32 %v2366
    %v2383 = vcvt.s32.f32 %v2367
    %v2384 = vcvt.s32.f32 %v2368
    %v2385 = vcvt.s32.f32 %v2369
    %v2386 = vmul.f32 %v2370, %v2120
    %v2387 = vmul.f32 %v2371, %v2124
    %v2388 = vmul.f32 %v2372, %v2128
    %v2389 = vmul.f32 %v2373, %v2132
    %v2390 = vmul.f32 %v2374, %v2136
    %v2391 = vmul.f32 %v2375, %v2140
    %v2392 = vmul.f32 %v2376, %v2144
    %v2393 = vmul.f32 %v2377, %v2148
    %v2394 = vmul.f32 %v2378, %v2155
    %v2395 = vmul.f32 %v2379, %v2159
    %v2396 = vmul.f32 %v2380, %v2163
    %v2397 = vmul.f32 %v2381, %v2167
    %v2398 = vmul.f32 %v2382, %v2171
    %v2399 = vmul.f32 %v2383, %v2175
    %v2400 = vmul.f32 %v2384, %v2179
    %v2401 = vmul.f32 %v2385, %v2183
    %v2402 = vsel %vm171, %v2386, 0.0
    %v2403 = vsel %vm171, %v2387, 0.0
    %v2404 = vadd.f32 %v2402, %v2403
    %v2405 = vsel %vm171, %v2388, 0.0
    %v2406 = vadd.f32 %v2404, %v2405
    %v2407 = vsel %vm171, %v2389, 0.0
    %v2408 = vadd.f32 %v2406, %v2407
    %v2409 = vsel %vm171, %v2390, 0.0
    %v2410 = vadd.f32 %v2408, %v2409
    %v2411 = vsel %vm171, %v2391, 0.0
    %v2412 = vadd.f32 %v2410, %v2411
    %v2413 = vsel %vm171, %v2392, 0.0
    %v2414 = vadd.f32 %v2412, %v2413
    %v2415 = vsel %vm171, %v2393, 0.0
    %v2416 = vadd.f32 %v2414, %v2415
    %v2417 = vrot.slane %v2416, 4
    %v2418 = vadd.f32 %v2416, %v2417
    %v2419 = vrot.slane %v2418, 2
    %v2420 = vadd.f32 %v2418, %v2419
    %v2421 = vrot.slane %v2420, 1
    %v2422 = vadd.f32 %v2420, %v2421
    %v2423 = vsel %vm171, %v2394, 0.0
    %v2424 = vsel %vm171, %v2395, 0.0
    %v2425 = vadd.f32 %v2423, %v2424
    %v2426 = vsel %vm171, %v2396, 0.0
    %v2427 = vadd.f32 %v2425, %v2426
    %v2428 = vsel %vm171, %v2397, 0.0
    %v2429 = vadd.f32 %v2427, %v2428
    %v2430 = vsel %vm171, %v2398, 0.0
    %v2431 = vadd.f32 %v2429, %v2430
    %v2432 = vsel %vm171, %v2399, 0.0
    %v2433 = vadd.f32 %v2431, %v2432
    %v2434 = vsel %vm171, %v2400, 0.0
    %v2435 = vadd.f32 %v2433, %v2434
    %v2436 = vsel %vm171, %v2401, 0.0
    %v2437 = vadd.f32 %v2435, %v2436
    %v2438 = vrot.slane %v2437, 4
    %v2439 = vadd.f32 %v2437, %v2438
    %v2440 = vrot.slane %v2439, 2
    %v2441 = vadd.f32 %v2439, %v2440
    %v2442 = vrot.slane %v2441, 1
    %v2443 = vadd.f32 %v2441, %v2442
    %vm2446 = vcmask 1047559
    %v2447 = vsel %vm2446, %v2443, %v2422
    %2448 = vrot.lane.b32.xlu0 %v2447, 64
    %v2449 = vpop.permute.xlu0 %2448
    %v2451 = vsel %vm171, %v2087, %v2449
    %v2452 = vpack.c.bf16 %v2451, %v2451
    %v2454 = vrot.slane %v2452, 3
    %2456 = vmatprep.subr.bf16.mxu0 0
    %2457 = vmatpush1.bf16.msra.mxu0 %v792
    %2458 = vmatprep.subr.bf16.mxu0 0
    %2459 = vmatpush1.bf16.msra.mxu0 %v793
    %2460 = vmatprep.subr.bf16.mxu0 0
    %2461 = vmatpush1.bf16.msra.mxu0 %v794
    %2462 = vmatprep.subr.bf16.mxu0 0
    %2463 = vmatpush1.bf16.msra.mxu0 %v795
    %2464 = vmatprep.subr.bf16.mxu0 0
    %2465 = vmatpush1.bf16.msra.mxu0 %v796
    %2466 = vmatprep.subr.bf16.mxu0 0
    %2467 = vmatpush1.bf16.msra.mxu0 %v797
    %2468 = vmatprep.subr.bf16.mxu0 0
    %2469 = vmatpush1.bf16.msra.mxu0 %v798
    %2470 = vmatprep.subr.bf16.mxu0 0
    %2471 = vmatpush1.bf16.msra.mxu0 %v799
    %2472 = vmatprep.subr.bf16.mxu0 0
    %2473 = vmatpush1.bf16.msra.mxu0 0
    %2474 = vmatprep.subr.bf16.mxu0 0
    %2475 = vmatpush1.bf16.msra.mxu0 0
    %2476 = vmatprep.subr.bf16.mxu0 0
    %2477 = vmatpush1.bf16.msra.mxu0 0
    %2478 = vmatprep.subr.bf16.mxu0 0
    %2479 = vmatpush1.bf16.msra.mxu0 0
    %2480 = vmatprep.subr.bf16.mxu0 0
    %2481 = vmatpush1.bf16.msra.mxu0 0
    %2482 = vmatprep.subr.bf16.mxu0 0
    %2483 = vmatpush1.bf16.msra.mxu0 0
    %2484 = vmatprep.subr.bf16.mxu0 0
    %2485 = vmatpush1.bf16.msra.mxu0 0
    %2486 = vmatprep.subr.bf16.mxu0 0
    %2487 = vmatpush1.bf16.msra.mxu0 0
    %2488 = vmatprep.mubr.bf16.mxu0 0
    %2489 = vmatmul.mubr.bf16.gmra.mrb[0].mxu0 %v2454
    %v2490 = vpop.f32.mrb[0].mxu0
    %v2491 = vadd.f32 0.0, %v2490
    %v2492 = vpop.f32.mrb[0].mxu0
    %v2493 = vpop.f32.mrb[0].mxu0
    %v2494 = vpop.f32.mrb[0].mxu0
    %2495 = vdwg.mxu0
    %v2496 = vmax.f32 %v2491, 0.0
    %v2497 = vpack.c.bf16 %v2496, %v2496
    %2498 = vmatprep.subr.bf16.mxu0 0
    %2499 = vmatpush1.bf16.msra.mxu0 %v882
    %2500 = vmatprep.subr.bf16.mxu0 0
    %2501 = vmatpush1.bf16.msra.mxu0 %v883
    %2502 = vmatprep.subr.bf16.mxu0 0
    %2503 = vmatpush1.bf16.msra.mxu0 %v884
    %2504 = vmatprep.subr.bf16.mxu0 0
    %2505 = vmatpush1.bf16.msra.mxu0 %v885
    %2506 = vmatprep.subr.bf16.mxu0 0
    %2507 = vmatpush1.bf16.msra.mxu0 %v886
    %2508 = vmatprep.subr.bf16.mxu0 0
    %2509 = vmatpush1.bf16.msra.mxu0 %v887
    %2510 = vmatprep.subr.bf16.mxu0 0
    %2511 = vmatpush1.bf16.msra.mxu0 %v888
    %2512 = vmatprep.subr.bf16.mxu0 0
    %2513 = vmatpush1.bf16.msra.mxu0 %v889
    %2514 = vmatprep.subr.bf16.mxu0 0
    %2515 = vmatpush1.bf16.msra.mxu0 0
    %2516 = vmatprep.subr.bf16.mxu0 0
    %2517 = vmatpush1.bf16.msra.mxu0 0
    %2518 = vmatprep.subr.bf16.mxu0 0
    %2519 = vmatpush1.bf16.msra.mxu0 0
    %2520 = vmatprep.subr.bf16.mxu0 0
    %2521 = vmatpush1.bf16.msra.mxu0 0
    %2522 = vmatprep.subr.bf16.mxu0 0
    %2523 = vmatpush1.bf16.msra.mxu0 0
    %2524 = vmatprep.subr.bf16.mxu0 0
    %2525 = vmatpush1.bf16.msra.mxu0 0
    %2526 = vmatprep.subr.bf16.mxu0 0
    %2527 = vmatpush1.bf16.msra.mxu0 0
    %2528 = vmatprep.subr.bf16.mxu0 0
    %2529 = vmatpush1.bf16.msra.mxu0 0
    %2530 = vmatprep.mubr.bf16.mxu0 0
    %2531 = vmatmul.mubr.bf16.gmra.mrb[0].mxu0 %v2497
    %v2532 = vpop.f32.mrb[0].mxu0
    %v2533 = vadd.f32 0.0, %v2532
    %v2534 = vpop.f32.mrb[0].mxu0
    %v2535 = vpop.f32.mrb[0].mxu0
    %v2536 = vpop.f32.mrb[0].mxu0
    %2537 = vdwg.mxu0
    %v2538 = vsub.f32 0.0, %v2533
    %v2539 = vmul.f32 %v2538, 1.442695
    %v2540 = vpow.pop %v2539
    %v2541 = vadd.f32 %v2540, 1.0
    %v2542 = vrcp.pop %v2541
    %v2544 = vrot.slane %v2542, 2
    %v2546 = vmul.f32 %v2087, %v2544
    %vm2547 = vcmask 523270
    %2548 = vst.msk [vmem:[#allocation11 - $0x6] sm:$0xc0] %vm2547, %v2546
    %vm2549 = vcmask 1041408
    %v2550 = vsel %vm2549, %v943, %v1476
    %vm2551 = vcmask 1043456
    %v2552 = vsel %vm2551, %v2550, %v2010
    %vm2553 = vcmask 1045504
    %v2554 = vsel %vm2553, %v2552, %v2546
    %v2555 = vpack.c.bf16 %v2554, %v2554
    %s2556 = scalar_lea.vmem %s2, 64
    %v2557 = vld [vmem:[%s2556] sm:$0xff]
    %v2558 = vld [vmem:[%s2556 + $0x8] sm:$0xff]
    %v2559 = vld [vmem:[%s2556 + $0x10] sm:$0xff]
    %v2560 = vld [vmem:[%s2556 + $0x18] sm:$0xff]
    %v2561 = vld [vmem:[%s2556 + $0x20] sm:$0xff]
    %v2562 = vld [vmem:[%s2556 + $0x28] sm:$0xff]
    %v2563 = vld [vmem:[%s2556 + $0x30] sm:$0xff]
    %v2564 = vld [vmem:[%s2556 + $0x38] sm:$0xff]
    %s2565 = scalar_lea.vmem [#allocation7], 2
    %v2566 = vld [vmem:[%s2565] sm:$0x3]
    %v2568 = vlaneseq
    %v2569 = vshrl.u32 %v2568, 7
    %v2570 = vsub.s32 0, %v2569
    %v2571 = vrot.slane %v2566, %v2570
    %v2572 = vlaneseq
    %v2573 = vshrl.u32 %v2572, 7
    %v2574 = vsub.s32 1, %v2573
    %v2575 = vrot.slane %v2566, %v2574
    %v2586 = vunpack.c.l.b16 %v2557
    %v2587 = vunpack.c.h.b16 %v2557
    %v2588 = vunpack.c.l.b16 %v2558
    %v2589 = vunpack.c.h.b16 %v2558
    %v2590 = vunpack.c.l.b16 %v2559
    %v2591 = vunpack.c.h.b16 %v2559
    %v2592 = vunpack.c.l.b16 %v2560
    %v2593 = vunpack.c.h.b16 %v2560
    %v2594 = vunpack.c.l.b16 %v2561
    %v2595 = vunpack.c.h.b16 %v2561
    %v2596 = vunpack.c.l.b16 %v2562
    %v2597 = vunpack.c.h.b16 %v2562
    %v2598 = vunpack.c.l.b16 %v2563
    %v2599 = vunpack.c.h.b16 %v2563
    %v2600 = vunpack.c.l.b16 %v2564
    %v2601 = vunpack.c.h.b16 %v2564
    %v2602 = vpack.c.b16 %v2588, %v2586
    %v2603 = vpack.c.b16 %v2589, %v2587
    %v2604 = vpack.c.b16 %v2592, %v2590
    %v2605 = vpack.c.b16 %v2593, %v2591
    %v2606 = vpack.c.b16 %v2596, %v2594
    %v2607 = vpack.c.b16 %v2597, %v2595
    %v2608 = vpack.c.b16 %v2600, %v2598
    %v2609 = vpack.c.b16 %v2601, %v2599
    %v2619 = vsel %vm171, %v2555, 0
    %2621 = vmatprep.subr.bf16.mxu0 %v2603
    %2622 = vmatpush1.bf16.msra.mxu0 %v2602
    %2623 = vmatprep.subr.bf16.mxu0 %v2605
    %2624 = vmatpush1.bf16.msra.mxu0 %v2604
    %2625 = vmatprep.subr.bf16.mxu0 %v2607
    %2626 = vmatpush1.bf16.msra.mxu0 %v2606
    %2627 = vmatprep.subr.bf16.mxu0 %v2609
    %2628 = vmatpush1.bf16.msra.mxu0 %v2608
    %2629 = vmatprep.subr.bf16.mxu0 0
    %2630 = vmatpush1.bf16.msra.mxu0 0
    %2631 = vmatprep.subr.bf16.mxu0 0
    %2632 = vmatpush1.bf16.msra.mxu0 0
    %2633 = vmatprep.subr.bf16.mxu0 0
    %2634 = vmatpush1.bf16.msra.mxu0 0
    %2635 = vmatprep.subr.bf16.mxu0 0
    %2636 = vmatpush1.bf16.msra.mxu0 0
    %2637 = vmatprep.subr.bf16.mxu0 0
    %2638 = vmatpush1.bf16.msra.mxu0 0
    %2639 = vmatprep.subr.bf16.mxu0 0
    %2640 = vmatpush1.bf16.msra.mxu0 0
    %2641 = vmatprep.subr.bf16.mxu0 0
    %2642 = vmatpush1.bf16.msra.mxu0 0
    %2643 = vmatprep.subr.bf16.mxu0 0
    %2644 = vmatpush1.bf16.msra.mxu0 0
    %2645 = vmatprep.subr.bf16.mxu0 0
    %2646 = vmatpush1.bf16.msra.mxu0 0
    %2647 = vmatprep.subr.bf16.mxu0 0
    %2648 = vmatpush1.bf16.msra.mxu0 0
    %2649 = vmatprep.subr.bf16.mxu0 0
    %2650 = vmatpush1.bf16.msra.mxu0 0
    %2651 = vmatprep.subr.bf16.mxu0 0
    %2652 = vmatpush1.bf16.msra.mxu0 0
    %2653 = vmatprep.mubr.bf16.mxu0 0
    %2654 = vmatmul.mubr.bf16.gmra.mrb[0].mxu0 %v2619
    %v2655 = vpop.f32.mrb[0].mxu0
    %v2656 = vadd.f32 %v2571, %v2655
    %v2657 = vpop.f32.mrb[0].mxu0
    %v2658 = vadd.f32 %v2575, %v2657
    %v2659 = vpop.f32.mrb[0].mxu0
    %v2660 = vpop.f32.mrb[0].mxu0
    %2661 = vdwg.mxu0
    %s2662 = scalar_lea.vmem %s4, 64
    %v2663 = vld [vmem:[%s2662] sm:$0xff]
    %v2664 = vld [vmem:[%s2662 + $0x8] sm:$0xff]
    %v2665 = vld [vmem:[%s2662 + $0x10] sm:$0xff]
    %v2666 = vld [vmem:[%s2662 + $0x18] sm:$0xff]
    %v2667 = vld [vmem:[%s2662 + $0x20] sm:$0xff]
    %v2668 = vld [vmem:[%s2662 + $0x28] sm:$0xff]
    %v2669 = vld [vmem:[%s2662 + $0x30] sm:$0xff]
    %v2670 = vld [vmem:[%s2662 + $0x38] sm:$0xff]
    %s2671 = scalar_lea.vmem %s5, 2
    %v2672 = vld [vmem:[%s2671] sm:$0x3]
    %v2674 = vlaneseq
    %v2675 = vshrl.u32 %v2674, 7
    %v2676 = vsub.s32 0, %v2675
    %v2677 = vrot.slane %v2672, %v2676
    %v2678 = vlaneseq
    %v2679 = vshrl.u32 %v2678, 7
    %v2680 = vsub.s32 1, %v2679
    %v2681 = vrot.slane %v2672, %v2680
    %s2684 = scalar_lea.vmem [#allocation8], 64
    %v2685 = vld [vmem:[%s2684] sm:$0xf]
    %v2686 = vld [vmem:[%s2684 + $0x4] sm:$0xf]
    %v2687 = vld [vmem:[%s2684 + $0x8] sm:$0xf]
    %v2688 = vld [vmem:[%s2684 + $0xc] sm:$0xf]
    %v2689 = vld [vmem:[%s2684 + $0x10] sm:$0xf]
    %v2690 = vld [vmem:[%s2684 + $0x14] sm:$0xf]
    %v2691 = vld [vmem:[%s2684 + $0x18] sm:$0xf]
    %v2692 = vld [vmem:[%s2684 + $0x1c] sm:$0xf]
    %v2693 = vld [vmem:[%s2684 + $0x20] sm:$0xf]
    %v2694 = vld [vmem:[%s2684 + $0x24] sm:$0xf]
    %v2695 = vld [vmem:[%s2684 + $0x28] sm:$0xf]
    %v2696 = vld [vmem:[%s2684 + $0x2c] sm:$0xf]
    %v2697 = vld [vmem:[%s2684 + $0x30] sm:$0xf]
    %v2698 = vld [vmem:[%s2684 + $0x34] sm:$0xf]
    %v2699 = vld [vmem:[%s2684 + $0x38] sm:$0xf]
    %v2700 = vld [vmem:[%s2684 + $0x3c] sm:$0xf]
    %s2701 = scalar_lea.vmem %s7, 64
    %v2702 = vld [vmem:[%s2701] sm:$0xf]
    %v2703 = vld [vmem:[%s2701 + $0x4] sm:$0xf]
    %v2704 = vld [vmem:[%s2701 + $0x8] sm:$0xf]
    %v2705 = vld [vmem:[%s2701 + $0xc] sm:$0xf]
    %v2706 = vld [vmem:[%s2701 + $0x10] sm:$0xf]
    %v2707 = vld [vmem:[%s2701 + $0x14] sm:$0xf]
    %v2708 = vld [vmem:[%s2701 + $0x18] sm:$0xf]
    %v2709 = vld [vmem:[%s2701 + $0x1c] sm:$0xf]
    %v2710 = vld [vmem:[%s2701 + $0x20] sm:$0xf]
    %v2711 = vld [vmem:[%s2701 + $0x24] sm:$0xf]
    %v2712 = vld [vmem:[%s2701 + $0x28] sm:$0xf]
    %v2713 = vld [vmem:[%s2701 + $0x2c] sm:$0xf]
    %v2714 = vld [vmem:[%s2701 + $0x30] sm:$0xf]
    %v2715 = vld [vmem:[%s2701 + $0x34] sm:$0xf]
    %v2716 = vld [vmem:[%s2701 + $0x38] sm:$0xf]
    %v2717 = vld [vmem:[%s2701 + $0x3c] sm:$0xf]
    %s2718 = scalar_lea.vmem [#allocation5], 2
    %v2719 = vld [vmem:[%s2718] sm:$0x3]
    %v2720 = vpack.c.bf16 %v2719, %v2719
    %v2729 = vunpack.c.l.b16 %v2663
    %v2730 = vunpack.c.h.b16 %v2663
    %v2731 = vunpack.c.l.b16 %v2664
    %v2732 = vunpack.c.h.b16 %v2664
    %v2733 = vunpack.c.l.b16 %v2665
    %v2734 = vunpack.c.h.b16 %v2665
    %v2735 = vunpack.c.l.b16 %v2666
    %v2736 = vunpack.c.h.b16 %v2666
    %v2737 = vunpack.c.l.b16 %v2667
    %v2738 = vunpack.c.h.b16 %v2667
    %v2739 = vunpack.c.l.b16 %v2668
    %v2740 = vunpack.c.h.b16 %v2668
    %v2741 = vunpack.c.l.b16 %v2669
    %v2742 = vunpack.c.h.b16 %v2669
    %v2743 = vunpack.c.l.b16 %v2670
    %v2744 = vunpack.c.h.b16 %v2670
    %v2745 = vpack.c.b16 %v2731, %v2729
    %v2746 = vpack.c.b16 %v2732, %v2730
    %v2747 = vpack.c.b16 %v2735, %v2733
    %v2748 = vpack.c.b16 %v2736, %v2734
    %v2749 = vpack.c.b16 %v2739, %v2737
    %v2750 = vpack.c.b16 %v2740, %v2738
    %v2751 = vpack.c.b16 %v2743, %v2741
    %v2752 = vpack.c.b16 %v2744, %v2742
    %v2762 = vsel %vm171, %v2720, 0
    %2764 = vmatprep.subr.bf16.mxu0 %v2746
    %2765 = vmatpush1.bf16.msra.mxu0 %v2745
    %2766 = vmatprep.subr.bf16.mxu0 %v2748
    %2767 = vmatpush1.bf16.msra.mxu0 %v2747
    %2768 = vmatprep.subr.bf16.mxu0 %v2750
    %2769 = vmatpush1.bf16.msra.mxu0 %v2749
    %2770 = vmatprep.subr.bf16.mxu0 %v2752
    %2771 = vmatpush1.bf16.msra.mxu0 %v2751
    %2772 = vmatprep.subr.bf16.mxu0 0
    %2773 = vmatpush1.bf16.msra.mxu0 0
    %2774 = vmatprep.subr.bf16.mxu0 0
    %2775 = vmatpush1.bf16.msra.mxu0 0
    %2776 = vmatprep.subr.bf16.mxu0 0
    %2777 = vmatpush1.bf16.msra.mxu0 0
    %2778 = vmatprep.subr.bf16.mxu0 0
    %2779 = vmatpush1.bf16.msra.mxu0 0
    %2780 = vmatprep.subr.bf16.mxu0 0
    %2781 = vmatpush1.bf16.msra.mxu0 0
    %2782 = vmatprep.subr.bf16.mxu0 0
    %2783 = vmatpush1.bf16.msra.mxu0 0
    %2784 = vmatprep.subr.bf16.mxu0 0
    %2785 = vmatpush1.bf16.msra.mxu0 0
    %2786 = vmatprep.subr.bf16.mxu0 0
    %2787 = vmatpush1.bf16.msra.mxu0 0
    %2788 = vmatprep.subr.bf16.mxu0 0
    %2789 = vmatpush1.bf16.msra.mxu0 0
    %2790 = vmatprep.subr.bf16.mxu0 0
    %2791 = vmatpush1.bf16.msra.mxu0 0
    %2792 = vmatprep.subr.bf16.mxu0 0
    %2793 = vmatpush1.bf16.msra.mxu0 0
    %2794 = vmatprep.subr.bf16.mxu0 0
    %2795 = vmatpush1.bf16.msra.mxu0 0
    %2796 = vmatprep.mubr.bf16.mxu0 0
    %2797 = vmatmul.mubr.bf16.gmra.mrb[0].mxu0 %v2762
    %v2798 = vpop.f32.mrb[0].mxu0
    %v2799 = vadd.f32 %v2677, %v2798
    %v2800 = vpop.f32.mrb[0].mxu0
    %v2801 = vadd.f32 %v2681, %v2800
    %v2802 = vpop.f32.mrb[0].mxu0
    %v2803 = vpop.f32.mrb[0].mxu0
    %2804 = vdwg.mxu0
    %v2805 = vadd.f32 %v2656, %v2799
    %v2806 = vsub.f32 0.0, %v2805
    %v2807 = vmul.f32 %v2806, 1.442695
    %v2808 = vpow.pop %v2807
    %v2809 = vadd.f32 %v2808, 1.0
    %v2810 = vrcp.pop %v2809
    %v2811 = vmul.f32 %v2810, %v2801
    %v2812 = vadd.f32 %v2658, %v2811
    %v2813 = vtanh.pop %v2812
    %v2814 = vsub.f32 %v2719, %v2813
    %2816 = vrot.lane.b32.xlu0 %v2814, 64
    %v2817 = vpop.permute.xlu0 %2816
    %v2819 = vmul.f32 %v2810, %v2817
    %2821 = vrot.lane.b32.xlu0 %v2819, 64
    %v2822 = vpop.permute.xlu0 %2821
    %v2824 = vadd.f32 %v2813, %v2822
    %v2827 = vunpack.c.l.s4 1966171168
    %v2828 = vunpack.c.0.s8 %v2827
    %v2829 = vlaneseq
    %v2830 = vshrl.u32 %v2829, 7
    %v2831 = vsub.s32 %v2828, %v2830
    %v2832 = vrot.slane %v2824, %v2831
    %v2833 = vcombine.high %v2832, %v2832
    %v2835 = vunpack.c.l.s4 1966171168
    %v2836 = vunpack.c.0.s8 %v2835
    %v2837 = vlaneseq
    %v2838 = vshrl.u32 %v2837, 7
    %v2839 = vsub.s32 %v2836, %v2838
    %v2840 = vrot.slane %v2832, %v2839
    %v2842 = vunpack.c.l.s4 1966171168
    %v2843 = vunpack.c.0.s8 %v2842
    %v2844 = vlaneseq
    %v2845 = vshrl.u32 %v2844, 7
    %v2846 = vsub.s32 %v2843, %v2845
    %v2847 = vrot.slane %v2833, %v2846
    %v2848 = vlaneseq
    %v2849 = vshrl.u32 %v2848, 7
    %v2850 = vsub.s32 0, %v2849
    %v2851 = vrot.slane %v2824, %v2850
    %2853 = vbcast.lane.b32.xlu0 %v2851, 256
    %v2854 = vpop.permute.xlu0 %2853
    %s2856 = sor.u32 256, 8
    %2857 = vbcast.lane.b32.xlu0 %v2851, %s2856
    %v2858 = vpop.permute.xlu0 %2857
    %s2860 = sor.u32 256, 16
    %2861 = vbcast.lane.b32.xlu0 %v2851, %s2860
    %v2862 = vpop.permute.xlu0 %2861
    %s2864 = sor.u32 256, 24
    %2865 = vbcast.lane.b32.xlu0 %v2851, %s2864
    %v2866 = vpop.permute.xlu0 %2865
    %s2868 = sor.u32 256, 32
    %2869 = vbcast.lane.b32.xlu0 %v2851, %s2868
    %v2870 = vpop.permute.xlu0 %2869
    %s2872 = sor.u32 256, 40
    %2873 = vbcast.lane.b32.xlu0 %v2851, %s2872
    %v2874 = vpop.permute.xlu0 %2873
    %s2876 = sor.u32 256, 48
    %2877 = vbcast.lane.b32.xlu0 %v2851, %s2876
    %v2878 = vpop.permute.xlu0 %2877
    %s2880 = sor.u32 256, 56
    %2881 = vbcast.lane.b32.xlu0 %v2851, %s2880
    %v2882 = vpop.permute.xlu0 %2881
    %v2883 = vlaneseq
    %v2884 = vshrl.u32 %v2883, 7
    %v2885 = vsub.s32 1, %v2884
    %v2886 = vrot.slane %v2824, %v2885
    %2888 = vbcast.lane.b32.xlu0 %v2886, 256
    %v2889 = vpop.permute.xlu0 %2888
    %s2891 = sor.u32 256, 8
    %2892 = vbcast.lane.b32.xlu0 %v2886, %s2891
    %v2893 = vpop.permute.xlu0 %2892
    %s2895 = sor.u32 256, 16
    %2896 = vbcast.lane.b32.xlu0 %v2886, %s2895
    %v2897 = vpop.permute.xlu0 %2896
    %s2899 = sor.u32 256, 24
    %2900 = vbcast.lane.b32.xlu0 %v2886, %s2899
    %v2901 = vpop.permute.xlu0 %2900
    %s2903 = sor.u32 256, 32
    %2904 = vbcast.lane.b32.xlu0 %v2886, %s2903
    %v2905 = vpop.permute.xlu0 %2904
    %s2907 = sor.u32 256, 40
    %2908 = vbcast.lane.b32.xlu0 %v2886, %s2907
    %v2909 = vpop.permute.xlu0 %2908
    %s2911 = sor.u32 256, 48
    %2912 = vbcast.lane.b32.xlu0 %v2886, %s2911
    %v2913 = vpop.permute.xlu0 %2912
    %s2915 = sor.u32 256, 56
    %2916 = vbcast.lane.b32.xlu0 %v2886, %s2915
    %v2917 = vpop.permute.xlu0 %2916
    %v2918 = vlaneseq
    %v2919 = vshrl.u32 %v2918, 7
    %v2920 = vsub.s32 0, %v2919
    %v2921 = vrot.slane %v2840, %v2920
    %v2922 = vlaneseq
    %v2923 = vshrl.u32 %v2922, 7
    %v2924 = vsub.s32 0, %v2923
    %v2925 = vrot.slane %v2847, %v2924
    %vm2928 = vcmp.lt.f32.partialorder %v2921, %v2854
    %vm2929 = vcmp.lt.f32.partialorder %v2921, %v2858
    %vm2930 = vcmp.lt.f32.partialorder %v2921, %v2862
    %vm2931 = vcmp.lt.f32.partialorder %v2921, %v2866
    %vm2932 = vcmp.lt.f32.partialorder %v2921, %v2870
    %vm2933 = vcmp.lt.f32.partialorder %v2921, %v2874
    %vm2934 = vcmp.lt.f32.partialorder %v2921, %v2878
    %vm2935 = vcmp.lt.f32.partialorder %v2921, %v2882
    %vm2936 = vcmp.lt.f32.partialorder %v2925, %v2889
    %vm2937 = vcmp.lt.f32.partialorder %v2925, %v2893
    %vm2938 = vcmp.lt.f32.partialorder %v2925, %v2897
    %vm2939 = vcmp.lt.f32.partialorder %v2925, %v2901
    %vm2940 = vcmp.lt.f32.partialorder %v2925, %v2905
    %vm2941 = vcmp.lt.f32.partialorder %v2925, %v2909
    %vm2942 = vcmp.lt.f32.partialorder %v2925, %v2913
    %vm2943 = vcmp.lt.f32.partialorder %v2925, %v2917
    %vm2944 = vcmp.eq.f32.partialorder %v2921, %v2854
    %vm2945 = vcmp.eq.f32.partialorder %v2921, %v2858
    %vm2946 = vcmp.eq.f32.partialorder %v2921, %v2862
    %vm2947 = vcmp.eq.f32.partialorder %v2921, %v2866
    %vm2948 = vcmp.eq.f32.partialorder %v2921, %v2870
    %vm2949 = vcmp.eq.f32.partialorder %v2921, %v2874
    %vm2950 = vcmp.eq.f32.partialorder %v2921, %v2878
    %vm2951 = vcmp.eq.f32.partialorder %v2921, %v2882
    %vm2952 = vcmp.eq.f32.partialorder %v2925, %v2889
    %vm2953 = vcmp.eq.f32.partialorder %v2925, %v2893
    %vm2954 = vcmp.eq.f32.partialorder %v2925, %v2897
    %vm2955 = vcmp.eq.f32.partialorder %v2925, %v2901
    %vm2956 = vcmp.eq.f32.partialorder %v2925, %v2905
    %vm2957 = vcmp.eq.f32.partialorder %v2925, %v2909
    %vm2958 = vcmp.eq.f32.partialorder %v2925, %v2913
    %vm2959 = vcmp.eq.f32.partialorder %v2925, %v2917
    %vm2960 = vmand %vm2944, %vm525
    %vm2961 = vmand %vm2945, %vm526
    %vm2962 = vmand %vm2946, %vm527
    %vm2963 = vmand %vm2947, %vm528
    %vm2964 = vmand %vm2948, %vm529
    %vm2965 = vmand %vm2949, %vm530
    %vm2966 = vmand %vm2950, %vm531
    %vm2967 = vmand %vm2951, %vm532
    %vm2968 = vmand %vm2952, %vm525
    %vm2969 = vmand %vm2953, %vm526
    %vm2970 = vmand %vm2954, %vm527
    %vm2971 = vmand %vm2955, %vm528
    %vm2972 = vmand %vm2956, %vm529
    %vm2973 = vmand %vm2957, %vm530
    %vm2974 = vmand %vm2958, %vm531
    %vm2975 = vmand %vm2959, %vm532
    %vm2976 = vmor %vm2928, %vm2960
    %vm2977 = vmor %vm2929, %vm2961
    %vm2978 = vmor %vm2930, %vm2962
    %vm2979 = vmor %vm2931, %vm2963
    %vm2980 = vmor %vm2932, %vm2964
    %vm2981 = vmor %vm2933, %vm2965
    %vm2982 = vmor %vm2934, %vm2966
    %vm2983 = vmor %vm2935, %vm2967
    %vm2984 = vmor %vm2936, %vm2968
    %vm2985 = vmor %vm2937, %vm2969
    %vm2986 = vmor %vm2938, %vm2970
    %vm2987 = vmor %vm2939, %vm2971
    %vm2988 = vmor %vm2940, %vm2972
    %vm2989 = vmor %vm2941, %vm2973
    %vm2990 = vmor %vm2942, %vm2974
    %vm2991 = vmor %vm2943, %vm2975
    %v2992 = vsel %vm2976, 1, 0
    %v2993 = vsel %vm2977, 1, 0
    %v2994 = vsel %vm2978, 1, 0
    %v2995 = vsel %vm2979, 1, 0
    %v2996 = vsel %vm2980, 1, 0
    %v2997 = vsel %vm2981, 1, 0
    %v2998 = vsel %vm2982, 1, 0
    %v2999 = vsel %vm2983, 1, 0
    %v3000 = vsel %vm2984, 1, 0
    %v3001 = vsel %vm2985, 1, 0
    %v3002 = vsel %vm2986, 1, 0
    %v3003 = vsel %vm2987, 1, 0
    %v3004 = vsel %vm2988, 1, 0
    %v3005 = vsel %vm2989, 1, 0
    %v3006 = vsel %vm2990, 1, 0
    %v3007 = vsel %vm2991, 1, 0
    %v3008 = vcvt.s32.f32 %v2992
    %v3009 = vcvt.s32.f32 %v2993
    %v3010 = vcvt.s32.f32 %v2994
    %v3011 = vcvt.s32.f32 %v2995
    %v3012 = vcvt.s32.f32 %v2996
    %v3013 = vcvt.s32.f32 %v2997
    %v3014 = vcvt.s32.f32 %v2998
    %v3015 = vcvt.s32.f32 %v2999
    %v3016 = vcvt.s32.f32 %v3000
    %v3017 = vcvt.s32.f32 %v3001
    %v3018 = vcvt.s32.f32 %v3002
    %v3019 = vcvt.s32.f32 %v3003
    %v3020 = vcvt.s32.f32 %v3004
    %v3021 = vcvt.s32.f32 %v3005
    %v3022 = vcvt.s32.f32 %v3006
    %v3023 = vcvt.s32.f32 %v3007
    %v3024 = vsel %vm171, %v3008, 0.0
    %3025 = vadd.xlane.f32.xlu0 %v3024
    %v3026 = vpop.xlane.xlu0 %3025
    %v3027 = vsel %vm171, %v3009, 0.0
    %3028 = vadd.xlane.f32.xlu0 %v3027
    %v3029 = vpop.xlane.xlu0 %3028
    %v3030 = vsel %vm171, %v3010, 0.0
    %3031 = vadd.xlane.f32.xlu0 %v3030
    %v3032 = vpop.xlane.xlu0 %3031
    %v3033 = vsel %vm171, %v3011, 0.0
    %3034 = vadd.xlane.f32.xlu0 %v3033
    %v3035 = vpop.xlane.xlu0 %3034
    %v3036 = vsel %vm171, %v3012, 0.0
    %3037 = vadd.xlane.f32.xlu0 %v3036
    %v3038 = vpop.xlane.xlu0 %3037
    %v3039 = vsel %vm171, %v3013, 0.0
    %3040 = vadd.xlane.f32.xlu0 %v3039
    %v3041 = vpop.xlane.xlu0 %3040
    %v3042 = vsel %vm171, %v3014, 0.0
    %3043 = vadd.xlane.f32.xlu0 %v3042
    %v3044 = vpop.xlane.xlu0 %3043
    %v3045 = vsel %vm171, %v3015, 0.0
    %3046 = vadd.xlane.f32.xlu0 %v3045
    %v3047 = vpop.xlane.xlu0 %3046
    %v3048 = vsel %vm171, %v3016, 0.0
    %3049 = vadd.xlane.f32.xlu0 %v3048
    %v3050 = vpop.xlane.xlu0 %3049
    %v3051 = vsel %vm171, %v3017, 0.0
    %3052 = vadd.xlane.f32.xlu0 %v3051
    %v3053 = vpop.xlane.xlu0 %3052
    %v3054 = vsel %vm171, %v3018, 0.0
    %3055 = vadd.xlane.f32.xlu0 %v3054
    %v3056 = vpop.xlane.xlu0 %3055
    %v3057 = vsel %vm171, %v3019, 0.0
    %3058 = vadd.xlane.f32.xlu0 %v3057
    %v3059 = vpop.xlane.xlu0 %3058
    %v3060 = vsel %vm171, %v3020, 0.0
    %3061 = vadd.xlane.f32.xlu0 %v3060
    %v3062 = vpop.xlane.xlu0 %3061
    %v3063 = vsel %vm171, %v3021, 0.0
    %3064 = vadd.xlane.f32.xlu0 %v3063
    %v3065 = vpop.xlane.xlu0 %3064
    %v3066 = vsel %vm171, %v3022, 0.0
    %3067 = vadd.xlane.f32.xlu0 %v3066
    %v3068 = vpop.xlane.xlu0 %3067
    %v3069 = vsel %vm171, %v3023, 0.0
    %3070 = vadd.xlane.f32.xlu0 %v3069
    %v3071 = vpop.xlane.xlu0 %3070
    %vm3072 = vcmp.eq.f32.partialorder %v3026, %v108
    %vm3073 = vcmp.eq.f32.partialorder %v3029, %v108
    %vm3074 = vcmp.eq.f32.partialorder %v3032, %v108
    %vm3075 = vcmp.eq.f32.partialorder %v3035, %v108
    %vm3076 = vcmp.eq.f32.partialorder %v3038, %v108
    %vm3077 = vcmp.eq.f32.partialorder %v3041, %v108
    %vm3078 = vcmp.eq.f32.partialorder %v3044, %v108
    %vm3079 = vcmp.eq.f32.partialorder %v3047, %v108
    %vm3080 = vcmp.eq.f32.partialorder %v3050, %v108
    %vm3081 = vcmp.eq.f32.partialorder %v3053, %v108
    %vm3082 = vcmp.eq.f32.partialorder %v3056, %v108
    %vm3083 = vcmp.eq.f32.partialorder %v3059, %v108
    %vm3084 = vcmp.eq.f32.partialorder %v3062, %v108
    %vm3085 = vcmp.eq.f32.partialorder %v3065, %v108
    %vm3086 = vcmp.eq.f32.partialorder %v3068, %v108
    %vm3087 = vcmp.eq.f32.partialorder %v3071, %v108
    %v3088 = vsel %vm3072, 1, 0
    %v3089 = vsel %vm3073, 1, 0
    %v3090 = vsel %vm3074, 1, 0
    %v3091 = vsel %vm3075, 1, 0
    %v3092 = vsel %vm3076, 1, 0
    %v3093 = vsel %vm3077, 1, 0
    %v3094 = vsel %vm3078, 1, 0
    %v3095 = vsel %vm3079, 1, 0
    %v3096 = vsel %vm3080, 1, 0
    %v3097 = vsel %vm3081, 1, 0
    %v3098 = vsel %vm3082, 1, 0
    %v3099 = vsel %vm3083, 1, 0
    %v3100 = vsel %vm3084, 1, 0
    %v3101 = vsel %vm3085, 1, 0
    %v3102 = vsel %vm3086, 1, 0
    %v3103 = vsel %vm3087, 1, 0
    %v3104 = vcvt.s32.f32 %v3088
    %v3105 = vcvt.s32.f32 %v3089
    %v3106 = vcvt.s32.f32 %v3090
    %v3107 = vcvt.s32.f32 %v3091
    %v3108 = vcvt.s32.f32 %v3092
    %v3109 = vcvt.s32.f32 %v3093
    %v3110 = vcvt.s32.f32 %v3094
    %v3111 = vcvt.s32.f32 %v3095
    %v3112 = vcvt.s32.f32 %v3096
    %v3113 = vcvt.s32.f32 %v3097
    %v3114 = vcvt.s32.f32 %v3098
    %v3115 = vcvt.s32.f32 %v3099
    %v3116 = vcvt.s32.f32 %v3100
    %v3117 = vcvt.s32.f32 %v3101
    %v3118 = vcvt.s32.f32 %v3102
    %v3119 = vcvt.s32.f32 %v3103
    %v3120 = vmul.f32 %v3104, %v2854
    %v3121 = vmul.f32 %v3105, %v2858
    %v3122 = vmul.f32 %v3106, %v2862
    %v3123 = vmul.f32 %v3107, %v2866
    %v3124 = vmul.f32 %v3108, %v2870
    %v3125 = vmul.f32 %v3109, %v2874
    %v3126 = vmul.f32 %v3110, %v2878
    %v3127 = vmul.f32 %v3111, %v2882
    %v3128 = vmul.f32 %v3112, %v2889
    %v3129 = vmul.f32 %v3113, %v2893
    %v3130 = vmul.f32 %v3114, %v2897
    %v3131 = vmul.f32 %v3115, %v2901
    %v3132 = vmul.f32 %v3116, %v2905
    %v3133 = vmul.f32 %v3117, %v2909
    %v3134 = vmul.f32 %v3118, %v2913
    %v3135 = vmul.f32 %v3119, %v2917
    %v3136 = vsel %vm171, %v3120, 0.0
    %v3137 = vsel %vm171, %v3121, 0.0
    %v3138 = vadd.f32 %v3136, %v3137
    %v3139 = vsel %vm171, %v3122, 0.0
    %v3140 = vadd.f32 %v3138, %v3139
    %v3141 = vsel %vm171, %v3123, 0.0
    %v3142 = vadd.f32 %v3140, %v3141
    %v3143 = vsel %vm171, %v3124, 0.0
    %v3144 = vadd.f32 %v3142, %v3143
    %v3145 = vsel %vm171, %v3125, 0.0
    %v3146 = vadd.f32 %v3144, %v3145
    %v3147 = vsel %vm171, %v3126, 0.0
    %v3148 = vadd.f32 %v3146, %v3147
    %v3149 = vsel %vm171, %v3127, 0.0
    %v3150 = vadd.f32 %v3148, %v3149
    %v3151 = vrot.slane %v3150, 4
    %v3152 = vadd.f32 %v3150, %v3151
    %v3153 = vrot.slane %v3152, 2
    %v3154 = vadd.f32 %v3152, %v3153
    %v3155 = vrot.slane %v3154, 1
    %v3156 = vadd.f32 %v3154, %v3155
    %v3157 = vsel %vm171, %v3128, 0.0
    %v3158 = vsel %vm171, %v3129, 0.0
    %v3159 = vadd.f32 %v3157, %v3158
    %v3160 = vsel %vm171, %v3130, 0.0
    %v3161 = vadd.f32 %v3159, %v3160
    %v3162 = vsel %vm171, %v3131, 0.0
    %v3163 = vadd.f32 %v3161, %v3162
    %v3164 = vsel %vm171, %v3132, 0.0
    %v3165 = vadd.f32 %v3163, %v3164
    %v3166 = vsel %vm171, %v3133, 0.0
    %v3167 = vadd.f32 %v3165, %v3166
    %v3168 = vsel %vm171, %v3134, 0.0
    %v3169 = vadd.f32 %v3167, %v3168
    %v3170 = vsel %vm171, %v3135, 0.0
    %v3171 = vadd.f32 %v3169, %v3170
    %v3172 = vrot.slane %v3171, 4
    %v3173 = vadd.f32 %v3171, %v3172
    %v3174 = vrot.slane %v3173, 2
    %v3175 = vadd.f32 %v3173, %v3174
    %v3176 = vrot.slane %v3175, 1
    %v3177 = vadd.f32 %v3175, %v3176
    %v3180 = vsel %vm753, %v3177, %v3156
    %3181 = vrot.lane.b32.xlu0 %v3180, 64
    %v3182 = vpop.permute.xlu0 %3181
    %v3184 = vsel %vm171, %v2824, %v3182
    %v3185 = vpack.c.bf16 %v3184, %v3184
    %v3202 = vunpack.c.l.b16 %v2685
    %v3203 = vunpack.c.l.b16 %v2686
    %v3204 = vunpack.c.l.b16 %v2687
    %v3205 = vunpack.c.l.b16 %v2688
    %v3206 = vunpack.c.l.b16 %v2689
    %v3207 = vunpack.c.l.b16 %v2690
    %v3208 = vunpack.c.l.b16 %v2691
    %v3209 = vunpack.c.l.b16 %v2692
    %v3210 = vunpack.c.l.b16 %v2693
    %v3211 = vunpack.c.l.b16 %v2694
    %v3212 = vunpack.c.l.b16 %v2695
    %v3213 = vunpack.c.l.b16 %v2696
    %v3214 = vunpack.c.l.b16 %v2697
    %v3215 = vunpack.c.l.b16 %v2698
    %v3216 = vunpack.c.l.b16 %v2699
    %v3217 = vunpack.c.l.b16 %v2700
    %v3218 = vpack.c.b16 %v3203, %v3202
    %v3219 = vpack.c.b16 %v3205, %v3204
    %v3220 = vpack.c.b16 %v3207, %v3206
    %v3221 = vpack.c.b16 %v3209, %v3208
    %v3222 = vpack.c.b16 %v3211, %v3210
    %v3223 = vpack.c.b16 %v3213, %v3212
    %v3224 = vpack.c.b16 %v3215, %v3214
    %v3225 = vpack.c.b16 %v3217, %v3216
    %3234 = vmatprep.subr.bf16.mxu0 0
    %3235 = vmatpush1.bf16.msra.mxu0 %v3218
    %3236 = vmatprep.subr.bf16.mxu0 0
    %3237 = vmatpush1.bf16.msra.mxu0 %v3219
    %3238 = vmatprep.subr.bf16.mxu0 0
    %3239 = vmatpush1.bf16.msra.mxu0 %v3220
    %3240 = vmatprep.subr.bf16.mxu0 0
    %3241 = vmatpush1.bf16.msra.mxu0 %v3221
    %3242 = vmatprep.subr.bf16.mxu0 0
    %3243 = vmatpush1.bf16.msra.mxu0 %v3222
    %3244 = vmatprep.subr.bf16.mxu0 0
    %3245 = vmatpush1.bf16.msra.mxu0 %v3223
    %3246 = vmatprep.subr.bf16.mxu0 0
    %3247 = vmatpush1.bf16.msra.mxu0 %v3224
    %3248 = vmatprep.subr.bf16.mxu0 0
    %3249 = vmatpush1.bf16.msra.mxu0 %v3225
    %3250 = vmatprep.subr.bf16.mxu0 0
    %3251 = vmatpush1.bf16.msra.mxu0 0
    %3252 = vmatprep.subr.bf16.mxu0 0
    %3253 = vmatpush1.bf16.msra.mxu0 0
    %3254 = vmatprep.subr.bf16.mxu0 0
    %3255 = vmatpush1.bf16.msra.mxu0 0
    %3256 = vmatprep.subr.bf16.mxu0 0
    %3257 = vmatpush1.bf16.msra.mxu0 0
    %3258 = vmatprep.subr.bf16.mxu0 0
    %3259 = vmatpush1.bf16.msra.mxu0 0
    %3260 = vmatprep.subr.bf16.mxu0 0
    %3261 = vmatpush1.bf16.msra.mxu0 0
    %3262 = vmatprep.subr.bf16.mxu0 0
    %3263 = vmatpush1.bf16.msra.mxu0 0
    %3264 = vmatprep.subr.bf16.mxu0 0
    %3265 = vmatpush1.bf16.msra.mxu0 0
    %3266 = vmatprep.mubr.bf16.mxu0 0
    %3267 = vmatmul.mubr.bf16.gmra.mrb[0].mxu0 %v3185
    %v3268 = vpop.f32.mrb[0].mxu0
    %v3269 = vadd.f32 0.0, %v3268
    %v3270 = vpop.f32.mrb[0].mxu0
    %v3271 = vpop.f32.mrb[0].mxu0
    %v3272 = vpop.f32.mrb[0].mxu0
    %3273 = vdwg.mxu0
    %v3274 = vmax.f32 %v3269, 0.0
    %v3275 = vpack.c.bf16 %v3274, %v3274
    %v3292 = vunpack.c.l.b16 %v2702
    %v3293 = vunpack.c.l.b16 %v2703
    %v3294 = vunpack.c.l.b16 %v2704
    %v3295 = vunpack.c.l.b16 %v2705
    %v3296 = vunpack.c.l.b16 %v2706
    %v3297 = vunpack.c.l.b16 %v2707
    %v3298 = vunpack.c.l.b16 %v2708
    %v3299 = vunpack.c.l.b16 %v2709
    %v3300 = vunpack.c.l.b16 %v2710
    %v3301 = vunpack.c.l.b16 %v2711
    %v3302 = vunpack.c.l.b16 %v2712
    %v3303 = vunpack.c.l.b16 %v2713
    %v3304 = vunpack.c.l.b16 %v2714
    %v3305 = vunpack.c.l.b16 %v2715
    %v3306 = vunpack.c.l.b16 %v2716
    %v3307 = vunpack.c.l.b16 %v2717
    %v3308 = vpack.c.b16 %v3293, %v3292
    %v3309 = vpack.c.b16 %v3295, %v3294
    %v3310 = vpack.c.b16 %v3297, %v3296
    %v3311 = vpack.c.b16 %v3299, %v3298
    %v3312 = vpack.c.b16 %v3301, %v3300
    %v3313 = vpack.c.b16 %v3303, %v3302
    %v3314 = vpack.c.b16 %v3305, %v3304
    %v3315 = vpack.c.b16 %v3307, %v3306
    %3324 = vmatprep.subr.bf16.mxu0 0
    %3325 = vmatpush1.bf16.msra.mxu0 %v3308
    %3326 = vmatprep.subr.bf16.mxu0 0
    %3327 = vmatpush1.bf16.msra.mxu0 %v3309
    %3328 = vmatprep.subr.bf16.mxu0 0
    %3329 = vmatpush1.bf16.msra.mxu0 %v3310
    %3330 = vmatprep.subr.bf16.mxu0 0
    %3331 = vmatpush1.bf16.msra.mxu0 %v3311
    %3332 = vmatprep.subr.bf16.mxu0 0
    %3333 = vmatpush1.bf16.msra.mxu0 %v3312
    %3334 = vmatprep.subr.bf16.mxu0 0
    %3335 = vmatpush1.bf16.msra.mxu0 %v3313
    %3336 = vmatprep.subr.bf16.mxu0 0
    %3337 = vmatpush1.bf16.msra.mxu0 %v3314
    %3338 = vmatprep.subr.bf16.mxu0 0
    %3339 = vmatpush1.bf16.msra.mxu0 %v3315
    %3340 = vmatprep.subr.bf16.mxu0 0
    %3341 = vmatpush1.bf16.msra.mxu0 0
    %3342 = vmatprep.subr.bf16.mxu0 0
    %3343 = vmatpush1.bf16.msra.mxu0 0
    %3344 = vmatprep.subr.bf16.mxu0 0
    %3345 = vmatpush1.bf16.msra.mxu0 0
    %3346 = vmatprep.subr.bf16.mxu0 0
    %3347 = vmatpush1.bf16.msra.mxu0 0
    %3348 = vmatprep.subr.bf16.mxu0 0
    %3349 = vmatpush1.bf16.msra.mxu0 0
    %3350 = vmatprep.subr.bf16.mxu0 0
    %3351 = vmatpush1.bf16.msra.mxu0 0
    %3352 = vmatprep.subr.bf16.mxu0 0
    %3353 = vmatpush1.bf16.msra.mxu0 0
    %3354 = vmatprep.subr.bf16.mxu0 0
    %3355 = vmatpush1.bf16.msra.mxu0 0
    %3356 = vmatprep.mubr.bf16.mxu0 0
    %3357 = vmatmul.mubr.bf16.gmra.mrb[0].mxu0 %v3275
    %v3358 = vpop.f32.mrb[0].mxu0
    %v3359 = vadd.f32 0.0, %v3358
    %v3360 = vpop.f32.mrb[0].mxu0
    %v3361 = vpop.f32.mrb[0].mxu0
    %v3362 = vpop.f32.mrb[0].mxu0
    %3363 = vdwg.mxu0
    %v3364 = vsub.f32 0.0, %v3359
    %v3365 = vmul.f32 %v3364, 1.442695
    %v3366 = vpow.pop %v3365
    %v3367 = vadd.f32 %v3366, 1.0
    %v3368 = vrcp.pop %v3367
    %v3369 = vmul.f32 %v2824, %v3368
    %v3370 = vpack.c.bf16 %v3369, %v3369
    %v3372 = vsel %vm171, %v3370, 0
    %3374 = vmatprep.subr.bf16.mxu0 %v2746
    %3375 = vmatpush1.bf16.msra.mxu0 %v2745
    %3376 = vmatprep.subr.bf16.mxu0 %v2748
    %3377 = vmatpush1.bf16.msra.mxu0 %v2747
    %3378 = vmatprep.subr.bf16.mxu0 %v2750
    %3379 = vmatpush1.bf16.msra.mxu0 %v2749
    %3380 = vmatprep.subr.bf16.mxu0 %v2752
    %3381 = vmatpush1.bf16.msra.mxu0 %v2751
    %3382 = vmatprep.subr.bf16.mxu0 0
    %3383 = vmatpush1.bf16.msra.mxu0 0
    %3384 = vmatprep.subr.bf16.mxu0 0
    %3385 = vmatpush1.bf16.msra.mxu0 0
    %3386 = vmatprep.subr.bf16.mxu0 0
    %3387 = vmatpush1.bf16.msra.mxu0 0
    %3388 = vmatprep.subr.bf16.mxu0 0
    %3389 = vmatpush1.bf16.msra.mxu0 0
    %3390 = vmatprep.subr.bf16.mxu0 0
    %3391 = vmatpush1.bf16.msra.mxu0 0
    %3392 = vmatprep.subr.bf16.mxu0 0
    %3393 = vmatpush1.bf16.msra.mxu0 0
    %3394 = vmatprep.subr.bf16.mxu0 0
    %3395 = vmatpush1.bf16.msra.mxu0 0
    %3396 = vmatprep.subr.bf16.mxu0 0
    %3397 = vmatpush1.bf16.msra.mxu0 0
    %3398 = vmatprep.subr.bf16.mxu0 0
    %3399 = vmatpush1.bf16.msra.mxu0 0
    %3400 = vmatprep.subr.bf16.mxu0 0
    %3401 = vmatpush1.bf16.msra.mxu0 0
    %3402 = vmatprep.subr.bf16.mxu0 0
    %3403 = vmatpush1.bf16.msra.mxu0 0
    %3404 = vmatprep.subr.bf16.mxu0 0
    %3405 = vmatpush1.bf16.msra.mxu0 0
    %3406 = vmatprep.mubr.bf16.mxu0 0
    %3407 = vmatmul.mubr.bf16.gmra.mrb[0].mxu0 %v3372
    %v3408 = vpop.f32.mrb[0].mxu0
    %v3409 = vadd.f32 %v2677, %v3408
    %v3410 = vpop.f32.mrb[0].mxu0
    %v3411 = vadd.f32 %v2681, %v3410
    %v3412 = vpop.f32.mrb[0].mxu0
    %v3413 = vpop.f32.mrb[0].mxu0
    %3414 = vdwg.mxu0
    %v3416 = vrot.slane %v3409, 6
    %v3418 = vadd.f32 %v2656, %v3416
    %v3419 = vsub.f32 0.0, %v3418
    %v3420 = vmul.f32 %v3419, 1.442695
    %v3421 = vpow.pop %v3420
    %v3422 = vadd.f32 %v3421, 1.0
    %v3423 = vrcp.pop %v3422
    %v3425 = vrot.slane %v3411, 6
    %v3427 = vmul.f32 %v3423, %v3425
    %v3428 = vadd.f32 %v2658, %v3427
    %v3429 = vtanh.pop %v3428
    %v3431 = vrot.slane %v3429, 2
    %v3433 = vsub.f32 %v3369, %v3431
    %v3435 = vrot.slane %v3433, 6
    %3436 = vrot.lane.b32.xlu0 %v3435, 64
    %v3437 = vpop.permute.xlu0 %3436
    %v3439 = vmul.f32 %v3423, %v3437
    %3441 = vrot.lane.b32.xlu0 %v3439, 64
    %v3442 = vpop.permute.xlu0 %3441
    %v3444 = vadd.f32 %v3429, %v3442
    %v3447 = vunpack.c.l.s4 1966171168
    %v3448 = vunpack.c.0.s8 %v3447
    %v3449 = vlaneseq
    %v3450 = vshrl.u32 %v3449, 7
    %v3451 = vsub.s32 %v3448, %v3450
    %v3452 = vrot.slane %v3444, %v3451
    %v3453 = vcombine.high %v3452, %v3452
    %v3455 = vunpack.c.l.s4 1966171168
    %v3456 = vunpack.c.0.s8 %v3455
    %v3457 = vlaneseq
    %v3458 = vshrl.u32 %v3457, 7
    %v3459 = vsub.s32 %v3456, %v3458
    %v3460 = vrot.slane %v3452, %v3459
    %v3462 = vunpack.c.l.s4 1966171168
    %v3463 = vunpack.c.0.s8 %v3462
    %v3464 = vlaneseq
    %v3465 = vshrl.u32 %v3464, 7
    %v3466 = vsub.s32 %v3463, %v3465
    %v3467 = vrot.slane %v3453, %v3466
    %v3468 = vcombine.high %v3460, %v3460
    %v3469 = vcombine.high %v3467, %v3467
    %v3470 = vlaneseq
    %v3471 = vshrl.u32 %v3470, 7
    %v3472 = vsub.s32 2, %v3471
    %v3473 = vrot.slane %v3444, %v3472
    %3475 = vbcast.lane.b32.xlu0 %v3473, 256
    %v3476 = vpop.permute.xlu0 %3475
    %s3478 = sor.u32 256, 8
    %3479 = vbcast.lane.b32.xlu0 %v3473, %s3478
    %v3480 = vpop.permute.xlu0 %3479
    %s3482 = sor.u32 256, 16
    %3483 = vbcast.lane.b32.xlu0 %v3473, %s3482
    %v3484 = vpop.permute.xlu0 %3483
    %s3486 = sor.u32 256, 24
    %3487 = vbcast.lane.b32.xlu0 %v3473, %s3486
    %v3488 = vpop.permute.xlu0 %3487
    %s3490 = sor.u32 256, 32
    %3491 = vbcast.lane.b32.xlu0 %v3473, %s3490
    %v3492 = vpop.permute.xlu0 %3491
    %s3494 = sor.u32 256, 40
    %3495 = vbcast.lane.b32.xlu0 %v3473, %s3494
    %v3496 = vpop.permute.xlu0 %3495
    %s3498 = sor.u32 256, 48
    %3499 = vbcast.lane.b32.xlu0 %v3473, %s3498
    %v3500 = vpop.permute.xlu0 %3499
    %s3502 = sor.u32 256, 56
    %3503 = vbcast.lane.b32.xlu0 %v3473, %s3502
    %v3504 = vpop.permute.xlu0 %3503
    %v3505 = vlaneseq
    %v3506 = vshrl.u32 %v3505, 7
    %v3507 = vsub.s32 3, %v3506
    %v3508 = vrot.slane %v3444, %v3507
    %3510 = vbcast.lane.b32.xlu0 %v3508, 256
    %v3511 = vpop.permute.xlu0 %3510
    %s3513 = sor.u32 256, 8
    %3514 = vbcast.lane.b32.xlu0 %v3508, %s3513
    %v3515 = vpop.permute.xlu0 %3514
    %s3517 = sor.u32 256, 16
    %3518 = vbcast.lane.b32.xlu0 %v3508, %s3517
    %v3519 = vpop.permute.xlu0 %3518
    %s3521 = sor.u32 256, 24
    %3522 = vbcast.lane.b32.xlu0 %v3508, %s3521
    %v3523 = vpop.permute.xlu0 %3522
    %s3525 = sor.u32 256, 32
    %3526 = vbcast.lane.b32.xlu0 %v3508, %s3525
    %v3527 = vpop.permute.xlu0 %3526
    %s3529 = sor.u32 256, 40
    %3530 = vbcast.lane.b32.xlu0 %v3508, %s3529
    %v3531 = vpop.permute.xlu0 %3530
    %s3533 = sor.u32 256, 48
    %3534 = vbcast.lane.b32.xlu0 %v3508, %s3533
    %v3535 = vpop.permute.xlu0 %3534
    %s3537 = sor.u32 256, 56
    %3538 = vbcast.lane.b32.xlu0 %v3508, %s3537
    %v3539 = vpop.permute.xlu0 %3538
    %v3540 = vlaneseq
    %v3541 = vshrl.u32 %v3540, 7
    %v3542 = vsub.s32 0, %v3541
    %v3543 = vrot.slane %v3468, %v3542
    %v3544 = vlaneseq
    %v3545 = vshrl.u32 %v3544, 7
    %v3546 = vsub.s32 0, %v3545
    %v3547 = vrot.slane %v3469, %v3546
    %vm3550 = vcmp.lt.f32.partialorder %v3543, %v3476
    %vm3551 = vcmp.lt.f32.partialorder %v3543, %v3480
    %vm3552 = vcmp.lt.f32.partialorder %v3543, %v3484
    %vm3553 = vcmp.lt.f32.partialorder %v3543, %v3488
    %vm3554 = vcmp.lt.f32.partialorder %v3543, %v3492
    %vm3555 = vcmp.lt.f32.partialorder %v3543, %v3496
    %vm3556 = vcmp.lt.f32.partialorder %v3543, %v3500
    %vm3557 = vcmp.lt.f32.partialorder %v3543, %v3504
    %vm3558 = vcmp.lt.f32.partialorder %v3547, %v3511
    %vm3559 = vcmp.lt.f32.partialorder %v3547, %v3515
    %vm3560 = vcmp.lt.f32.partialorder %v3547, %v3519
    %vm3561 = vcmp.lt.f32.partialorder %v3547, %v3523
    %vm3562 = vcmp.lt.f32.partialorder %v3547, %v3527
    %vm3563 = vcmp.lt.f32.partialorder %v3547, %v3531
    %vm3564 = vcmp.lt.f32.partialorder %v3547, %v3535
    %vm3565 = vcmp.lt.f32.partialorder %v3547, %v3539
    %vm3566 = vcmp.eq.f32.partialorder %v3543, %v3476
    %vm3567 = vcmp.eq.f32.partialorder %v3543, %v3480
    %vm3568 = vcmp.eq.f32.partialorder %v3543, %v3484
    %vm3569 = vcmp.eq.f32.partialorder %v3543, %v3488
    %vm3570 = vcmp.eq.f32.partialorder %v3543, %v3492
    %vm3571 = vcmp.eq.f32.partialorder %v3543, %v3496
    %vm3572 = vcmp.eq.f32.partialorder %v3543, %v3500
    %vm3573 = vcmp.eq.f32.partialorder %v3543, %v3504
    %vm3574 = vcmp.eq.f32.partialorder %v3547, %v3511
    %vm3575 = vcmp.eq.f32.partialorder %v3547, %v3515
    %vm3576 = vcmp.eq.f32.partialorder %v3547, %v3519
    %vm3577 = vcmp.eq.f32.partialorder %v3547, %v3523
    %vm3578 = vcmp.eq.f32.partialorder %v3547, %v3527
    %vm3579 = vcmp.eq.f32.partialorder %v3547, %v3531
    %vm3580 = vcmp.eq.f32.partialorder %v3547, %v3535
    %vm3581 = vcmp.eq.f32.partialorder %v3547, %v3539
    %vm3582 = vmand %vm3566, %vm525
    %vm3583 = vmand %vm3567, %vm526
    %vm3584 = vmand %vm3568, %vm527
    %vm3585 = vmand %vm3569, %vm528
    %vm3586 = vmand %vm3570, %vm529
    %vm3587 = vmand %vm3571, %vm530
    %vm3588 = vmand %vm3572, %vm531
    %vm3589 = vmand %vm3573, %vm532
    %vm3590 = vmand %vm3574, %vm525
    %vm3591 = vmand %vm3575, %vm526
    %vm3592 = vmand %vm3576, %vm527
    %vm3593 = vmand %vm3577, %vm528
    %vm3594 = vmand %vm3578, %vm529
    %vm3595 = vmand %vm3579, %vm530
    %vm3596 = vmand %vm3580, %vm531
    %vm3597 = vmand %vm3581, %vm532
    %vm3598 = vmor %vm3550, %vm3582
    %vm3599 = vmor %vm3551, %vm3583
    %vm3600 = vmor %vm3552, %vm3584
    %vm3601 = vmor %vm3553, %vm3585
    %vm3602 = vmor %vm3554, %vm3586
    %vm3603 = vmor %vm3555, %vm3587
    %vm3604 = vmor %vm3556, %vm3588
    %vm3605 = vmor %vm3557, %vm3589
    %vm3606 = vmor %vm3558, %vm3590
    %vm3607 = vmor %vm3559, %vm3591
    %vm3608 = vmor %vm3560, %vm3592
    %vm3609 = vmor %vm3561, %vm3593
    %vm3610 = vmor %vm3562, %vm3594
    %vm3611 = vmor %vm3563, %vm3595
    %vm3612 = vmor %vm3564, %vm3596
    %vm3613 = vmor %vm3565, %vm3597
    %v3614 = vsel %vm3598, 1, 0
    %v3615 = vsel %vm3599, 1, 0
    %v3616 = vsel %vm3600, 1, 0
    %v3617 = vsel %vm3601, 1, 0
    %v3618 = vsel %vm3602, 1, 0
    %v3619 = vsel %vm3603, 1, 0
    %v3620 = vsel %vm3604, 1, 0
    %v3621 = vsel %vm3605, 1, 0
    %v3622 = vsel %vm3606, 1, 0
    %v3623 = vsel %vm3607, 1, 0
    %v3624 = vsel %vm3608, 1, 0
    %v3625 = vsel %vm3609, 1, 0
    %v3626 = vsel %vm3610, 1, 0
    %v3627 = vsel %vm3611, 1, 0
    %v3628 = vsel %vm3612, 1, 0
    %v3629 = vsel %vm3613, 1, 0
    %v3630 = vcvt.s32.f32 %v3614
    %v3631 = vcvt.s32.f32 %v3615
    %v3632 = vcvt.s32.f32 %v3616
    %v3633 = vcvt.s32.f32 %v3617
    %v3634 = vcvt.s32.f32 %v3618
    %v3635 = vcvt.s32.f32 %v3619
    %v3636 = vcvt.s32.f32 %v3620
    %v3637 = vcvt.s32.f32 %v3621
    %v3638 = vcvt.s32.f32 %v3622
    %v3639 = vcvt.s32.f32 %v3623
    %v3640 = vcvt.s32.f32 %v3624
    %v3641 = vcvt.s32.f32 %v3625
    %v3642 = vcvt.s32.f32 %v3626
    %v3643 = vcvt.s32.f32 %v3627
    %v3644 = vcvt.s32.f32 %v3628
    %v3645 = vcvt.s32.f32 %v3629
    %v3646 = vsel %vm171, %v3630, 0.0
    %3647 = vadd.xlane.f32.xlu0 %v3646
    %v3648 = vpop.xlane.xlu0 %3647
    %v3649 = vsel %vm171, %v3631, 0.0
    %3650 = vadd.xlane.f32.xlu0 %v3649
    %v3651 = vpop.xlane.xlu0 %3650
    %v3652 = vsel %vm171, %v3632, 0.0
    %3653 = vadd.xlane.f32.xlu0 %v3652
    %v3654 = vpop.xlane.xlu0 %3653
    %v3655 = vsel %vm171, %v3633, 0.0
    %3656 = vadd.xlane.f32.xlu0 %v3655
    %v3657 = vpop.xlane.xlu0 %3656
    %v3658 = vsel %vm171, %v3634, 0.0
    %3659 = vadd.xlane.f32.xlu0 %v3658
    %v3660 = vpop.xlane.xlu0 %3659
    %v3661 = vsel %vm171, %v3635, 0.0
    %3662 = vadd.xlane.f32.xlu0 %v3661
    %v3663 = vpop.xlane.xlu0 %3662
    %v3664 = vsel %vm171, %v3636, 0.0
    %3665 = vadd.xlane.f32.xlu0 %v3664
    %v3666 = vpop.xlane.xlu0 %3665
    %v3667 = vsel %vm171, %v3637, 0.0
    %3668 = vadd.xlane.f32.xlu0 %v3667
    %v3669 = vpop.xlane.xlu0 %3668
    %v3670 = vsel %vm171, %v3638, 0.0
    %3671 = vadd.xlane.f32.xlu0 %v3670
    %v3672 = vpop.xlane.xlu0 %3671
    %v3673 = vsel %vm171, %v3639, 0.0
    %3674 = vadd.xlane.f32.xlu0 %v3673
    %v3675 = vpop.xlane.xlu0 %3674
    %v3676 = vsel %vm171, %v3640, 0.0
    %3677 = vadd.xlane.f32.xlu0 %v3676
    %v3678 = vpop.xlane.xlu0 %3677
    %v3679 = vsel %vm171, %v3641, 0.0
    %3680 = vadd.xlane.f32.xlu0 %v3679
    %v3681 = vpop.xlane.xlu0 %3680
    %v3682 = vsel %vm171, %v3642, 0.0
    %3683 = vadd.xlane.f32.xlu0 %v3682
    %v3684 = vpop.xlane.xlu0 %3683
    %v3685 = vsel %vm171, %v3643, 0.0
    %3686 = vadd.xlane.f32.xlu0 %v3685
    %v3687 = vpop.xlane.xlu0 %3686
    %v3688 = vsel %vm171, %v3644, 0.0
    %3689 = vadd.xlane.f32.xlu0 %v3688
    %v3690 = vpop.xlane.xlu0 %3689
    %v3691 = vsel %vm171, %v3645, 0.0
    %3692 = vadd.xlane.f32.xlu0 %v3691
    %v3693 = vpop.xlane.xlu0 %3692
    %vm3694 = vcmp.eq.f32.partialorder %v3648, %v108
    %vm3695 = vcmp.eq.f32.partialorder %v3651, %v108
    %vm3696 = vcmp.eq.f32.partialorder %v3654, %v108
    %vm3697 = vcmp.eq.f32.partialorder %v3657, %v108
    %vm3698 = vcmp.eq.f32.partialorder %v3660, %v108
    %vm3699 = vcmp.eq.f32.partialorder %v3663, %v108
    %vm3700 = vcmp.eq.f32.partialorder %v3666, %v108
    %vm3701 = vcmp.eq.f32.partialorder %v3669, %v108
    %vm3702 = vcmp.eq.f32.partialorder %v3672, %v108
    %vm3703 = vcmp.eq.f32.partialorder %v3675, %v108
    %vm3704 = vcmp.eq.f32.partialorder %v3678, %v108
    %vm3705 = vcmp.eq.f32.partialorder %v3681, %v108
    %vm3706 = vcmp.eq.f32.partialorder %v3684, %v108
    %vm3707 = vcmp.eq.f32.partialorder %v3687, %v108
    %vm3708 = vcmp.eq.f32.partialorder %v3690, %v108
    %vm3709 = vcmp.eq.f32.partialorder %v3693, %v108
    %v3710 = vsel %vm3694, 1, 0
    %v3711 = vsel %vm3695, 1, 0
    %v3712 = vsel %vm3696, 1, 0
    %v3713 = vsel %vm3697, 1, 0
    %v3714 = vsel %vm3698, 1, 0
    %v3715 = vsel %vm3699, 1, 0
    %v3716 = vsel %vm3700, 1, 0
    %v3717 = vsel %vm3701, 1, 0
    %v3718 = vsel %vm3702, 1, 0
    %v3719 = vsel %vm3703, 1, 0
    %v3720 = vsel %vm3704, 1, 0
    %v3721 = vsel %vm3705, 1, 0
    %v3722 = vsel %vm3706, 1, 0
    %v3723 = vsel %vm3707, 1, 0
    %v3724 = vsel %vm3708, 1, 0
    %v3725 = vsel %vm3709, 1, 0
    %v3726 = vcvt.s32.f32 %v3710
    %v3727 = vcvt.s32.f32 %v3711
    %v3728 = vcvt.s32.f32 %v3712
    %v3729 = vcvt.s32.f32 %v3713
    %v3730 = vcvt.s32.f32 %v3714
    %v3731 = vcvt.s32.f32 %v3715
    %v3732 = vcvt.s32.f32 %v3716
    %v3733 = vcvt.s32.f32 %v3717
    %v3734 = vcvt.s32.f32 %v3718
    %v3735 = vcvt.s32.f32 %v3719
    %v3736 = vcvt.s32.f32 %v3720
    %v3737 = vcvt.s32.f32 %v3721
    %v3738 = vcvt.s32.f32 %v3722
    %v3739 = vcvt.s32.f32 %v3723
    %v3740 = vcvt.s32.f32 %v3724
    %v3741 = vcvt.s32.f32 %v3725
    %v3742 = vmul.f32 %v3726, %v3476
    %v3743 = vmul.f32 %v3727, %v3480
    %v3744 = vmul.f32 %v3728, %v3484
    %v3745 = vmul.f32 %v3729, %v3488
    %v3746 = vmul.f32 %v3730, %v3492
    %v3747 = vmul.f32 %v3731, %v3496
    %v3748 = vmul.f32 %v3732, %v3500
    %v3749 = vmul.f32 %v3733, %v3504
    %v3750 = vmul.f32 %v3734, %v3511
    %v3751 = vmul.f32 %v3735, %v3515
    %v3752 = vmul.f32 %v3736, %v3519
    %v3753 = vmul.f32 %v3737, %v3523
    %v3754 = vmul.f32 %v3738, %v3527
    %v3755 = vmul.f32 %v3739, %v3531
    %v3756 = vmul.f32 %v3740, %v3535
    %v3757 = vmul.f32 %v3741, %v3539
    %v3758 = vsel %vm171, %v3742, 0.0
    %v3759 = vsel %vm171, %v3743, 0.0
    %v3760 = vadd.f32 %v3758, %v3759
    %v3761 = vsel %vm171, %v3744, 0.0
    %v3762 = vadd.f32 %v3760, %v3761
    %v3763 = vsel %vm171, %v3745, 0.0
    %v3764 = vadd.f32 %v3762, %v3763
    %v3765 = vsel %vm171, %v3746, 0.0
    %v3766 = vadd.f32 %v3764, %v3765
    %v3767 = vsel %vm171, %v3747, 0.0
    %v3768 = vadd.f32 %v3766, %v3767
    %v3769 = vsel %vm171, %v3748, 0.0
    %v3770 = vadd.f32 %v3768, %v3769
    %v3771 = vsel %vm171, %v3749, 0.0
    %v3772 = vadd.f32 %v3770, %v3771
    %v3773 = vrot.slane %v3772, 4
    %v3774 = vadd.f32 %v3772, %v3773
    %v3775 = vrot.slane %v3774, 2
    %v3776 = vadd.f32 %v3774, %v3775
    %v3777 = vrot.slane %v3776, 1
    %v3778 = vadd.f32 %v3776, %v3777
    %v3779 = vsel %vm171, %v3750, 0.0
    %v3780 = vsel %vm171, %v3751, 0.0
    %v3781 = vadd.f32 %v3779, %v3780
    %v3782 = vsel %vm171, %v3752, 0.0
    %v3783 = vadd.f32 %v3781, %v3782
    %v3784 = vsel %vm171, %v3753, 0.0
    %v3785 = vadd.f32 %v3783, %v3784
    %v3786 = vsel %vm171, %v3754, 0.0
    %v3787 = vadd.f32 %v3785, %v3786
    %v3788 = vsel %vm171, %v3755, 0.0
    %v3789 = vadd.f32 %v3787, %v3788
    %v3790 = vsel %vm171, %v3756, 0.0
    %v3791 = vadd.f32 %v3789, %v3790
    %v3792 = vsel %vm171, %v3757, 0.0
    %v3793 = vadd.f32 %v3791, %v3792
    %v3794 = vrot.slane %v3793, 4
    %v3795 = vadd.f32 %v3793, %v3794
    %v3796 = vrot.slane %v3795, 2
    %v3797 = vadd.f32 %v3795, %v3796
    %v3798 = vrot.slane %v3797, 1
    %v3799 = vadd.f32 %v3797, %v3798
    %v3802 = vsel %vm1376, %v3799, %v3778
    %3803 = vrot.lane.b32.xlu0 %v3802, 64
    %v3804 = vpop.permute.xlu0 %3803
    %v3806 = vsel %vm171, %v3444, %v3804
    %v3807 = vpack.c.bf16 %v3806, %v3806
    %v3809 = vrot.slane %v3807, 1
    %3811 = vmatprep.subr.bf16.mxu0 0
    %3812 = vmatpush1.bf16.msra.mxu0 %v3218
    %3813 = vmatprep.subr.bf16.mxu0 0
    %3814 = vmatpush1.bf16.msra.mxu0 %v3219
    %3815 = vmatprep.subr.bf16.mxu0 0
    %3816 = vmatpush1.bf16.msra.mxu0 %v3220
    %3817 = vmatprep.subr.bf16.mxu0 0
    %3818 = vmatpush1.bf16.msra.mxu0 %v3221
    %3819 = vmatprep.subr.bf16.mxu0 0
    %3820 = vmatpush1.bf16.msra.mxu0 %v3222
    %3821 = vmatprep.subr.bf16.mxu0 0
    %3822 = vmatpush1.bf16.msra.mxu0 %v3223
    %3823 = vmatprep.subr.bf16.mxu0 0
    %3824 = vmatpush1.bf16.msra.mxu0 %v3224
    %3825 = vmatprep.subr.bf16.mxu0 0
    %3826 = vmatpush1.bf16.msra.mxu0 %v3225
    %3827 = vmatprep.subr.bf16.mxu0 0
    %3828 = vmatpush1.bf16.msra.mxu0 0
    %3829 = vmatprep.subr.bf16.mxu0 0
    %3830 = vmatpush1.bf16.msra.mxu0 0
    %3831 = vmatprep.subr.bf16.mxu0 0
    %3832 = vmatpush1.bf16.msra.mxu0 0
    %3833 = vmatprep.subr.bf16.mxu0 0
    %3834 = vmatpush1.bf16.msra.mxu0 0
    %3835 = vmatprep.subr.bf16.mxu0 0
    %3836 = vmatpush1.bf16.msra.mxu0 0
    %3837 = vmatprep.subr.bf16.mxu0 0
    %3838 = vmatpush1.bf16.msra.mxu0 0
    %3839 = vmatprep.subr.bf16.mxu0 0
    %3840 = vmatpush1.bf16.msra.mxu0 0
    %3841 = vmatprep.subr.bf16.mxu0 0
    %3842 = vmatpush1.bf16.msra.mxu0 0
    %3843 = vmatprep.mubr.bf16.mxu0 0
    %3844 = vmatmul.mubr.bf16.gmra.mrb[0].mxu0 %v3809
    %v3845 = vpop.f32.mrb[0].mxu0
    %v3846 = vadd.f32 0.0, %v3845
    %v3847 = vpop.f32.mrb[0].mxu0
    %v3848 = vpop.f32.mrb[0].mxu0
    %v3849 = vpop.f32.mrb[0].mxu0
    %3850 = vdwg.mxu0
    %v3851 = vmax.f32 %v3846, 0.0
    %v3852 = vpack.c.bf16 %v3851, %v3851
    %3853 = vmatprep.subr.bf16.mxu0 0
    %3854 = vmatpush1.bf16.msra.mxu0 %v3308
    %3855 = vmatprep.subr.bf16.mxu0 0
    %3856 = vmatpush1.bf16.msra.mxu0 %v3309
    %3857 = vmatprep.subr.bf16.mxu0 0
    %3858 = vmatpush1.bf16.msra.mxu0 %v3310
    %3859 = vmatprep.subr.bf16.mxu0 0
    %3860 = vmatpush1.bf16.msra.mxu0 %v3311
    %3861 = vmatprep.subr.bf16.mxu0 0
    %3862 = vmatpush1.bf16.msra.mxu0 %v3312
    %3863 = vmatprep.subr.bf16.mxu0 0
    %3864 = vmatpush1.bf16.msra.mxu0 %v3313
    %3865 = vmatprep.subr.bf16.mxu0 0
    %3866 = vmatpush1.bf16.msra.mxu0 %v3314
    %3867 = vmatprep.subr.bf16.mxu0 0
    %3868 = vmatpush1.bf16.msra.mxu0 %v3315
    %3869 = vmatprep.subr.bf16.mxu0 0
    %3870 = vmatpush1.bf16.msra.mxu0 0
    %3871 = vmatprep.subr.bf16.mxu0 0
    %3872 = vmatpush1.bf16.msra.mxu0 0
    %3873 = vmatprep.subr.bf16.mxu0 0
    %3874 = vmatpush1.bf16.msra.mxu0 0
    %3875 = vmatprep.subr.bf16.mxu0 0
    %3876 = vmatpush1.bf16.msra.mxu0 0
    %3877 = vmatprep.subr.bf16.mxu0 0
    %3878 = vmatpush1.bf16.msra.mxu0 0
    %3879 = vmatprep.subr.bf16.mxu0 0
    %3880 = vmatpush1.bf16.msra.mxu0 0
    %3881 = vmatprep.subr.bf16.mxu0 0
    %3882 = vmatpush1.bf16.msra.mxu0 0
    %3883 = vmatprep.subr.bf16.mxu0 0
    %3884 = vmatpush1.bf16.msra.mxu0 0
    %3885 = vmatprep.mubr.bf16.mxu0 0
    %3886 = vmatmul.mubr.bf16.gmra.mrb[0].mxu0 %v3852
    %v3887 = vpop.f32.mrb[0].mxu0
    %v3888 = vadd.f32 0.0, %v3887
    %v3889 = vpop.f32.mrb[0].mxu0
    %v3890 = vpop.f32.mrb[0].mxu0
    %v3891 = vpop.f32.mrb[0].mxu0
    %3892 = vdwg.mxu0
    %v3893 = vsub.f32 0.0, %v3888
    %v3894 = vmul.f32 %v3893, 1.442695
    %v3895 = vpow.pop %v3894
    %v3896 = vadd.f32 %v3895, 1.0
    %v3897 = vrcp.pop %v3896
    %v3899 = vrot.slane %v3897, 6
    %v3901 = vmul.f32 %v3444, %v3899
    %v3902 = vpack.c.bf16 %v3901, %v3901
    %v3904 = vrot.slane %v3902, 1
    %v3906 = vsel %vm171, %v3904, 0
    %3908 = vmatprep.subr.bf16.mxu0 %v2746
    %3909 = vmatpush1.bf16.msra.mxu0 %v2745
    %3910 = vmatprep.subr.bf16.mxu0 %v2748
    %3911 = vmatpush1.bf16.msra.mxu0 %v2747
    %3912 = vmatprep.subr.bf16.mxu0 %v2750
    %3913 = vmatpush1.bf16.msra.mxu0 %v2749
    %3914 = vmatprep.subr.bf16.mxu0 %v2752
    %3915 = vmatpush1.bf16.msra.mxu0 %v2751
    %3916 = vmatprep.subr.bf16.mxu0 0
    %3917 = vmatpush1.bf16.msra.mxu0 0
    %3918 = vmatprep.subr.bf16.mxu0 0
    %3919 = vmatpush1.bf16.msra.mxu0 0
    %3920 = vmatprep.subr.bf16.mxu0 0
    %3921 = vmatpush1.bf16.msra.mxu0 0
    %3922 = vmatprep.subr.bf16.mxu0 0
    %3923 = vmatpush1.bf16.msra.mxu0 0
    %3924 = vmatprep.subr.bf16.mxu0 0
    %3925 = vmatpush1.bf16.msra.mxu0 0
    %3926 = vmatprep.subr.bf16.mxu0 0
    %3927 = vmatpush1.bf16.msra.mxu0 0
    %3928 = vmatprep.subr.bf16.mxu0 0
    %3929 = vmatpush1.bf16.msra.mxu0 0
    %3930 = vmatprep.subr.bf16.mxu0 0
    %3931 = vmatpush1.bf16.msra.mxu0 0
    %3932 = vmatprep.subr.bf16.mxu0 0
    %3933 = vmatpush1.bf16.msra.mxu0 0
    %3934 = vmatprep.subr.bf16.mxu0 0
    %3935 = vmatpush1.bf16.msra.mxu0 0
    %3936 = vmatprep.subr.bf16.mxu0 0
    %3937 = vmatpush1.bf16.msra.mxu0 0
    %3938 = vmatprep.subr.bf16.mxu0 0
    %3939 = vmatpush1.bf16.msra.mxu0 0
    %3940 = vmatprep.mubr.bf16.mxu0 0
    %3941 = vmatmul.mubr.bf16.gmra.mrb[0].mxu0 %v3906
    %v3942 = vpop.f32.mrb[0].mxu0
    %v3943 = vadd.f32 %v2677, %v3942
    %v3944 = vpop.f32.mrb[0].mxu0
    %v3945 = vadd.f32 %v2681, %v3944
    %v3946 = vpop.f32.mrb[0].mxu0
    %v3947 = vpop.f32.mrb[0].mxu0
    %3948 = vdwg.mxu0
    %v3950 = vrot.slane %v3943, 4
    %v3952 = vadd.f32 %v2656, %v3950
    %v3953 = vsub.f32 0.0, %v3952
    %v3954 = vmul.f32 %v3953, 1.442695
    %v3955 = vpow.pop %v3954
    %v3956 = vadd.f32 %v3955, 1.0
    %v3957 = vrcp.pop %v3956
    %v3959 = vrot.slane %v3945, 4
    %v3961 = vmul.f32 %v3957, %v3959
    %v3962 = vadd.f32 %v2658, %v3961
    %v3963 = vtanh.pop %v3962
    %v3965 = vrot.slane %v3963, 2
    %v3967 = vsub.f32 %v3901, %v3965
    %v3969 = vrot.slane %v3967, 6
    %3970 = vrot.lane.b32.xlu0 %v3969, 64
    %v3971 = vpop.permute.xlu0 %3970
    %v3973 = vmul.f32 %v3957, %v3971
    %3975 = vrot.lane.b32.xlu0 %v3973, 64
    %v3976 = vpop.permute.xlu0 %3975
    %v3978 = vadd.f32 %v3963, %v3976
    %v3980 = vcombine.high %v3978, %v3978
    %v3982 = vunpack.c.l.s4 1966171168
    %v3983 = vunpack.c.0.s8 %v3982
    %v3984 = vlaneseq
    %v3985 = vshrl.u32 %v3984, 7
    %v3986 = vsub.s32 %v3983, %v3985
    %v3987 = vrot.slane %v3980, %v3986
    %v3988 = vcombine.high %v3987, %v3987
    %v3990 = vunpack.c.l.s4 1966171168
    %v3991 = vunpack.c.0.s8 %v3990
    %v3992 = vlaneseq
    %v3993 = vshrl.u32 %v3992, 7
    %v3994 = vsub.s32 %v3991, %v3993
    %v3995 = vrot.slane %v3987, %v3994
    %v3997 = vunpack.c.l.s4 1966171168
    %v3998 = vunpack.c.0.s8 %v3997
    %v3999 = vlaneseq
    %v4000 = vshrl.u32 %v3999, 7
    %v4001 = vsub.s32 %v3998, %v4000
    %v4002 = vrot.slane %v3988, %v4001
    %v4003 = vlaneseq
    %v4004 = vshrl.u32 %v4003, 7
    %v4005 = vsub.s32 4, %v4004
    %v4006 = vrot.slane %v3978, %v4005
    %4008 = vbcast.lane.b32.xlu0 %v4006, 256
    %v4009 = vpop.permute.xlu0 %4008
    %s4011 = sor.u32 256, 8
    %4012 = vbcast.lane.b32.xlu0 %v4006, %s4011
    %v4013 = vpop.permute.xlu0 %4012
    %s4015 = sor.u32 256, 16
    %4016 = vbcast.lane.b32.xlu0 %v4006, %s4015
    %v4017 = vpop.permute.xlu0 %4016
    %s4019 = sor.u32 256, 24
    %4020 = vbcast.lane.b32.xlu0 %v4006, %s4019
    %v4021 = vpop.permute.xlu0 %4020
    %s4023 = sor.u32 256, 32
    %4024 = vbcast.lane.b32.xlu0 %v4006, %s4023
    %v4025 = vpop.permute.xlu0 %4024
    %s4027 = sor.u32 256, 40
    %4028 = vbcast.lane.b32.xlu0 %v4006, %s4027
    %v4029 = vpop.permute.xlu0 %4028
    %s4031 = sor.u32 256, 48
    %4032 = vbcast.lane.b32.xlu0 %v4006, %s4031
    %v4033 = vpop.permute.xlu0 %4032
    %s4035 = sor.u32 256, 56
    %4036 = vbcast.lane.b32.xlu0 %v4006, %s4035
    %v4037 = vpop.permute.xlu0 %4036
    %v4038 = vlaneseq
    %v4039 = vshrl.u32 %v4038, 7
    %v4040 = vsub.s32 5, %v4039
    %v4041 = vrot.slane %v3978, %v4040
    %4043 = vbcast.lane.b32.xlu0 %v4041, 256
    %v4044 = vpop.permute.xlu0 %4043
    %s4046 = sor.u32 256, 8
    %4047 = vbcast.lane.b32.xlu0 %v4041, %s4046
    %v4048 = vpop.permute.xlu0 %4047
    %s4050 = sor.u32 256, 16
    %4051 = vbcast.lane.b32.xlu0 %v4041, %s4050
    %v4052 = vpop.permute.xlu0 %4051
    %s4054 = sor.u32 256, 24
    %4055 = vbcast.lane.b32.xlu0 %v4041, %s4054
    %v4056 = vpop.permute.xlu0 %4055
    %s4058 = sor.u32 256, 32
    %4059 = vbcast.lane.b32.xlu0 %v4041, %s4058
    %v4060 = vpop.permute.xlu0 %4059
    %s4062 = sor.u32 256, 40
    %4063 = vbcast.lane.b32.xlu0 %v4041, %s4062
    %v4064 = vpop.permute.xlu0 %4063
    %s4066 = sor.u32 256, 48
    %4067 = vbcast.lane.b32.xlu0 %v4041, %s4066
    %v4068 = vpop.permute.xlu0 %4067
    %s4070 = sor.u32 256, 56
    %4071 = vbcast.lane.b32.xlu0 %v4041, %s4070
    %v4072 = vpop.permute.xlu0 %4071
    %v4073 = vlaneseq
    %v4074 = vshrl.u32 %v4073, 7
    %v4075 = vsub.s32 0, %v4074
    %v4076 = vrot.slane %v3995, %v4075
    %v4077 = vlaneseq
    %v4078 = vshrl.u32 %v4077, 7
    %v4079 = vsub.s32 0, %v4078
    %v4080 = vrot.slane %v4002, %v4079
    %vm4083 = vcmp.lt.f32.partialorder %v4076, %v4009
    %vm4084 = vcmp.lt.f32.partialorder %v4076, %v4013
    %vm4085 = vcmp.lt.f32.partialorder %v4076, %v4017
    %vm4086 = vcmp.lt.f32.partialorder %v4076, %v4021
    %vm4087 = vcmp.lt.f32.partialorder %v4076, %v4025
    %vm4088 = vcmp.lt.f32.partialorder %v4076, %v4029
    %vm4089 = vcmp.lt.f32.partialorder %v4076, %v4033
    %vm4090 = vcmp.lt.f32.partialorder %v4076, %v4037
    %vm4091 = vcmp.lt.f32.partialorder %v4080, %v4044
    %vm4092 = vcmp.lt.f32.partialorder %v4080, %v4048
    %vm4093 = vcmp.lt.f32.partialorder %v4080, %v4052
    %vm4094 = vcmp.lt.f32.partialorder %v4080, %v4056
    %vm4095 = vcmp.lt.f32.partialorder %v4080, %v4060
    %vm4096 = vcmp.lt.f32.partialorder %v4080, %v4064
    %vm4097 = vcmp.lt.f32.partialorder %v4080, %v4068
    %vm4098 = vcmp.lt.f32.partialorder %v4080, %v4072
    %vm4099 = vcmp.eq.f32.partialorder %v4076, %v4009
    %vm4100 = vcmp.eq.f32.partialorder %v4076, %v4013
    %vm4101 = vcmp.eq.f32.partialorder %v4076, %v4017
    %vm4102 = vcmp.eq.f32.partialorder %v4076, %v4021
    %vm4103 = vcmp.eq.f32.partialorder %v4076, %v4025
    %vm4104 = vcmp.eq.f32.partialorder %v4076, %v4029
    %vm4105 = vcmp.eq.f32.partialorder %v4076, %v4033
    %vm4106 = vcmp.eq.f32.partialorder %v4076, %v4037
    %vm4107 = vcmp.eq.f32.partialorder %v4080, %v4044
    %vm4108 = vcmp.eq.f32.partialorder %v4080, %v4048
    %vm4109 = vcmp.eq.f32.partialorder %v4080, %v4052
    %vm4110 = vcmp.eq.f32.partialorder %v4080, %v4056
    %vm4111 = vcmp.eq.f32.partialorder %v4080, %v4060
    %vm4112 = vcmp.eq.f32.partialorder %v4080, %v4064
    %vm4113 = vcmp.eq.f32.partialorder %v4080, %v4068
    %vm4114 = vcmp.eq.f32.partialorder %v4080, %v4072
    %vm4115 = vmand %vm4099, %vm525
    %vm4116 = vmand %vm4100, %vm526
    %vm4117 = vmand %vm4101, %vm527
    %vm4118 = vmand %vm4102, %vm528
    %vm4119 = vmand %vm4103, %vm529
    %vm4120 = vmand %vm4104, %vm530
    %vm4121 = vmand %vm4105, %vm531
    %vm4122 = vmand %vm4106, %vm532
    %vm4123 = vmand %vm4107, %vm525
    %vm4124 = vmand %vm4108, %vm526
    %vm4125 = vmand %vm4109, %vm527
    %vm4126 = vmand %vm4110, %vm528
    %vm4127 = vmand %vm4111, %vm529
    %vm4128 = vmand %vm4112, %vm530
    %vm4129 = vmand %vm4113, %vm531
    %vm4130 = vmand %vm4114, %vm532
    %vm4131 = vmor %vm4083, %vm4115
    %vm4132 = vmor %vm4084, %vm4116
    %vm4133 = vmor %vm4085, %vm4117
    %vm4134 = vmor %vm4086, %vm4118
    %vm4135 = vmor %vm4087, %vm4119
    %vm4136 = vmor %vm4088, %vm4120
    %vm4137 = vmor %vm4089, %vm4121
    %vm4138 = vmor %vm4090, %vm4122
    %vm4139 = vmor %vm4091, %vm4123
    %vm4140 = vmor %vm4092, %vm4124
    %vm4141 = vmor %vm4093, %vm4125
    %vm4142 = vmor %vm4094, %vm4126
    %vm4143 = vmor %vm4095, %vm4127
    %vm4144 = vmor %vm4096, %vm4128
    %vm4145 = vmor %vm4097, %vm4129
    %vm4146 = vmor %vm4098, %vm4130
    %v4147 = vsel %vm4131, 1, 0
    %v4148 = vsel %vm4132, 1, 0
    %v4149 = vsel %vm4133, 1, 0
    %v4150 = vsel %vm4134, 1, 0
    %v4151 = vsel %vm4135, 1, 0
    %v4152 = vsel %vm4136, 1, 0
    %v4153 = vsel %vm4137, 1, 0
    %v4154 = vsel %vm4138, 1, 0
    %v4155 = vsel %vm4139, 1, 0
    %v4156 = vsel %vm4140, 1, 0
    %v4157 = vsel %vm4141, 1, 0
    %v4158 = vsel %vm4142, 1, 0
    %v4159 = vsel %vm4143, 1, 0
    %v4160 = vsel %vm4144, 1, 0
    %v4161 = vsel %vm4145, 1, 0
    %v4162 = vsel %vm4146, 1, 0
    %v4163 = vcvt.s32.f32 %v4147
    %v4164 = vcvt.s32.f32 %v4148
    %v4165 = vcvt.s32.f32 %v4149
    %v4166 = vcvt.s32.f32 %v4150
    %v4167 = vcvt.s32.f32 %v4151
    %v4168 = vcvt.s32.f32 %v4152
    %v4169 = vcvt.s32.f32 %v4153
    %v4170 = vcvt.s32.f32 %v4154
    %v4171 = vcvt.s32.f32 %v4155
    %v4172 = vcvt.s32.f32 %v4156
    %v4173 = vcvt.s32.f32 %v4157
    %v4174 = vcvt.s32.f32 %v4158
    %v4175 = vcvt.s32.f32 %v4159
    %v4176 = vcvt.s32.f32 %v4160
    %v4177 = vcvt.s32.f32 %v4161
    %v4178 = vcvt.s32.f32 %v4162
    %v4179 = vsel %vm171, %v4163, 0.0
    %4180 = vadd.xlane.f32.xlu0 %v4179
    %v4181 = vpop.xlane.xlu0 %4180
    %v4182 = vsel %vm171, %v4164, 0.0
    %4183 = vadd.xlane.f32.xlu0 %v4182
    %v4184 = vpop.xlane.xlu0 %4183
    %v4185 = vsel %vm171, %v4165, 0.0
    %4186 = vadd.xlane.f32.xlu0 %v4185
    %v4187 = vpop.xlane.xlu0 %4186
    %v4188 = vsel %vm171, %v4166, 0.0
    %4189 = vadd.xlane.f32.xlu0 %v4188
    %v4190 = vpop.xlane.xlu0 %4189
    %v4191 = vsel %vm171, %v4167, 0.0
    %4192 = vadd.xlane.f32.xlu0 %v4191
    %v4193 = vpop.xlane.xlu0 %4192
    %v4194 = vsel %vm171, %v4168, 0.0
    %4195 = vadd.xlane.f32.xlu0 %v4194
    %v4196 = vpop.xlane.xlu0 %4195
    %v4197 = vsel %vm171, %v4169, 0.0
    %4198 = vadd.xlane.f32.xlu0 %v4197
    %v4199 = vpop.xlane.xlu0 %4198
    %v4200 = vsel %vm171, %v4170, 0.0
    %4201 = vadd.xlane.f32.xlu0 %v4200
    %v4202 = vpop.xlane.xlu0 %4201
    %v4203 = vsel %vm171, %v4171, 0.0
    %4204 = vadd.xlane.f32.xlu0 %v4203
    %v4205 = vpop.xlane.xlu0 %4204
    %v4206 = vsel %vm171, %v4172, 0.0
    %4207 = vadd.xlane.f32.xlu0 %v4206
    %v4208 = vpop.xlane.xlu0 %4207
    %v4209 = vsel %vm171, %v4173, 0.0
    %4210 = vadd.xlane.f32.xlu0 %v4209
    %v4211 = vpop.xlane.xlu0 %4210
    %v4212 = vsel %vm171, %v4174, 0.0
    %4213 = vadd.xlane.f32.xlu0 %v4212
    %v4214 = vpop.xlane.xlu0 %4213
    %v4215 = vsel %vm171, %v4175, 0.0
    %4216 = vadd.xlane.f32.xlu0 %v4215
    %v4217 = vpop.xlane.xlu0 %4216
    %v4218 = vsel %vm171, %v4176, 0.0
    %4219 = vadd.xlane.f32.xlu0 %v4218
    %v4220 = vpop.xlane.xlu0 %4219
    %v4221 = vsel %vm171, %v4177, 0.0
    %4222 = vadd.xlane.f32.xlu0 %v4221
    %v4223 = vpop.xlane.xlu0 %4222
    %v4224 = vsel %vm171, %v4178, 0.0
    %4225 = vadd.xlane.f32.xlu0 %v4224
    %v4226 = vpop.xlane.xlu0 %4225
    %vm4227 = vcmp.eq.f32.partialorder %v4181, %v108
    %vm4228 = vcmp.eq.f32.partialorder %v4184, %v108
    %vm4229 = vcmp.eq.f32.partialorder %v4187, %v108
    %vm4230 = vcmp.eq.f32.partialorder %v4190, %v108
    %vm4231 = vcmp.eq.f32.partialorder %v4193, %v108
    %vm4232 = vcmp.eq.f32.partialorder %v4196, %v108
    %vm4233 = vcmp.eq.f32.partialorder %v4199, %v108
    %vm4234 = vcmp.eq.f32.partialorder %v4202, %v108
    %vm4235 = vcmp.eq.f32.partialorder %v4205, %v108
    %vm4236 = vcmp.eq.f32.partialorder %v4208, %v108
    %vm4237 = vcmp.eq.f32.partialorder %v4211, %v108
    %vm4238 = vcmp.eq.f32.partialorder %v4214, %v108
    %vm4239 = vcmp.eq.f32.partialorder %v4217, %v108
    %vm4240 = vcmp.eq.f32.partialorder %v4220, %v108
    %vm4241 = vcmp.eq.f32.partialorder %v4223, %v108
    %vm4242 = vcmp.eq.f32.partialorder %v4226, %v108
    %v4243 = vsel %vm4227, 1, 0
    %v4244 = vsel %vm4228, 1, 0
    %v4245 = vsel %vm4229, 1, 0
    %v4246 = vsel %vm4230, 1, 0
    %v4247 = vsel %vm4231, 1, 0
    %v4248 = vsel %vm4232, 1, 0
    %v4249 = vsel %vm4233, 1, 0
    %v4250 = vsel %vm4234, 1, 0
    %v4251 = vsel %vm4235, 1, 0
    %v4252 = vsel %vm4236, 1, 0
    %v4253 = vsel %vm4237, 1, 0
    %v4254 = vsel %vm4238, 1, 0
    %v4255 = vsel %vm4239, 1, 0
    %v4256 = vsel %vm4240, 1, 0
    %v4257 = vsel %vm4241, 1, 0
    %v4258 = vsel %vm4242, 1, 0
    %v4259 = vcvt.s32.f32 %v4243
    %v4260 = vcvt.s32.f32 %v4244
    %v4261 = vcvt.s32.f32 %v4245
    %v4262 = vcvt.s32.f32 %v4246
    %v4263 = vcvt.s32.f32 %v4247
    %v4264 = vcvt.s32.f32 %v4248
    %v4265 = vcvt.s32.f32 %v4249
    %v4266 = vcvt.s32.f32 %v4250
    %v4267 = vcvt.s32.f32 %v4251
    %v4268 = vcvt.s32.f32 %v4252
    %v4269 = vcvt.s32.f32 %v4253
    %v4270 = vcvt.s32.f32 %v4254
    %v4271 = vcvt.s32.f32 %v4255
    %v4272 = vcvt.s32.f32 %v4256
    %v4273 = vcvt.s32.f32 %v4257
    %v4274 = vcvt.s32.f32 %v4258
    %v4275 = vmul.f32 %v4259, %v4009
    %v4276 = vmul.f32 %v4260, %v4013
    %v4277 = vmul.f32 %v4261, %v4017
    %v4278 = vmul.f32 %v4262, %v4021
    %v4279 = vmul.f32 %v4263, %v4025
    %v4280 = vmul.f32 %v4264, %v4029
    %v4281 = vmul.f32 %v4265, %v4033
    %v4282 = vmul.f32 %v4266, %v4037
    %v4283 = vmul.f32 %v4267, %v4044
    %v4284 = vmul.f32 %v4268, %v4048
    %v4285 = vmul.f32 %v4269, %v4052
    %v4286 = vmul.f32 %v4270, %v4056
    %v4287 = vmul.f32 %v4271, %v4060
    %v4288 = vmul.f32 %v4272, %v4064
    %v4289 = vmul.f32 %v4273, %v4068
    %v4290 = vmul.f32 %v4274, %v4072
    %v4291 = vsel %vm171, %v4275, 0.0
    %v4292 = vsel %vm171, %v4276, 0.0
    %v4293 = vadd.f32 %v4291, %v4292
    %v4294 = vsel %vm171, %v4277, 0.0
    %v4295 = vadd.f32 %v4293, %v4294
    %v4296 = vsel %vm171, %v4278, 0.0
    %v4297 = vadd.f32 %v4295, %v4296
    %v4298 = vsel %vm171, %v4279, 0.0
    %v4299 = vadd.f32 %v4297, %v4298
    %v4300 = vsel %vm171, %v4280, 0.0
    %v4301 = vadd.f32 %v4299, %v4300
    %v4302 = vsel %vm171, %v4281, 0.0
    %v4303 = vadd.f32 %v4301, %v4302
    %v4304 = vsel %vm171, %v4282, 0.0
    %v4305 = vadd.f32 %v4303, %v4304
    %v4306 = vrot.slane %v4305, 4
    %v4307 = vadd.f32 %v4305, %v4306
    %v4308 = vrot.slane %v4307, 2
    %v4309 = vadd.f32 %v4307, %v4308
    %v4310 = vrot.slane %v4309, 1
    %v4311 = vadd.f32 %v4309, %v4310
    %v4312 = vsel %vm171, %v4283, 0.0
    %v4313 = vsel %vm171, %v4284, 0.0
    %v4314 = vadd.f32 %v4312, %v4313
    %v4315 = vsel %vm171, %v4285, 0.0
    %v4316 = vadd.f32 %v4314, %v4315
    %v4317 = vsel %vm171, %v4286, 0.0
    %v4318 = vadd.f32 %v4316, %v4317
    %v4319 = vsel %vm171, %v4287, 0.0
    %v4320 = vadd.f32 %v4318, %v4319
    %v4321 = vsel %vm171, %v4288, 0.0
    %v4322 = vadd.f32 %v4320, %v4321
    %v4323 = vsel %vm171, %v4289, 0.0
    %v4324 = vadd.f32 %v4322, %v4323
    %v4325 = vsel %vm171, %v4290, 0.0
    %v4326 = vadd.f32 %v4324, %v4325
    %v4327 = vrot.slane %v4326, 4
    %v4328 = vadd.f32 %v4326, %v4327
    %v4329 = vrot.slane %v4328, 2
    %v4330 = vadd.f32 %v4328, %v4329
    %v4331 = vrot.slane %v4330, 1
    %v4332 = vadd.f32 %v4330, %v4331
    %v4335 = vsel %vm1910, %v4332, %v4311
    %4336 = vrot.lane.b32.xlu0 %v4335, 64
    %v4337 = vpop.permute.xlu0 %4336
    %v4339 = vsel %vm171, %v3978, %v4337
    %v4340 = vpack.c.bf16 %v4339, %v4339
    %v4342 = vrot.slane %v4340, 2
    %4344 = vmatprep.subr.bf16.mxu0 0
    %4345 = vmatpush1.bf16.msra.mxu0 %v3218
    %4346 = vmatprep.subr.bf16.mxu0 0
    %4347 = vmatpush1.bf16.msra.mxu0 %v3219
    %4348 = vmatprep.subr.bf16.mxu0 0
    %4349 = vmatpush1.bf16.msra.mxu0 %v3220
    %4350 = vmatprep.subr.bf16.mxu0 0
    %4351 = vmatpush1.bf16.msra.mxu0 %v3221
    %4352 = vmatprep.subr.bf16.mxu0 0
    %4353 = vmatpush1.bf16.msra.mxu0 %v3222
    %4354 = vmatprep.subr.bf16.mxu0 0
    %4355 = vmatpush1.bf16.msra.mxu0 %v3223
    %4356 = vmatprep.subr.bf16.mxu0 0
    %4357 = vmatpush1.bf16.msra.mxu0 %v3224
    %4358 = vmatprep.subr.bf16.mxu0 0
    %4359 = vmatpush1.bf16.msra.mxu0 %v3225
    %4360 = vmatprep.subr.bf16.mxu0 0
    %4361 = vmatpush1.bf16.msra.mxu0 0
    %4362 = vmatprep.subr.bf16.mxu0 0
    %4363 = vmatpush1.bf16.msra.mxu0 0
    %4364 = vmatprep.subr.bf16.mxu0 0
    %4365 = vmatpush1.bf16.msra.mxu0 0
    %4366 = vmatprep.subr.bf16.mxu0 0
    %4367 = vmatpush1.bf16.msra.mxu0 0
    %4368 = vmatprep.subr.bf16.mxu0 0
    %4369 = vmatpush1.bf16.msra.mxu0 0
    %4370 = vmatprep.subr.bf16.mxu0 0
    %4371 = vmatpush1.bf16.msra.mxu0 0
    %4372 = vmatprep.subr.bf16.mxu0 0
    %4373 = vmatpush1.bf16.msra.mxu0 0
    %4374 = vmatprep.subr.bf16.mxu0 0
    %4375 = vmatpush1.bf16.msra.mxu0 0
    %4376 = vmatprep.mubr.bf16.mxu0 0
    %4377 = vmatmul.mubr.bf16.gmra.mrb[0].mxu0 %v4342
    %v4378 = vpop.f32.mrb[0].mxu0
    %v4379 = vadd.f32 0.0, %v4378
    %v4380 = vpop.f32.mrb[0].mxu0
    %v4381 = vpop.f32.mrb[0].mxu0
    %v4382 = vpop.f32.mrb[0].mxu0
    %4383 = vdwg.mxu0
    %v4384 = vmax.f32 %v4379, 0.0
    %v4385 = vpack.c.bf16 %v4384, %v4384
    %4386 = vmatprep.subr.bf16.mxu0 0
    %4387 = vmatpush1.bf16.msra.mxu0 %v3308
    %4388 = vmatprep.subr.bf16.mxu0 0
    %4389 = vmatpush1.bf16.msra.mxu0 %v3309
    %4390 = vmatprep.subr.bf16.mxu0 0
    %4391 = vmatpush1.bf16.msra.mxu0 %v3310
    %4392 = vmatprep.subr.bf16.mxu0 0
    %4393 = vmatpush1.bf16.msra.mxu0 %v3311
    %4394 = vmatprep.subr.bf16.mxu0 0
    %4395 = vmatpush1.bf16.msra.mxu0 %v3312
    %4396 = vmatprep.subr.bf16.mxu0 0
    %4397 = vmatpush1.bf16.msra.mxu0 %v3313
    %4398 = vmatprep.subr.bf16.mxu0 0
    %4399 = vmatpush1.bf16.msra.mxu0 %v3314
    %4400 = vmatprep.subr.bf16.mxu0 0
    %4401 = vmatpush1.bf16.msra.mxu0 %v3315
    %4402 = vmatprep.subr.bf16.mxu0 0
    %4403 = vmatpush1.bf16.msra.mxu0 0
    %4404 = vmatprep.subr.bf16.mxu0 0
    %4405 = vmatpush1.bf16.msra.mxu0 0
    %4406 = vmatprep.subr.bf16.mxu0 0
    %4407 = vmatpush1.bf16.msra.mxu0 0
    %4408 = vmatprep.subr.bf16.mxu0 0
    %4409 = vmatpush1.bf16.msra.mxu0 0
    %4410 = vmatprep.subr.bf16.mxu0 0
    %4411 = vmatpush1.bf16.msra.mxu0 0
    %4412 = vmatprep.subr.bf16.mxu0 0
    %4413 = vmatpush1.bf16.msra.mxu0 0
    %4414 = vmatprep.subr.bf16.mxu0 0
    %4415 = vmatpush1.bf16.msra.mxu0 0
    %4416 = vmatprep.subr.bf16.mxu0 0
    %4417 = vmatpush1.bf16.msra.mxu0 0
    %4418 = vmatprep.mubr.bf16.mxu0 0
    %4419 = vmatmul.mubr.bf16.gmra.mrb[0].mxu0 %v4385
    %v4420 = vpop.f32.mrb[0].mxu0
    %v4421 = vadd.f32 0.0, %v4420
    %v4422 = vpop.f32.mrb[0].mxu0
    %v4423 = vpop.f32.mrb[0].mxu0
    %v4424 = vpop.f32.mrb[0].mxu0
    %4425 = vdwg.mxu0
    %v4426 = vsub.f32 0.0, %v4421
    %v4427 = vmul.f32 %v4426, 1.442695
    %v4428 = vpow.pop %v4427
    %v4429 = vadd.f32 %v4428, 1.0
    %v4430 = vrcp.pop %v4429
    %v4432 = vrot.slane %v4430, 4
    %v4434 = vmul.f32 %v3978, %v4432
    %v4435 = vpack.c.bf16 %v4434, %v4434
    %v4437 = vrot.slane %v4435, 2
    %v4439 = vsel %vm171, %v4437, 0
    %4441 = vmatprep.subr.bf16.mxu0 %v2746
    %4442 = vmatpush1.bf16.msra.mxu0 %v2745
    %4443 = vmatprep.subr.bf16.mxu0 %v2748
    %4444 = vmatpush1.bf16.msra.mxu0 %v2747
    %4445 = vmatprep.subr.bf16.mxu0 %v2750
    %4446 = vmatpush1.bf16.msra.mxu0 %v2749
    %4447 = vmatprep.subr.bf16.mxu0 %v2752
    %4448 = vmatpush1.bf16.msra.mxu0 %v2751
    %4449 = vmatprep.subr.bf16.mxu0 0
    %4450 = vmatpush1.bf16.msra.mxu0 0
    %4451 = vmatprep.subr.bf16.mxu0 0
    %4452 = vmatpush1.bf16.msra.mxu0 0
    %4453 = vmatprep.subr.bf16.mxu0 0
    %4454 = vmatpush1.bf16.msra.mxu0 0
    %4455 = vmatprep.subr.bf16.mxu0 0
    %4456 = vmatpush1.bf16.msra.mxu0 0
    %4457 = vmatprep.subr.bf16.mxu0 0
    %4458 = vmatpush1.bf16.msra.mxu0 0
    %4459 = vmatprep.subr.bf16.mxu0 0
    %4460 = vmatpush1.bf16.msra.mxu0 0
    %4461 = vmatprep.subr.bf16.mxu0 0
    %4462 = vmatpush1.bf16.msra.mxu0 0
    %4463 = vmatprep.subr.bf16.mxu0 0
    %4464 = vmatpush1.bf16.msra.mxu0 0
    %4465 = vmatprep.subr.bf16.mxu0 0
    %4466 = vmatpush1.bf16.msra.mxu0 0
    %4467 = vmatprep.subr.bf16.mxu0 0
    %4468 = vmatpush1.bf16.msra.mxu0 0
    %4469 = vmatprep.subr.bf16.mxu0 0
    %4470 = vmatpush1.bf16.msra.mxu0 0
    %4471 = vmatprep.subr.bf16.mxu0 0
    %4472 = vmatpush1.bf16.msra.mxu0 0
    %4473 = vmatprep.mubr.bf16.mxu0 0
    %4474 = vmatmul.mubr.bf16.gmra.mrb[0].mxu0 %v4439
    %v4475 = vpop.f32.mrb[0].mxu0
    %v4476 = vadd.f32 %v2677, %v4475
    %v4477 = vpop.f32.mrb[0].mxu0
    %v4478 = vadd.f32 %v2681, %v4477
    %v4479 = vpop.f32.mrb[0].mxu0
    %v4480 = vpop.f32.mrb[0].mxu0
    %4481 = vdwg.mxu0
    %v4483 = vrot.slane %v4476, 2
    %v4485 = vadd.f32 %v2656, %v4483
    %v4486 = vsub.f32 0.0, %v4485
    %v4487 = vmul.f32 %v4486, 1.442695
    %v4488 = vpow.pop %v4487
    %v4489 = vadd.f32 %v4488, 1.0
    %v4490 = vrcp.pop %v4489
    %v4492 = vrot.slane %v4478, 2
    %v4494 = vmul.f32 %v4490, %v4492
    %v4495 = vadd.f32 %v2658, %v4494
    %v4496 = vtanh.pop %v4495
    %v4498 = vrot.slane %v4496, 2
    %v4500 = vsub.f32 %v4434, %v4498
    %v4502 = vrot.slane %v4500, 6
    %4503 = vrot.lane.b32.xlu0 %v4502, 64
    %v4504 = vpop.permute.xlu0 %4503
    %v4506 = vmul.f32 %v4490, %v4504
    %4508 = vrot.lane.b32.xlu0 %v4506, 64
    %v4509 = vpop.permute.xlu0 %4508
    %v4511 = vadd.f32 %v4496, %v4509
    %v4513 = vcombine.high %v4511, %v4511
    %v4515 = vunpack.c.l.s4 1966171168
    %v4516 = vunpack.c.0.s8 %v4515
    %v4517 = vlaneseq
    %v4518 = vshrl.u32 %v4517, 7
    %v4519 = vsub.s32 %v4516, %v4518
    %v4520 = vrot.slane %v4513, %v4519
    %v4521 = vcombine.high %v4520, %v4520
    %v4523 = vunpack.c.l.s4 1966171168
    %v4524 = vunpack.c.0.s8 %v4523
    %v4525 = vlaneseq
    %v4526 = vshrl.u32 %v4525, 7
    %v4527 = vsub.s32 %v4524, %v4526
    %v4528 = vrot.slane %v4520, %v4527
    %v4530 = vunpack.c.l.s4 1966171168
    %v4531 = vunpack.c.0.s8 %v4530
    %v4532 = vlaneseq
    %v4533 = vshrl.u32 %v4532, 7
    %v4534 = vsub.s32 %v4531, %v4533
    %v4535 = vrot.slane %v4521, %v4534
    %v4536 = vcombine.high %v4528, %v4528
    %v4537 = vcombine.high %v4535, %v4535
    %v4538 = vlaneseq
    %v4539 = vshrl.u32 %v4538, 7
    %v4540 = vsub.s32 6, %v4539
    %v4541 = vrot.slane %v4511, %v4540
    %4543 = vbcast.lane.b32.xlu0 %v4541, 256
    %v4544 = vpop.permute.xlu0 %4543
    %s4546 = sor.u32 256, 8
    %4547 = vbcast.lane.b32.xlu0 %v4541, %s4546
    %v4548 = vpop.permute.xlu0 %4547
    %s4550 = sor.u32 256, 16
    %4551 = vbcast.lane.b32.xlu0 %v4541, %s4550
    %v4552 = vpop.permute.xlu0 %4551
    %s4554 = sor.u32 256, 24
    %4555 = vbcast.lane.b32.xlu0 %v4541, %s4554
    %v4556 = vpop.permute.xlu0 %4555
    %s4558 = sor.u32 256, 32
    %4559 = vbcast.lane.b32.xlu0 %v4541, %s4558
    %v4560 = vpop.permute.xlu0 %4559
    %s4562 = sor.u32 256, 40
    %4563 = vbcast.lane.b32.xlu0 %v4541, %s4562
    %v4564 = vpop.permute.xlu0 %4563
    %s4566 = sor.u32 256, 48
    %4567 = vbcast.lane.b32.xlu0 %v4541, %s4566
    %v4568 = vpop.permute.xlu0 %4567
    %s4570 = sor.u32 256, 56
    %4571 = vbcast.lane.b32.xlu0 %v4541, %s4570
    %v4572 = vpop.permute.xlu0 %4571
    %v4573 = vlaneseq
    %v4574 = vshrl.u32 %v4573, 7
    %v4575 = vsub.s32 7, %v4574
    %v4576 = vrot.slane %v4511, %v4575
    %4578 = vbcast.lane.b32.xlu0 %v4576, 256
    %v4579 = vpop.permute.xlu0 %4578
    %s4581 = sor.u32 256, 8
    %4582 = vbcast.lane.b32.xlu0 %v4576, %s4581
    %v4583 = vpop.permute.xlu0 %4582
    %s4585 = sor.u32 256, 16
    %4586 = vbcast.lane.b32.xlu0 %v4576, %s4585
    %v4587 = vpop.permute.xlu0 %4586
    %s4589 = sor.u32 256, 24
    %4590 = vbcast.lane.b32.xlu0 %v4576, %s4589
    %v4591 = vpop.permute.xlu0 %4590
    %s4593 = sor.u32 256, 32
    %4594 = vbcast.lane.b32.xlu0 %v4576, %s4593
    %v4595 = vpop.permute.xlu0 %4594
    %s4597 = sor.u32 256, 40
    %4598 = vbcast.lane.b32.xlu0 %v4576, %s4597
    %v4599 = vpop.permute.xlu0 %4598
    %s4601 = sor.u32 256, 48
    %4602 = vbcast.lane.b32.xlu0 %v4576, %s4601
    %v4603 = vpop.permute.xlu0 %4602
    %s4605 = sor.u32 256, 56
    %4606 = vbcast.lane.b32.xlu0 %v4576, %s4605
    %v4607 = vpop.permute.xlu0 %4606
    %v4608 = vlaneseq
    %v4609 = vshrl.u32 %v4608, 7
    %v4610 = vsub.s32 0, %v4609
    %v4611 = vrot.slane %v4536, %v4610
    %v4612 = vlaneseq
    %v4613 = vshrl.u32 %v4612, 7
    %v4614 = vsub.s32 0, %v4613
    %v4615 = vrot.slane %v4537, %v4614
    %vm4618 = vcmp.lt.f32.partialorder %v4611, %v4544
    %vm4619 = vcmp.lt.f32.partialorder %v4611, %v4548
    %vm4620 = vcmp.lt.f32.partialorder %v4611, %v4552
    %vm4621 = vcmp.lt.f32.partialorder %v4611, %v4556
    %vm4622 = vcmp.lt.f32.partialorder %v4611, %v4560
    %vm4623 = vcmp.lt.f32.partialorder %v4611, %v4564
    %vm4624 = vcmp.lt.f32.partialorder %v4611, %v4568
    %vm4625 = vcmp.lt.f32.partialorder %v4611, %v4572
    %vm4626 = vcmp.lt.f32.partialorder %v4615, %v4579
    %vm4627 = vcmp.lt.f32.partialorder %v4615, %v4583
    %vm4628 = vcmp.lt.f32.partialorder %v4615, %v4587
    %vm4629 = vcmp.lt.f32.partialorder %v4615, %v4591
    %vm4630 = vcmp.lt.f32.partialorder %v4615, %v4595
    %vm4631 = vcmp.lt.f32.partialorder %v4615, %v4599
    %vm4632 = vcmp.lt.f32.partialorder %v4615, %v4603
    %vm4633 = vcmp.lt.f32.partialorder %v4615, %v4607
    %vm4634 = vcmp.eq.f32.partialorder %v4611, %v4544
    %vm4635 = vcmp.eq.f32.partialorder %v4611, %v4548
    %vm4636 = vcmp.eq.f32.partialorder %v4611, %v4552
    %vm4637 = vcmp.eq.f32.partialorder %v4611, %v4556
    %vm4638 = vcmp.eq.f32.partialorder %v4611, %v4560
    %vm4639 = vcmp.eq.f32.partialorder %v4611, %v4564
    %vm4640 = vcmp.eq.f32.partialorder %v4611, %v4568
    %vm4641 = vcmp.eq.f32.partialorder %v4611, %v4572
    %vm4642 = vcmp.eq.f32.partialorder %v4615, %v4579
    %vm4643 = vcmp.eq.f32.partialorder %v4615, %v4583
    %vm4644 = vcmp.eq.f32.partialorder %v4615, %v4587
    %vm4645 = vcmp.eq.f32.partialorder %v4615, %v4591
    %vm4646 = vcmp.eq.f32.partialorder %v4615, %v4595
    %vm4647 = vcmp.eq.f32.partialorder %v4615, %v4599
    %vm4648 = vcmp.eq.f32.partialorder %v4615, %v4603
    %vm4649 = vcmp.eq.f32.partialorder %v4615, %v4607
    %vm4650 = vmand %vm4634, %vm525
    %vm4651 = vmand %vm4635, %vm526
    %vm4652 = vmand %vm4636, %vm527
    %vm4653 = vmand %vm4637, %vm528
    %vm4654 = vmand %vm4638, %vm529
    %vm4655 = vmand %vm4639, %vm530
    %vm4656 = vmand %vm4640, %vm531
    %vm4657 = vmand %vm4641, %vm532
    %vm4658 = vmand %vm4642, %vm525
    %vm4659 = vmand %vm4643, %vm526
    %vm4660 = vmand %vm4644, %vm527
    %vm4661 = vmand %vm4645, %vm528
    %vm4662 = vmand %vm4646, %vm529
    %vm4663 = vmand %vm4647, %vm530
    %vm4664 = vmand %vm4648, %vm531
    %vm4665 = vmand %vm4649, %vm532
    %vm4666 = vmor %vm4618, %vm4650
    %vm4667 = vmor %vm4619, %vm4651
    %vm4668 = vmor %vm4620, %vm4652
    %vm4669 = vmor %vm4621, %vm4653
    %vm4670 = vmor %vm4622, %vm4654
    %vm4671 = vmor %vm4623, %vm4655
    %vm4672 = vmor %vm4624, %vm4656
    %vm4673 = vmor %vm4625, %vm4657
    %vm4674 = vmor %vm4626, %vm4658
    %vm4675 = vmor %vm4627, %vm4659
    %vm4676 = vmor %vm4628, %vm4660
    %vm4677 = vmor %vm4629, %vm4661
    %vm4678 = vmor %vm4630, %vm4662
    %vm4679 = vmor %vm4631, %vm4663
    %vm4680 = vmor %vm4632, %vm4664
    %vm4681 = vmor %vm4633, %vm4665
    %v4682 = vsel %vm4666, 1, 0
    %v4683 = vsel %vm4667, 1, 0
    %v4684 = vsel %vm4668, 1, 0
    %v4685 = vsel %vm4669, 1, 0
    %v4686 = vsel %vm4670, 1, 0
    %v4687 = vsel %vm4671, 1, 0
    %v4688 = vsel %vm4672, 1, 0
    %v4689 = vsel %vm4673, 1, 0
    %v4690 = vsel %vm4674, 1, 0
    %v4691 = vsel %vm4675, 1, 0
    %v4692 = vsel %vm4676, 1, 0
    %v4693 = vsel %vm4677, 1, 0
    %v4694 = vsel %vm4678, 1, 0
    %v4695 = vsel %vm4679, 1, 0
    %v4696 = vsel %vm4680, 1, 0
    %v4697 = vsel %vm4681, 1, 0
    %v4698 = vcvt.s32.f32 %v4682
    %v4699 = vcvt.s32.f32 %v4683
    %v4700 = vcvt.s32.f32 %v4684
    %v4701 = vcvt.s32.f32 %v4685
    %v4702 = vcvt.s32.f32 %v4686
    %v4703 = vcvt.s32.f32 %v4687
    %v4704 = vcvt.s32.f32 %v4688
    %v4705 = vcvt.s32.f32 %v4689
    %v4706 = vcvt.s32.f32 %v4690
    %v4707 = vcvt.s32.f32 %v4691
    %v4708 = vcvt.s32.f32 %v4692
    %v4709 = vcvt.s32.f32 %v4693
    %v4710 = vcvt.s32.f32 %v4694
    %v4711 = vcvt.s32.f32 %v4695
    %v4712 = vcvt.s32.f32 %v4696
    %v4713 = vcvt.s32.f32 %v4697
    %v4714 = vsel %vm171, %v4698, 0.0
    %4715 = vadd.xlane.f32.xlu0 %v4714
    %v4716 = vpop.xlane.xlu0 %4715
    %v4717 = vsel %vm171, %v4699, 0.0
    %4718 = vadd.xlane.f32.xlu0 %v4717
    %v4719 = vpop.xlane.xlu0 %4718
    %v4720 = vsel %vm171, %v4700, 0.0
    %4721 = vadd.xlane.f32.xlu0 %v4720
    %v4722 = vpop.xlane.xlu0 %4721
    %v4723 = vsel %vm171, %v4701, 0.0
    %4724 = vadd.xlane.f32.xlu0 %v4723
    %v4725 = vpop.xlane.xlu0 %4724
    %v4726 = vsel %vm171, %v4702, 0.0
    %4727 = vadd.xlane.f32.xlu0 %v4726
    %v4728 = vpop.xlane.xlu0 %4727
    %v4729 = vsel %vm171, %v4703, 0.0
    %4730 = vadd.xlane.f32.xlu0 %v4729
    %v4731 = vpop.xlane.xlu0 %4730
    %v4732 = vsel %vm171, %v4704, 0.0
    %4733 = vadd.xlane.f32.xlu0 %v4732
    %v4734 = vpop.xlane.xlu0 %4733
    %v4735 = vsel %vm171, %v4705, 0.0
    %4736 = vadd.xlane.f32.xlu0 %v4735
    %v4737 = vpop.xlane.xlu0 %4736
    %v4738 = vsel %vm171, %v4706, 0.0
    %4739 = vadd.xlane.f32.xlu0 %v4738
    %v4740 = vpop.xlane.xlu0 %4739
    %v4741 = vsel %vm171, %v4707, 0.0
    %4742 = vadd.xlane.f32.xlu0 %v4741
    %v4743 = vpop.xlane.xlu0 %4742
    %v4744 = vsel %vm171, %v4708, 0.0
    %4745 = vadd.xlane.f32.xlu0 %v4744
    %v4746 = vpop.xlane.xlu0 %4745
    %v4747 = vsel %vm171, %v4709, 0.0
    %4748 = vadd.xlane.f32.xlu0 %v4747
    %v4749 = vpop.xlane.xlu0 %4748
    %v4750 = vsel %vm171, %v4710, 0.0
    %4751 = vadd.xlane.f32.xlu0 %v4750
    %v4752 = vpop.xlane.xlu0 %4751
    %v4753 = vsel %vm171, %v4711, 0.0
    %4754 = vadd.xlane.f32.xlu0 %v4753
    %v4755 = vpop.xlane.xlu0 %4754
    %v4756 = vsel %vm171, %v4712, 0.0
    %4757 = vadd.xlane.f32.xlu0 %v4756
    %v4758 = vpop.xlane.xlu0 %4757
    %v4759 = vsel %vm171, %v4713, 0.0
    %4760 = vadd.xlane.f32.xlu0 %v4759
    %v4761 = vpop.xlane.xlu0 %4760
    %vm4762 = vcmp.eq.f32.partialorder %v4716, %v108
    %vm4763 = vcmp.eq.f32.partialorder %v4719, %v108
    %vm4764 = vcmp.eq.f32.partialorder %v4722, %v108
    %vm4765 = vcmp.eq.f32.partialorder %v4725, %v108
    %vm4766 = vcmp.eq.f32.partialorder %v4728, %v108
    %vm4767 = vcmp.eq.f32.partialorder %v4731, %v108
    %vm4768 = vcmp.eq.f32.partialorder %v4734, %v108
    %vm4769 = vcmp.eq.f32.partialorder %v4737, %v108
    %vm4770 = vcmp.eq.f32.partialorder %v4740, %v108
    %vm4771 = vcmp.eq.f32.partialorder %v4743, %v108
    %vm4772 = vcmp.eq.f32.partialorder %v4746, %v108
    %vm4773 = vcmp.eq.f32.partialorder %v4749, %v108
    %vm4774 = vcmp.eq.f32.partialorder %v4752, %v108
    %vm4775 = vcmp.eq.f32.partialorder %v4755, %v108
    %vm4776 = vcmp.eq.f32.partialorder %v4758, %v108
    %vm4777 = vcmp.eq.f32.partialorder %v4761, %v108
    %v4778 = vsel %vm4762, 1, 0
    %v4779 = vsel %vm4763, 1, 0
    %v4780 = vsel %vm4764, 1, 0
    %v4781 = vsel %vm4765, 1, 0
    %v4782 = vsel %vm4766, 1, 0
    %v4783 = vsel %vm4767, 1, 0
    %v4784 = vsel %vm4768, 1, 0
    %v4785 = vsel %vm4769, 1, 0
    %v4786 = vsel %vm4770, 1, 0
    %v4787 = vsel %vm4771, 1, 0
    %v4788 = vsel %vm4772, 1, 0
    %v4789 = vsel %vm4773, 1, 0
    %v4790 = vsel %vm4774, 1, 0
    %v4791 = vsel %vm4775, 1, 0
    %v4792 = vsel %vm4776, 1, 0
    %v4793 = vsel %vm4777, 1, 0
    %v4794 = vcvt.s32.f32 %v4778
    %v4795 = vcvt.s32.f32 %v4779
    %v4796 = vcvt.s32.f32 %v4780
    %v4797 = vcvt.s32.f32 %v4781
    %v4798 = vcvt.s32.f32 %v4782
    %v4799 = vcvt.s32.f32 %v4783
    %v4800 = vcvt.s32.f32 %v4784
    %v4801 = vcvt.s32.f32 %v4785
    %v4802 = vcvt.s32.f32 %v4786
    %v4803 = vcvt.s32.f32 %v4787
    %v4804 = vcvt.s32.f32 %v4788
    %v4805 = vcvt.s32.f32 %v4789
    %v4806 = vcvt.s32.f32 %v4790
    %v4807 = vcvt.s32.f32 %v4791
    %v4808 = vcvt.s32.f32 %v4792
    %v4809 = vcvt.s32.f32 %v4793
    %v4810 = vmul.f32 %v4794, %v4544
    %v4811 = vmul.f32 %v4795, %v4548
    %v4812 = vmul.f32 %v4796, %v4552
    %v4813 = vmul.f32 %v4797, %v4556
    %v4814 = vmul.f32 %v4798, %v4560
    %v4815 = vmul.f32 %v4799, %v4564
    %v4816 = vmul.f32 %v4800, %v4568
    %v4817 = vmul.f32 %v4801, %v4572
    %v4818 = vmul.f32 %v4802, %v4579
    %v4819 = vmul.f32 %v4803, %v4583
    %v4820 = vmul.f32 %v4804, %v4587
    %v4821 = vmul.f32 %v4805, %v4591
    %v4822 = vmul.f32 %v4806, %v4595
    %v4823 = vmul.f32 %v4807, %v4599
    %v4824 = vmul.f32 %v4808, %v4603
    %v4825 = vmul.f32 %v4809, %v4607
    %v4826 = vsel %vm171, %v4810, 0.0
    %v4827 = vsel %vm171, %v4811, 0.0
    %v4828 = vadd.f32 %v4826, %v4827
    %v4829 = vsel %vm171, %v4812, 0.0
    %v4830 = vadd.f32 %v4828, %v4829
    %v4831 = vsel %vm171, %v4813, 0.0
    %v4832 = vadd.f32 %v4830, %v4831
    %v4833 = vsel %vm171, %v4814, 0.0
    %v4834 = vadd.f32 %v4832, %v4833
    %v4835 = vsel %vm171, %v4815, 0.0
    %v4836 = vadd.f32 %v4834, %v4835
    %v4837 = vsel %vm171, %v4816, 0.0
    %v4838 = vadd.f32 %v4836, %v4837
    %v4839 = vsel %vm171, %v4817, 0.0
    %v4840 = vadd.f32 %v4838, %v4839
    %v4841 = vrot.slane %v4840, 4
    %v4842 = vadd.f32 %v4840, %v4841
    %v4843 = vrot.slane %v4842, 2
    %v4844 = vadd.f32 %v4842, %v4843
    %v4845 = vrot.slane %v4844, 1
    %v4846 = vadd.f32 %v4844, %v4845
    %v4847 = vsel %vm171, %v4818, 0.0
    %v4848 = vsel %vm171, %v4819, 0.0
    %v4849 = vadd.f32 %v4847, %v4848
    %v4850 = vsel %vm171, %v4820, 0.0
    %v4851 = vadd.f32 %v4849, %v4850
    %v4852 = vsel %vm171, %v4821, 0.0
    %v4853 = vadd.f32 %v4851, %v4852
    %v4854 = vsel %vm171, %v4822, 0.0
    %v4855 = vadd.f32 %v4853, %v4854
    %v4856 = vsel %vm171, %v4823, 0.0
    %v4857 = vadd.f32 %v4855, %v4856
    %v4858 = vsel %vm171, %v4824, 0.0
    %v4859 = vadd.f32 %v4857, %v4858
    %v4860 = vsel %vm171, %v4825, 0.0
    %v4861 = vadd.f32 %v4859, %v4860
    %v4862 = vrot.slane %v4861, 4
    %v4863 = vadd.f32 %v4861, %v4862
    %v4864 = vrot.slane %v4863, 2
    %v4865 = vadd.f32 %v4863, %v4864
    %v4866 = vrot.slane %v4865, 1
    %v4867 = vadd.f32 %v4865, %v4866
    %v4870 = vsel %vm2446, %v4867, %v4846
    %4871 = vrot.lane.b32.xlu0 %v4870, 64
    %v4872 = vpop.permute.xlu0 %4871
    %v4874 = vsel %vm171, %v4511, %v4872
    %v4875 = vpack.c.bf16 %v4874, %v4874
    %v4877 = vrot.slane %v4875, 3
    %4879 = vmatprep.subr.bf16.mxu0 0
    %4880 = vmatpush1.bf16.msra.mxu0 %v3218
    %4881 = vmatprep.subr.bf16.mxu0 0
    %4882 = vmatpush1.bf16.msra.mxu0 %v3219
    %4883 = vmatprep.subr.bf16.mxu0 0
    %4884 = vmatpush1.bf16.msra.mxu0 %v3220
    %4885 = vmatprep.subr.bf16.mxu0 0
    %4886 = vmatpush1.bf16.msra.mxu0 %v3221
    %4887 = vmatprep.subr.bf16.mxu0 0
    %4888 = vmatpush1.bf16.msra.mxu0 %v3222
    %4889 = vmatprep.subr.bf16.mxu0 0
    %4890 = vmatpush1.bf16.msra.mxu0 %v3223
    %4891 = vmatprep.subr.bf16.mxu0 0
    %4892 = vmatpush1.bf16.msra.mxu0 %v3224
    %4893 = vmatprep.subr.bf16.mxu0 0
    %4894 = vmatpush1.bf16.msra.mxu0 %v3225
    %4895 = vmatprep.subr.bf16.mxu0 0
    %4896 = vmatpush1.bf16.msra.mxu0 0
    %4897 = vmatprep.subr.bf16.mxu0 0
    %4898 = vmatpush1.bf16.msra.mxu0 0
    %4899 = vmatprep.subr.bf16.mxu0 0
    %4900 = vmatpush1.bf16.msra.mxu0 0
    %4901 = vmatprep.subr.bf16.mxu0 0
    %4902 = vmatpush1.bf16.msra.mxu0 0
    %4903 = vmatprep.subr.bf16.mxu0 0
    %4904 = vmatpush1.bf16.msra.mxu0 0
    %4905 = vmatprep.subr.bf16.mxu0 0
    %4906 = vmatpush1.bf16.msra.mxu0 0
    %4907 = vmatprep.subr.bf16.mxu0 0
    %4908 = vmatpush1.bf16.msra.mxu0 0
    %4909 = vmatprep.subr.bf16.mxu0 0
    %4910 = vmatpush1.bf16.msra.mxu0 0
    %4911 = vmatprep.mubr.bf16.mxu0 0
    %4912 = vmatmul.mubr.bf16.gmra.mrb[0].mxu0 %v4877
    %v4913 = vpop.f32.mrb[0].mxu0
    %v4914 = vadd.f32 0.0, %v4913
    %v4915 = vpop.f32.mrb[0].mxu0
    %v4916 = vpop.f32.mrb[0].mxu0
    %v4917 = vpop.f32.mrb[0].mxu0
    %4918 = vdwg.mxu0
    %v4919 = vmax.f32 %v4914, 0.0
    %v4920 = vpack.c.bf16 %v4919, %v4919
    %4921 = vmatprep.subr.bf16.mxu0 0
    %4922 = vmatpush1.bf16.msra.mxu0 %v3308
    %4923 = vmatprep.subr.bf16.mxu0 0
    %4924 = vmatpush1.bf16.msra.mxu0 %v3309
    %4925 = vmatprep.subr.bf16.mxu0 0
    %4926 = vmatpush1.bf16.msra.mxu0 %v3310
    %4927 = vmatprep.subr.bf16.mxu0 0
    %4928 = vmatpush1.bf16.msra.mxu0 %v3311
    %4929 = vmatprep.subr.bf16.mxu0 0
    %4930 = vmatpush1.bf16.msra.mxu0 %v3312
    %4931 = vmatprep.subr.bf16.mxu0 0
    %4932 = vmatpush1.bf16.msra.mxu0 %v3313
    %4933 = vmatprep.subr.bf16.mxu0 0
    %4934 = vmatpush1.bf16.msra.mxu0 %v3314
    %4935 = vmatprep.subr.bf16.mxu0 0
    %4936 = vmatpush1.bf16.msra.mxu0 %v3315
    %4937 = vmatprep.subr.bf16.mxu0 0
    %4938 = vmatpush1.bf16.msra.mxu0 0
    %4939 = vmatprep.subr.bf16.mxu0 0
    %4940 = vmatpush1.bf16.msra.mxu0 0
    %4941 = vmatprep.subr.bf16.mxu0 0
    %4942 = vmatpush1.bf16.msra.mxu0 0
    %4943 = vmatprep.subr.bf16.mxu0 0
    %4944 = vmatpush1.bf16.msra.mxu0 0
    %4945 = vmatprep.subr.bf16.mxu0 0
    %4946 = vmatpush1.bf16.msra.mxu0 0
    %4947 = vmatprep.subr.bf16.mxu0 0
    %4948 = vmatpush1.bf16.msra.mxu0 0
    %4949 = vmatprep.subr.bf16.mxu0 0
    %4950 = vmatpush1.bf16.msra.mxu0 0
    %4951 = vmatprep.subr.bf16.mxu0 0
    %4952 = vmatpush1.bf16.msra.mxu0 0
    %4953 = vmatprep.mubr.bf16.mxu0 0
    %4954 = vmatmul.mubr.bf16.gmra.mrb[0].mxu0 %v4920
    %v4955 = vpop.f32.mrb[0].mxu0
    %v4956 = vadd.f32 0.0, %v4955
    %v4957 = vpop.f32.mrb[0].mxu0
    %v4958 = vpop.f32.mrb[0].mxu0
    %v4959 = vpop.f32.mrb[0].mxu0
    %4960 = vdwg.mxu0
    %v4961 = vsub.f32 0.0, %v4956
    %v4962 = vmul.f32 %v4961, 1.442695
    %v4963 = vpow.pop %v4962
    %v4964 = vadd.f32 %v4963, 1.0
    %v4965 = vrcp.pop %v4964
    %v4967 = vrot.slane %v4965, 2
    %v4969 = vmul.f32 %v4511, %v4967
    %s4970 = scalar_lea.vmem [#allocation11], 2
    %4971 = vst.msk [vmem:[%s4970 - $0x6] sm:$0xc0] %vm2547, %v4969
    %v4972 = vsel %vm2549, %v3369, %v3901
    %v4973 = vsel %vm2551, %v4972, %v4434
    %v4974 = vsel %vm2553, %v4973, %v4969
    %v4975 = vpack.c.bf16 %v4974, %v4974
    %v4976 = vld [vmem:[%s8] sm:$0xf]
    %v4977 = vld [vmem:[%s8 + $0x4] sm:$0xf]
    %v4978 = vld [vmem:[%s8 + $0x8] sm:$0xf]
    %v4979 = vld [vmem:[%s8 + $0xc] sm:$0xf]
    %v4980 = vld [vmem:[%s8 + $0x10] sm:$0xf]
    %v4981 = vld [vmem:[%s8 + $0x14] sm:$0xf]
    %v4982 = vld [vmem:[%s8 + $0x18] sm:$0xf]
    %v4983 = vld [vmem:[%s8 + $0x1c] sm:$0xf]
    %v4992 = vunpack.c.l.b16 %v4976
    %v4993 = vunpack.c.l.b16 %v4977
    %v4994 = vunpack.c.l.b16 %v4978
    %v4995 = vunpack.c.l.b16 %v4979
    %v4996 = vunpack.c.l.b16 %v4980
    %v4997 = vunpack.c.l.b16 %v4981
    %v4998 = vunpack.c.l.b16 %v4982
    %v4999 = vunpack.c.l.b16 %v4983
    %v5000 = vpack.c.b16 %v4993, %v4992
    %v5001 = vpack.c.b16 %v4995, %v4994
    %v5002 = vpack.c.b16 %v4997, %v4996
    %v5003 = vpack.c.b16 %v4999, %v4998
    %v5009 = vsel %vm171, %v4975, 0
    %5011 = vmatprep.subr.bf16.mxu0 0
    %5012 = vmatpush1.bf16.msra.mxu0 %v5000
    %5013 = vmatprep.subr.bf16.mxu0 0
    %5014 = vmatpush1.bf16.msra.mxu0 %v5001
    %5015 = vmatprep.subr.bf16.mxu0 0
    %5016 = vmatpush1.bf16.msra.mxu0 %v5002
    %5017 = vmatprep.subr.bf16.mxu0 0
    %5018 = vmatpush1.bf16.msra.mxu0 %v5003
    %5019 = vmatprep.subr.bf16.mxu0 0
    %5020 = vmatpush1.bf16.msra.mxu0 0
    %5021 = vmatprep.subr.bf16.mxu0 0
    %5022 = vmatpush1.bf16.msra.mxu0 0
    %5023 = vmatprep.subr.bf16.mxu0 0
    %5024 = vmatpush1.bf16.msra.mxu0 0
    %5025 = vmatprep.subr.bf16.mxu0 0
    %5026 = vmatpush1.bf16.msra.mxu0 0
    %5027 = vmatprep.subr.bf16.mxu0 0
    %5028 = vmatpush1.bf16.msra.mxu0 0
    %5029 = vmatprep.subr.bf16.mxu0 0
    %5030 = vmatpush1.bf16.msra.mxu0 0
    %5031 = vmatprep.subr.bf16.mxu0 0
    %5032 = vmatpush1.bf16.msra.mxu0 0
    %5033 = vmatprep.subr.bf16.mxu0 0
    %5034 = vmatpush1.bf16.msra.mxu0 0
    %5035 = vmatprep.subr.bf16.mxu0 0
    %5036 = vmatpush1.bf16.msra.mxu0 0
    %5037 = vmatprep.subr.bf16.mxu0 0
    %5038 = vmatpush1.bf16.msra.mxu0 0
    %5039 = vmatprep.subr.bf16.mxu0 0
    %5040 = vmatpush1.bf16.msra.mxu0 0
    %5041 = vmatprep.subr.bf16.mxu0 0
    %5042 = vmatpush1.bf16.msra.mxu0 0
    %5043 = vmatprep.mubr.bf16.mxu0 0
    %5044 = vmatmul.mubr.bf16.gmra.mrb[0].mxu0 %v5009
    %v5045 = vpop.f32.mrb[0].mxu0
    %v5046 = vadd.f32 0.0, %v5045
    %v5047 = vpop.f32.mrb[0].mxu0
    %v5048 = vpop.f32.mrb[0].mxu0
    %v5049 = vpop.f32.mrb[0].mxu0
    %5050 = vdwg.mxu0
    %5052 = vrot.lane.b32.xlu0 %v5046, 64
    %v5053 = vpop.permute.xlu0 %5052
    %v5055 = vsel %vm171, %v4974, %v5053
    %5056 = vst [vmem:[#allocation10] sm:$0xff] %v5055
    %5058 = vrot.lane.b32.xlu0 %v4969, 64
    %v5059 = vpop.permute.xlu0 %5058
    %v5061 = vsel %vm171, %v2546, %v5059
    %v5062 = vpack.c.bf16 %v5061, %v5061
    %v5063 = vld [vmem:[%s9] sm:$0xf]
    %v5064 = vld [vmem:[%s9 + $0x4] sm:$0xf]
    %v5065 = vld [vmem:[%s9 + $0x8] sm:$0xf]
    %v5066 = vld [vmem:[%s9 + $0xc] sm:$0xf]
    %v5067 = vld [vmem:[%s9 + $0x10] sm:$0xf]
    %v5068 = vld [vmem:[%s9 + $0x14] sm:$0xf]
    %v5069 = vld [vmem:[%s9 + $0x18] sm:$0xf]
    %v5070 = vld [vmem:[%s9 + $0x1c] sm:$0xf]
    %v5071 = vld [vmem:[%s9 + $0x20] sm:$0xf]
    %v5072 = vld [vmem:[%s9 + $0x24] sm:$0xf]
    %v5073 = vld [vmem:[%s9 + $0x28] sm:$0xf]
    %v5074 = vld [vmem:[%s9 + $0x2c] sm:$0xf]
    %v5075 = vld [vmem:[%s9 + $0x30] sm:$0xf]
    %v5076 = vld [vmem:[%s9 + $0x34] sm:$0xf]
    %v5077 = vld [vmem:[%s9 + $0x38] sm:$0xf]
    %v5078 = vld [vmem:[%s9 + $0x3c] sm:$0xf]
    %v5080 = vrot.slane %v5062, 3
    %v5098 = vunpack.c.l.b16 %v5063
    %v5099 = vunpack.c.l.b16 %v5064
    %v5100 = vunpack.c.l.b16 %v5065
    %v5101 = vunpack.c.l.b16 %v5066
    %v5102 = vunpack.c.l.b16 %v5067
    %v5103 = vunpack.c.l.b16 %v5068
    %v5104 = vunpack.c.l.b16 %v5069
    %v5105 = vunpack.c.l.b16 %v5070
    %v5106 = vunpack.c.l.b16 %v5071
    %v5107 = vunpack.c.l.b16 %v5072
    %v5108 = vunpack.c.l.b16 %v5073
    %v5109 = vunpack.c.l.b16 %v5074
    %v5110 = vunpack.c.l.b16 %v5075
    %v5111 = vunpack.c.l.b16 %v5076
    %v5112 = vunpack.c.l.b16 %v5077
    %v5113 = vunpack.c.l.b16 %v5078
    %v5114 = vpack.c.b16 %v5099, %v5098
    %v5115 = vpack.c.b16 %v5101, %v5100
    %v5116 = vpack.c.b16 %v5103, %v5102
    %v5117 = vpack.c.b16 %v5105, %v5104
    %v5118 = vpack.c.b16 %v5107, %v5106
    %v5119 = vpack.c.b16 %v5109, %v5108
    %v5120 = vpack.c.b16 %v5111, %v5110
    %v5121 = vpack.c.b16 %v5113, %v5112
    %5130 = vmatprep.subr.bf16.mxu0 0
    %5131 = vmatpush1.bf16.msra.mxu0 %v5114
    %5132 = vmatprep.subr.bf16.mxu0 0
    %5133 = vmatpush1.bf16.msra.mxu0 %v5115
    %5134 = vmatprep.subr.bf16.mxu0 0
    %5135 = vmatpush1.bf16.msra.mxu0 %v5116
    %5136 = vmatprep.subr.bf16.mxu0 0
    %5137 = vmatpush1.bf16.msra.mxu0 %v5117
    %5138 = vmatprep.subr.bf16.mxu0 0
    %5139 = vmatpush1.bf16.msra.mxu0 %v5118
    %5140 = vmatprep.subr.bf16.mxu0 0
    %5141 = vmatpush1.bf16.msra.mxu0 %v5119
    %5142 = vmatprep.subr.bf16.mxu0 0
    %5143 = vmatpush1.bf16.msra.mxu0 %v5120
    %5144 = vmatprep.subr.bf16.mxu0 0
    %5145 = vmatpush1.bf16.msra.mxu0 %v5121
    %5146 = vmatprep.subr.bf16.mxu0 0
    %5147 = vmatpush1.bf16.msra.mxu0 0
    %5148 = vmatprep.subr.bf16.mxu0 0
    %5149 = vmatpush1.bf16.msra.mxu0 0
    %5150 = vmatprep.subr.bf16.mxu0 0
    %5151 = vmatpush1.bf16.msra.mxu0 0
    %5152 = vmatprep.subr.bf16.mxu0 0
    %5153 = vmatpush1.bf16.msra.mxu0 0
    %5154 = vmatprep.subr.bf16.mxu0 0
    %5155 = vmatpush1.bf16.msra.mxu0 0
    %5156 = vmatprep.subr.bf16.mxu0 0
    %5157 = vmatpush1.bf16.msra.mxu0 0
    %5158 = vmatprep.subr.bf16.mxu0 0
    %5159 = vmatpush1.bf16.msra.mxu0 0
    %5160 = vmatprep.subr.bf16.mxu0 0
    %5161 = vmatpush1.bf16.msra.mxu0 0
    %5162 = vmatprep.mubr.bf16.mxu0 0
    %5163 = vmatmul.mubr.bf16.gmra.mrb[0].mxu0 %v5080
    %v5164 = vpop.f32.mrb[0].mxu0
    %v5165 = vadd.f32 0.0, %v5164
    %v5166 = vpop.f32.mrb[0].mxu0
    %v5167 = vpop.f32.mrb[0].mxu0
    %v5168 = vpop.f32.mrb[0].mxu0
    %5169 = vdwg.mxu0
    %v5170 = vmax.f32 %v5165, 0.0
    %v5171 = vpack.c.bf16 %v5170, %v5170
    %v5172 = vld [vmem:[%s10] sm:$0xf]
    %v5173 = vld [vmem:[%s10 + $0x4] sm:$0xf]
    %v5174 = vld [vmem:[%s10 + $0x8] sm:$0xf]
    %v5175 = vld [vmem:[%s10 + $0xc] sm:$0xf]
    %v5180 = vunpack.c.l.b16 %v5172
    %v5181 = vunpack.c.l.b16 %v5173
    %v5182 = vunpack.c.l.b16 %v5174
    %v5183 = vunpack.c.l.b16 %v5175
    %v5184 = vpack.c.b16 %v5181, %v5180
    %v5185 = vpack.c.b16 %v5183, %v5182
    %vm5188 = vcmask 261120
    %v5190 = vsel %vm5188, %v5171, 0
    %5192 = vmatprep.subr.bf16.mxu0 0
    %5193 = vmatpush1.bf16.msra.mxu0 %v5184
    %5194 = vmatprep.subr.bf16.mxu0 0
    %5195 = vmatpush1.bf16.msra.mxu0 %v5185
    %5196 = vmatprep.subr.bf16.mxu0 0
    %5197 = vmatpush1.bf16.msra.mxu0 0
    %5198 = vmatprep.subr.bf16.mxu0 0
    %5199 = vmatpush1.bf16.msra.mxu0 0
    %5200 = vmatprep.subr.bf16.mxu0 0
    %5201 = vmatpush1.bf16.msra.mxu0 0
    %5202 = vmatprep.subr.bf16.mxu0 0
    %5203 = vmatpush1.bf16.msra.mxu0 0
    %5204 = vmatprep.subr.bf16.mxu0 0
    %5205 = vmatpush1.bf16.msra.mxu0 0
    %5206 = vmatprep.subr.bf16.mxu0 0
    %5207 = vmatpush1.bf16.msra.mxu0 0
    %5208 = vmatprep.subr.bf16.mxu0 0
    %5209 = vmatpush1.bf16.msra.mxu0 0
    %5210 = vmatprep.subr.bf16.mxu0 0
    %5211 = vmatpush1.bf16.msra.mxu0 0
    %5212 = vmatprep.subr.bf16.mxu0 0
    %5213 = vmatpush1.bf16.msra.mxu0 0
    %5214 = vmatprep.subr.bf16.mxu0 0
    %5215 = vmatpush1.bf16.msra.mxu0 0
    %5216 = vmatprep.subr.bf16.mxu0 0
    %5217 = vmatpush1.bf16.msra.mxu0 0
    %5218 = vmatprep.subr.bf16.mxu0 0
    %5219 = vmatpush1.bf16.msra.mxu0 0
    %5220 = vmatprep.subr.bf16.mxu0 0
    %5221 = vmatpush1.bf16.msra.mxu0 0
    %5222 = vmatprep.subr.bf16.mxu0 0
    %5223 = vmatpush1.bf16.msra.mxu0 0
    %5224 = vmatprep.mubr.bf16.mxu0 0
    %5225 = vmatmul.mubr.bf16.gmra.mrb[0].mxu0 %v5190
    %v5226 = vpop.f32.mrb[0].mxu0
    %v5227 = vadd.f32 0.0, %v5226
    %v5228 = vpop.f32.mrb[0].mxu0
    %v5229 = vpop.f32.mrb[0].mxu0
    %v5230 = vpop.f32.mrb[0].mxu0
    %5231 = vdwg.mxu0
    %vm5232 = vcmask 25600
    %5233 = vst.msk [vmem:[#allocation13] sm:$0x3] %vm5232, %v5227
    // Predicated region
    $region62: #{run_kernel.1} parent=1 // pred_check
      _
    $region63: #{run_kernel.1} parent=1 // pred_check_branch
      %5235 = sbr.rel (0) target = $region65
    $region64: #{run_kernel.1} parent=1 // pred_region
      %s5237 = ssub.s32 128, 128
      %5238 = vsyncadd [#allocation4], %s5237
      %s5240 = sshll.u32 [#allocation10], 4
      %s5241 = int_to_ptr.vmem [resolvable:$true] %s5240
      %5243 = dma.vmem_to_hbm [thread:$0]  %s5241, 128, %s11, [#allocation4]
    $region65: #{run_kernel.1} parent=1 // pred_fallthru
      _
    // Predicated region
    $region66: #{run_kernel.1} parent=1 // pred_check
      _
    $region67: #{run_kernel.1} parent=1 // pred_check_branch
      %5245 = sbr.rel (0) target = $region69
    $region68: #{run_kernel.1} parent=1 // pred_region
      %s5247 = ssub.s32 64, 64
      %5248 = vsyncadd [#allocation12], %s5247
      %s5249 = sshll.u32 [#allocation11], 4
      %s5250 = int_to_ptr.vmem [resolvable:$true] %s5249
      %5255 = dma.vmem_to_hbm [thread:$0]  %s5250, 64, %s12, [#allocation12], 32, 32, 2
    $region69: #{run_kernel.1} parent=1 // pred_fallthru
      _
    // Predicated region
    $region70: #{run_kernel.1} parent=1 // pred_check
      _
    $region71: #{run_kernel.1} parent=1 // pred_check_branch
      %5257 = sbr.rel (0) target = $region73
    $region72: #{run_kernel.1} parent=1 // pred_region
      %s5259 = ssub.s32 32, 32
      %5260 = vsyncadd [#allocation12], %s5259
      %s5262 = sshll.u32 [#allocation13], 4
      %s5263 = int_to_ptr.vmem [resolvable:$true] %s5262
      %5265 = dma.vmem_to_hbm [thread:$0]  %s5263, 32, %s13, [#allocation12]
    $region73: #{run_kernel.1} parent=1 // pred_fallthru
      _
    // Predicated region
    $region74: #{run_kernel.1} parent=1 // pred_check
      _
    $region75: #{run_kernel.1} parent=1 // pred_check_branch
      %5267 = sbr.rel (0) target = $region77
    $region76: #{run_kernel.1} parent=1 // pred_region
      %5268 = dma.done [#allocation4], 128
    $region77: #{run_kernel.1} parent=1 // pred_fallthru
      _
    // Predicated region
    $region78: #{run_kernel.1} parent=1 // pred_check
      _
    $region79: #{run_kernel.1} parent=1 // pred_check_branch
      %5270 = sbr.rel (0) target = $region81
    $region80: #{run_kernel.1} parent=1 // pred_region
      %5271 = dma.done [#allocation12], 64
    $region81: #{run_kernel.1} parent=1 // pred_fallthru
      _
    // Predicated region
    $region82: #{run_kernel.1} parent=1 // pred_check
      _
    $region83: #{run_kernel.1} parent=1 // pred_check_branch
      %5273 = sbr.rel (0) target = $region85
    $region84: #{run_kernel.1} parent=1 // pred_region
      %5274 = dma.done [#allocation12], 32
    $region85: #{run_kernel.1} parent=1 // pred_fallthru
      _
    %5275 = vsyncpa [#allocation3], 1
    %5276 = vsyncpa [#allocation6], 1
    %5277 = vsyncpa [#allocation9], 1
    %5278 = vsyncpa [#allocation4], 1
    %5279 = vsyncpa [#allocation12], 1

</llo_original>
